<compile_context>
chip_gen: v7x
topology: tpu7x:2x2x1
jax: 0.10.0
libtpu: 0.0.40
codegen_flags: <defaults>
</compile_context>

<pallas_src>
from functools import partial

import numpy as np
import jax
import jax.numpy as jnp
from jax import lax
from jax.experimental import pallas as pl
from jax.experimental.pallas import tpu as pltpu

_EPS = 1e-5  # nn.BatchNorm2d default


def _r8(n):
    return ((n + 7) // 8) * 8


def _decoder_kernel(x_ref, w1_ref, wall_ref, w3_ref, bias_ref, o_ref,
                    *, H, W, nb, c4, cout):
    """One grid step = `nb` whole images, fully fused in VMEM.

    Activations live as (channels, H*W): the 128-lane axis carries the
    flattened spatial dim, so every load/store is lane-dense.
    """
    f32 = jnp.float32
    hi = lax.Precision.HIGHEST  # channel matmuls are tiny after removing the
                                # shift matmuls; f32 keeps 1e-4 ref parity.
    HW = H * W
    B = 4 * c4

    # Packed bias bundle (one small input instead of three); sections start at
    # 8-row (sublane-tile) aligned offsets.
    o2 = _r8(c4)
    o3 = o2 + _r8(B)
    b1 = bias_ref[0:c4]                  # (c4, 1)
    b2 = bias_ref[o2:o2 + B]             # (4*c4, 1)
    b3 = bias_ref[o3:o3 + 4 * cout]      # (4*cout, 1)

    w1 = w1_ref[...]                     # (c4, Cin)
    wall = wall_ref[...]                 # (16*c4, c4)
    w3 = w3_ref[...]                     # (4*cout, 4*c4)

    # Lane-position masks for the parity realignment (computed once, VPU):
    #   col_ok : q is not in the last column  (q % W != W-1)
    #   row_ok : q is not in the last row     (q <  (H-1)*W)
    q = lax.broadcasted_iota(jnp.int32, (1, HW), 1)
    col_ok = (q % W) != (W - 1)
    row_ok = q < (H - 1) * W
    both_ok = jnp.logical_and(col_ok, row_ok)

    for b in range(nb):                              # static unroll, nb small
        x = x_ref[b]                                 # (Cin, HW)

        # ---- conv1 (1x1) + BN1 (folded) + ReLU ----------------------------
        h = jnp.dot(w1, x, precision=hi, preferred_element_type=f32)
        h = jnp.maximum(h + b1, 0.0)                 # (c4, HW)

        # ---- deconv2 (3x3, stride 2, pad 1, out_pad 1) + BN2 + ReLU -------
        # All 9 taps in one channel matmul: rows of `wall` are the 4 output
        # parity classes x 4 shift groups.  Spatial realignment (+1 col,
        # +1 row, both, with edge zeroing) is a lane roll (XLU) + mask (VPU)
        # -- no HWxHW matmuls, no O(HW^2) VMEM.
        p = jnp.dot(wall, h, precision=hi, preferred_element_type=f32)  # (4B,HW)
        h2 = (p[0 * B:1 * B]
              + jnp.where(col_ok,
                          pltpu.roll(p[1 * B:2 * B], HW - 1, axis=1), 0.0)
              + jnp.where(row_ok,
                          pltpu.roll(p[2 * B:3 * B], HW - W, axis=1), 0.0)
              + jnp.where(both_ok,
                          pltpu.roll(p[3 * B:4 * B], HW - W - 1, axis=1), 0.0))
        h2 = jnp.maximum(h2 + b2, 0.0)               # (4*c4, HW)

        # ---- conv3 (1x1, block-diag over the 4 parity classes) + BN3+ReLU -
        h3 = jnp.dot(w3, h2, precision=hi, preferred_element_type=f32)
        h3 = jnp.maximum(h3 + b3, 0.0)               # (4*cout, HW)

        o_ref[b] = h3.astype(o_ref.dtype)


def _pick_images_per_block(n, cin, hw):
    # Largest divisor of n whose input block stays <=~0.5 MB and whose static
    # unroll stays short.  For the tiny test case (N=2, HW=256) this is the
    # whole batch -> a single grid step (per the review); larger batches give
    # multiple "parallel" steps so v7x's two TensorCores both get work.
    cap = max(1, min(8, (512 * 1024) // max(1, cin * hw * 4)))
    for d in range(min(n, cap), 0, -1):
        if n % d == 0:
            return d
    return 1


@partial(jax.jit, static_argnames=("parity_major_output",))
def decoder_block_forward(x, params, *, parity_major_output=False):
    """x: (N, Cin, H, W) NCHW float32.  Returns (N, n_filters, 2H, 2W)."""
    f32 = jnp.float32
    N, Cin, H, W = x.shape
    HW = H * W

    # ---------------- fold BatchNorm (inference) into the convs ------------
    w1 = params["conv1_w"][:, :, 0, 0]                           # (C4, Cin)
    s1v = params["bn1_g"] / jnp.sqrt(params["bn1_v"] + _EPS)
    w1f = w1 * s1v[:, None]
    b1f = s1v * (params["conv1_b"] - params["bn1_m"]) + params["bn1_b"]
    C4 = w1.shape[0]

    wt = params["deconv2_w"]                         # (C4, C4, 3, 3) [in,out,kh,kw]
    s2v = params["bn2_g"] / jnp.sqrt(params["bn2_v"] + _EPS)
    wtf = wt * s2v[None, :, None, None]
    b2f = s2v * (params["deconv2_b"] - params["bn2_m"]) + params["bn2_b"]

    w3 = params["conv3_w"][:, :, 0, 0]                           # (Cout, C4)
    s3v = params["bn3_g"] / jnp.sqrt(params["bn3_v"] + _EPS)
    w3f = w3 * s3v[:, None]
    b3f = s3v * (params["conv3_b"] - params["bn3_m"]) + params["bn3_b"]
    Cout = w3.shape[0]

    # ---- pack the transposed-conv taps by output-pixel parity --------------
    # out[o, 2m+py, 2n+px] uses taps Wt[c, o, ky, kx] with
    #   (py,px)=(0,0): (1,1) on h[m,n]
    #   (0,1): (1,2) on h[m,n]  + (1,0) on h[m,n+1]
    #   (1,0): (2,1) on h[m,n]  + (0,1) on h[m+1,n]
    #   (1,1): (2,2) on h[m,n]  + (2,0) on h[m,n+1] + (0,2) on h[m+1,n] + (0,0) on h[m+1,n+1]
    def tap(ky, kx):
        return wtf[:, :, ky, kx].T                               # (out, in)

    Z = jnp.zeros((C4, C4), f32)
    w_h = jnp.concatenate([tap(1, 1), tap(1, 2), tap(2, 1), tap(2, 2)], axis=0)
    w_c = jnp.concatenate([Z, tap(1, 0), Z, tap(2, 0)], axis=0)    # needs h[m, n+1]
    w_r = jnp.concatenate([Z, Z, tap(0, 1), tap(0, 2)], axis=0)    # needs h[m+1, n]
    w_rc = jnp.concatenate([Z, Z, Z, tap(0, 0)], axis=0)           # needs h[m+1, n+1]
    w_all = jnp.concatenate([w_h, w_c, w_r, w_rc], axis=0)         # (16*C4, C4)

    w3big = jnp.kron(jnp.eye(4, dtype=f32), w3f)                   # (4*Cout, 4*C4)

    # One packed bias bundle (8-row aligned sections) instead of 3 tiny inputs.
    o2 = _r8(C4)
    o3 = o2 + _r8(4 * C4)
    rows = o3 + _r8(4 * Cout)
    bias = jnp.zeros((rows, 1), f32)
    bias = bias.at[0:C4, 0].set(b1f)
    bias = bias.at[o2:o2 + 4 * C4, 0].set(jnp.tile(b2f, 4))
    bias = bias.at[o3:o3 + 4 * Cout, 0].set(jnp.tile(b3f, 4))

    Nb = _pick_images_per_block(N, Cin, HW)
    x_flat = x.reshape(N, Cin, HW)                   # view-only reshape

    out = pl.pallas_call(
        partial(_decoder_kernel, H=H, W=W, nb=Nb, c4=C4, cout=Cout),
        out_shape=jax.ShapeDtypeStruct((N, 4 * Cout, HW), x.dtype),
        grid_spec=pltpu.PrefetchScalarGridSpec(
            num_scalar_prefetch=0,
            grid=(N // Nb,),
            in_specs=[
                pl.BlockSpec((Nb, Cin, HW), lambda i: (i, 0, 0)),
                pl.BlockSpec((C4, Cin), lambda i: (0, 0)),
                pl.BlockSpec((16 * C4, C4), lambda i: (0, 0)),
                pl.BlockSpec((4 * Cout, 4 * C4), lambda i: (0, 0)),
                pl.BlockSpec((rows, 1), lambda i: (0, 0)),
            ],
            out_specs=pl.BlockSpec((Nb, 4 * Cout, HW), lambda i: (i, 0, 0)),
        ),
        compiler_params=pltpu.CompilerParams(
            dimension_semantics=("parallel",)),
    )(x_flat, w1f, w_all, w3big, bias)

    if parity_major_output:
        # (N, [py,px,Cout], H*W): lane-dense, no extra HBM pass.  Downstream
        # fused kernels should consume this layout directly.
        return out

    # NCHW interleave of the 4 parity classes (module contract).  This is one
    # extra HBM round trip of the output; fold into the consumer if possible.
    out = out.reshape(N, 2, 2, Cout, H, W)           # (n, py, px, c, m, nn)
    out = out.transpose(0, 3, 4, 1, 5, 2)            # (n, c, m, py, nn, px)
    return out.reshape(N, Cout, 2 * H, 2 * W)


# ---------------- pure-JAX reference (for correctness check) ----------------
def _ref_forward(x, p):
    hi = lax.Precision.HIGHEST

    def bn(y, g, b, m, v):
        s = g / jnp.sqrt(v + _EPS)
        return y * s[None, :, None, None] + (b - m * s)[None, :, None, None]

    w1 = p["conv1_w"][:, :, 0, 0]
    y = jnp.einsum("oc,nchw->nohw", w1, x, precision=hi) \
        + p["conv1_b"][None, :, None, None]
    y = jax.nn.relu(bn(y, p["bn1_g"], p["bn1_b"], p["bn1_m"], p["bn1_v"]))

    # ConvTranspose2d(k=3, stride=2, padding=1, output_padding=1) ==
    # lhs-dilated conv with the spatially flipped, in/out-swapped kernel.
    wt = p["deconv2_w"]                               # (in, out, kh, kw)
    w_flip = jnp.flip(wt, (2, 3)).transpose(1, 0, 2, 3)
    y = lax.conv_general_dilated(
        y, w_flip, window_strides=(1, 1), padding=((1, 2), (1, 2)),
        lhs_dilation=(2, 2), dimension_numbers=("NCHW", "OIHW", "NCHW"),
        precision=hi) + p["deconv2_b"][None, :, None, None]
    y = jax.nn.relu(bn(y, p["bn2_g"], p["bn2_b"], p["bn2_m"], p["bn2_v"]))

    w3 = p["conv3_w"][:, :, 0, 0]
    y = jnp.einsum("oc,nchw->nohw", w3, y, precision=hi) \
        + p["conv3_b"][None, :, None, None]
    y = jax.nn.relu(bn(y, p["bn3_g"], p["bn3_b"], p["bn3_m"], p["bn3_v"]))
    return y


if __name__ == "__main__":
    in_channels, n_filters = 16, 8
    N, H, W = 2, 16, 16
    C4 = in_channels // 4

    key = jax.random.PRNGKey(0)
    ks = iter(jax.random.split(key, 32))
    nrm = lambda shape, s=0.1: s * jax.random.normal(next(ks), shape, jnp.float32)
    uni = lambda shape: jax.random.uniform(next(ks), shape, jnp.float32, 0.5, 1.5)

    params = {
        "conv1_w": nrm((C4, in_channels, 1, 1)), "conv1_b": nrm((C4,)),
        "bn1_g": uni((C4,)), "bn1_b": nrm((C4,)),
        "bn1_m": nrm((C4,)), "bn1_v": uni((C4,)),
        "deconv2_w": nrm((C4, C4, 3, 3)), "deconv2_b": nrm((C4,)),
        "bn2_g": uni((C4,)), "bn2_b": nrm((C4,)),
        "bn2_m": nrm((C4,)), "bn2_v": uni((C4,)),
        "conv3_w": nrm((n_filters, C4, 1, 1)), "conv3_b": nrm((n_filters,)),
        "bn3_g": uni((n_filters,)), "bn3_b": nrm((n_filters,)),
        "bn3_m": nrm((n_filters,)), "bn3_v": uni((n_filters,)),
    }
    x = jax.random.normal(next(ks), (N, in_channels, H, W), jnp.float32)

    out = jax.block_until_ready(decoder_block_forward(x, params))
    assert out.shape == (N, n_filters, 2 * H, 2 * W), out.shape

    ref = _ref_forward(x, params)
    np.testing.assert_allclose(np.asarray(out), np.asarray(ref),
                               rtol=1e-4, atol=1e-4)

    print("KERNEL_OK")
</pallas_src>

<mosaic_0001>
module attributes {stable_mosaic.version = 11 : i64} {
  func.func @_decoder_kernel(%arg0: i32, %arg1: memref<2x16x256xf32, #tpu.memory_space<vmem>>, %arg2: memref<4x16xf32, #tpu.memory_space<vmem>>, %arg3: memref<64x4xf32, #tpu.memory_space<vmem>>, %arg4: memref<32x16xf32, #tpu.memory_space<vmem>>, %arg5: memref<56x1xf32, #tpu.memory_space<vmem>>, %arg6: memref<2x32x256xf32, #tpu.memory_space<vmem>>) attributes {dimension_semantics = [#tpu.dimension_semantics<parallel>], iteration_bounds = array<i64: 1>, scalar_prefetch = 0 : i64, scratch_operands = 0 : i64, tpu.core_type = #tpu.core_type<tc>, window_params = [{transform_indices = @transform_0, window_bounds = array<i64: 2, 16, 256>}, {pipeline_mode = #tpu.pipeline_mode<synchronous>, transform_indices = @transform_1, window_bounds = array<i64: 4, 16>}, {pipeline_mode = #tpu.pipeline_mode<synchronous>, transform_indices = @transform_2, window_bounds = array<i64: 64, 4>}, {pipeline_mode = #tpu.pipeline_mode<synchronous>, transform_indices = @transform_3, window_bounds = array<i64: 32, 16>}, {pipeline_mode = #tpu.pipeline_mode<synchronous>, transform_indices = @transform_4, window_bounds = array<i64: 56, 1>}, {transform_indices = @transform_5, window_bounds = array<i64: 2, 32, 256>}]} {
    %c0 = arith.constant 0 : index
    %c0_0 = arith.constant 0 : index
    %0 = vector.load %arg5[%c0, %c0_0] : memref<56x1xf32, #tpu.memory_space<vmem>>, vector<4x1xf32>
    %c8 = arith.constant 8 : index
    %c0_1 = arith.constant 0 : index
    %1 = vector.load %arg5[%c8, %c0_1] : memref<56x1xf32, #tpu.memory_space<vmem>>, vector<16x1xf32>
    %c24 = arith.constant 24 : index
    %c0_2 = arith.constant 0 : index
    %2 = vector.load %arg5[%c24, %c0_2] : memref<56x1xf32, #tpu.memory_space<vmem>>, vector<32x1xf32>
    %c0_3 = arith.constant 0 : index
    %c0_4 = arith.constant 0 : index
    %3 = vector.load %arg2[%c0_3, %c0_4] : memref<4x16xf32, #tpu.memory_space<vmem>>, vector<4x16xf32>
    %c0_5 = arith.constant 0 : index
    %c0_6 = arith.constant 0 : index
    %4 = vector.load %arg3[%c0_5, %c0_6] : memref<64x4xf32, #tpu.memory_space<vmem>>, vector<64x4xf32>
    %c0_7 = arith.constant 0 : index
    %c0_8 = arith.constant 0 : index
    %5 = vector.load %arg4[%c0_7, %c0_8] : memref<32x16xf32, #tpu.memory_space<vmem>>, vector<32x16xf32>
    %6 = tpu.iota {dimensions = array<i32: 1>} : vector<1x256xi32>
    %c16_i32 = arith.constant 16 : i32
    %c0_i32 = arith.constant 0 : i32
    %7 = arith.cmpi eq, %c16_i32, %c0_i32 : i32
    %c1_i32 = arith.constant 1 : i32
    %8 = arith.select %7, %c1_i32, %c16_i32 : i32
    %9 = vector.broadcast %8 : i32 to vector<1x256xi32>
    %10 = arith.remsi %6, %9 : vector<1x256xi32>
    %c0_i32_9 = arith.constant 0 : i32
    %11 = vector.broadcast %c0_i32_9 : i32 to vector<1x256xi32>
    %12 = arith.cmpi ne, %10, %11 : vector<1x256xi32>
    %c0_i32_10 = arith.constant 0 : i32
    %13 = vector.broadcast %c0_i32_10 : i32 to vector<1x256xi32>
    %14 = arith.cmpi slt, %10, %13 : vector<1x256xi32>
    %c0_i32_11 = arith.constant 0 : i32
    %15 = arith.cmpi slt, %8, %c0_i32_11 : i32
    %16 = vector.broadcast %15 : i1 to vector<1x256xi1>
    %17 = vector.broadcast %16 : vector<1x256xi1> to vector<1x256xi1>
    %18 = arith.xori %14, %17 : vector<1x256xi1>
    %19 = arith.andi %18, %12 : vector<1x256xi1>
    %20 = vector.broadcast %8 : i32 to vector<1x256xi32>
    %21 = arith.addi %10, %20 : vector<1x256xi32>
    %22 = arith.select %19, %21, %10 : vector<1x256xi1>, vector<1x256xi32>
    %c15_i32 = arith.constant 15 : i32
    %23 = vector.broadcast %c15_i32 : i32 to vector<1x256xi32>
    %24 = arith.cmpi ne, %22, %23 : vector<1x256xi32>
    %c240_i32 = arith.constant 240 : i32
    %25 = vector.broadcast %c240_i32 : i32 to vector<1x256xi32>
    %26 = arith.cmpi slt, %6, %25 : vector<1x256xi32>
    %27 = arith.andi %24, %26 : vector<1x256xi1>
    %c0_12 = arith.constant 0 : index
    %c0_13 = arith.constant 0 : index
    %c0_14 = arith.constant 0 : index
    %28 = vector.load %arg1[%c0_12, %c0_13, %c0_14] : memref<2x16x256xf32, #tpu.memory_space<vmem>>, vector<1x16x256xf32>
    %29 = vector.shape_cast %28 : vector<1x16x256xf32> to vector<16x256xf32>
    %cst = arith.constant dense<0.000000e+00> : vector<4x256xf32>
    %30 = tpu.matmul %3, %29, %cst {dimension_numbers = #tpu.dot_dimension_numbers<[1], [0], [0], [1], [0, 0, 1, 1], [], []>, precision = #tpu.contract_precision<fp32>} : vector<4x16xf32>, vector<16x256xf32>, vector<4x256xf32> -> vector<4x256xf32>
    %31 = vector.broadcast %0 : vector<4x1xf32> to vector<4x256xf32>
    %32 = arith.addf %30, %31 : vector<4x256xf32>
    %cst_15 = arith.constant 0.000000e+00 : f32
    %33 = vector.broadcast %cst_15 : f32 to vector<4x256xf32>
    %34 = arith.maximumf %32, %33 : vector<4x256xf32>
    %cst_16 = arith.constant dense<0.000000e+00> : vector<64x256xf32>
    %35 = tpu.matmul %4, %34, %cst_16 {dimension_numbers = #tpu.dot_dimension_numbers<[1], [0], [0], [1], [0, 0, 1, 1], [], []>, precision = #tpu.contract_precision<fp32>} : vector<64x4xf32>, vector<4x256xf32>, vector<64x256xf32> -> vector<64x256xf32>
    %36 = vector.extract_strided_slice %35 {offsets = [0, 0], sizes = [16, 256], strides = [1, 1]} : vector<64x256xf32> to vector<16x256xf32>
    %37 = vector.extract_strided_slice %35 {offsets = [16, 0], sizes = [16, 256], strides = [1, 1]} : vector<64x256xf32> to vector<16x256xf32>
    %c255_i32 = arith.constant 255 : i32
    %38 = tpu.dynamic_rotate %37 by %c255_i32 dim 1 : vector<16x256xf32>, i32 -> vector<16x256xf32>
    %cst_17 = arith.constant 0.000000e+00 : f32
    %39 = vector.shape_cast %24 : vector<1x256xi1> to vector<1x256xi1>
    %40 = vector.broadcast %39 : vector<1x256xi1> to vector<16x256xi1>
    %41 = vector.broadcast %cst_17 : f32 to vector<16x256xf32>
    %42 = arith.select %40, %38, %41 : vector<16x256xi1>, vector<16x256xf32>
    %43 = arith.addf %36, %42 : vector<16x256xf32>
    %44 = vector.extract_strided_slice %35 {offsets = [32, 0], sizes = [16, 256], strides = [1, 1]} : vector<64x256xf32> to vector<16x256xf32>
    %c240_i32_18 = arith.constant 240 : i32
    %45 = tpu.dynamic_rotate %44 by %c240_i32_18 dim 1 : vector<16x256xf32>, i32 -> vector<16x256xf32>
    %cst_19 = arith.constant 0.000000e+00 : f32
    %46 = vector.shape_cast %26 : vector<1x256xi1> to vector<1x256xi1>
    %47 = vector.broadcast %46 : vector<1x256xi1> to vector<16x256xi1>
    %48 = vector.broadcast %cst_19 : f32 to vector<16x256xf32>
    %49 = arith.select %47, %45, %48 : vector<16x256xi1>, vector<16x256xf32>
    %50 = arith.addf %43, %49 : vector<16x256xf32>
    %51 = vector.extract_strided_slice %35 {offsets = [48, 0], sizes = [16, 256], strides = [1, 1]} : vector<64x256xf32> to vector<16x256xf32>
    %c239_i32 = arith.constant 239 : i32
    %52 = tpu.dynamic_rotate %51 by %c239_i32 dim 1 : vector<16x256xf32>, i32 -> vector<16x256xf32>
    %cst_20 = arith.constant 0.000000e+00 : f32
    %53 = vector.shape_cast %27 : vector<1x256xi1> to vector<1x256xi1>
    %54 = vector.broadcast %53 : vector<1x256xi1> to vector<16x256xi1>
    %55 = vector.broadcast %cst_20 : f32 to vector<16x256xf32>
    %56 = arith.select %54, %52, %55 : vector<16x256xi1>, vector<16x256xf32>
    %57 = arith.addf %50, %56 : vector<16x256xf32>
    %58 = vector.broadcast %1 : vector<16x1xf32> to vector<16x256xf32>
    %59 = arith.addf %57, %58 : vector<16x256xf32>
    %cst_21 = arith.constant 0.000000e+00 : f32
    %60 = vector.broadcast %cst_21 : f32 to vector<16x256xf32>
    %61 = arith.maximumf %59, %60 : vector<16x256xf32>
    %cst_22 = arith.constant dense<0.000000e+00> : vector<32x256xf32>
    %62 = tpu.matmul %5, %61, %cst_22 {dimension_numbers = #tpu.dot_dimension_numbers<[1], [0], [0], [1], [0, 0, 1, 1], [], []>, precision = #tpu.contract_precision<fp32>} : vector<32x16xf32>, vector<16x256xf32>, vector<32x256xf32> -> vector<32x256xf32>
    %63 = vector.broadcast %2 : vector<32x1xf32> to vector<32x256xf32>
    %64 = arith.addf %62, %63 : vector<32x256xf32>
    %cst_23 = arith.constant 0.000000e+00 : f32
    %65 = vector.broadcast %cst_23 : f32 to vector<32x256xf32>
    %66 = arith.maximumf %64, %65 : vector<32x256xf32>
    %c0_24 = arith.constant 0 : index
    %c0_25 = arith.constant 0 : index
    %c0_26 = arith.constant 0 : index
    %67 = vector.load %arg6[%c0_24, %c0_25, %c0_26] : memref<2x32x256xf32, #tpu.memory_space<vmem>>, vector<1x32x256xf32>
    %68 = vector.shape_cast %67 : vector<1x32x256xf32> to vector<32x256xf32>
    %69 = vector.shape_cast %66 : vector<32x256xf32> to vector<1x32x256xf32>
    tpu.vector_store %arg6[%c0_24, %c0_25, %c0_26], %69 {strides = array<i32>} : memref<2x32x256xf32, #tpu.memory_space<vmem>>, vector<1x32x256xf32>,
    %c1 = arith.constant 1 : index
    %c0_27 = arith.constant 0 : index
    %c0_28 = arith.constant 0 : index
    %70 = vector.load %arg1[%c1, %c0_27, %c0_28] : memref<2x16x256xf32, #tpu.memory_space<vmem>>, vector<1x16x256xf32>
    %71 = vector.shape_cast %70 : vector<1x16x256xf32> to vector<16x256xf32>
    %cst_29 = arith.constant dense<0.000000e+00> : vector<4x256xf32>
    %72 = tpu.matmul %3, %71, %cst_29 {dimension_numbers = #tpu.dot_dimension_numbers<[1], [0], [0], [1], [0, 0, 1, 1], [], []>, precision = #tpu.contract_precision<fp32>} : vector<4x16xf32>, vector<16x256xf32>, vector<4x256xf32> -> vector<4x256xf32>
    %73 = vector.broadcast %0 : vector<4x1xf32> to vector<4x256xf32>
    %74 = arith.addf %72, %73 : vector<4x256xf32>
    %cst_30 = arith.constant 0.000000e+00 : f32
    %75 = vector.broadcast %cst_30 : f32 to vector<4x256xf32>
    %76 = arith.maximumf %74, %75 : vector<4x256xf32>
    %cst_31 = arith.constant dense<0.000000e+00> : vector<64x256xf32>
    %77 = tpu.matmul %4, %76, %cst_31 {dimension_numbers = #tpu.dot_dimension_numbers<[1], [0], [0], [1], [0, 0, 1, 1], [], []>, precision = #tpu.contract_precision<fp32>} : vector<64x4xf32>, vector<4x256xf32>, vector<64x256xf32> -> vector<64x256xf32>
    %78 = vector.extract_strided_slice %77 {offsets = [0, 0], sizes = [16, 256], strides = [1, 1]} : vector<64x256xf32> to vector<16x256xf32>
    %79 = vector.extract_strided_slice %77 {offsets = [16, 0], sizes = [16, 256], strides = [1, 1]} : vector<64x256xf32> to vector<16x256xf32>
    %c255_i32_32 = arith.constant 255 : i32
    %80 = tpu.dynamic_rotate %79 by %c255_i32_32 dim 1 : vector<16x256xf32>, i32 -> vector<16x256xf32>
    %cst_33 = arith.constant 0.000000e+00 : f32
    %81 = vector.shape_cast %24 : vector<1x256xi1> to vector<1x256xi1>
    %82 = vector.broadcast %81 : vector<1x256xi1> to vector<16x256xi1>
    %83 = vector.broadcast %cst_33 : f32 to vector<16x256xf32>
    %84 = arith.select %82, %80, %83 : vector<16x256xi1>, vector<16x256xf32>
    %85 = arith.addf %78, %84 : vector<16x256xf32>
    %86 = vector.extract_strided_slice %77 {offsets = [32, 0], sizes = [16, 256], strides = [1, 1]} : vector<64x256xf32> to vector<16x256xf32>
    %c240_i32_34 = arith.constant 240 : i32
    %87 = tpu.dynamic_rotate %86 by %c240_i32_34 dim 1 : vector<16x256xf32>, i32 -> vector<16x256xf32>
    %cst_35 = arith.constant 0.000000e+00 : f32
    %88 = vector.shape_cast %26 : vector<1x256xi1> to vector<1x256xi1>
    %89 = vector.broadcast %88 : vector<1x256xi1> to vector<16x256xi1>
    %90 = vector.broadcast %cst_35 : f32 to vector<16x256xf32>
    %91 = arith.select %89, %87, %90 : vector<16x256xi1>, vector<16x256xf32>
    %92 = arith.addf %85, %91 : vector<16x256xf32>
    %93 = vector.extract_strided_slice %77 {offsets = [48, 0], sizes = [16, 256], strides = [1, 1]} : vector<64x256xf32> to vector<16x256xf32>
    %c239_i32_36 = arith.constant 239 : i32
    %94 = tpu.dynamic_rotate %93 by %c239_i32_36 dim 1 : vector<16x256xf32>, i32 -> vector<16x256xf32>
    %cst_37 = arith.constant 0.000000e+00 : f32
    %95 = vector.shape_cast %27 : vector<1x256xi1> to vector<1x256xi1>
    %96 = vector.broadcast %95 : vector<1x256xi1> to vector<16x256xi1>
    %97 = vector.broadcast %cst_37 : f32 to vector<16x256xf32>
    %98 = arith.select %96, %94, %97 : vector<16x256xi1>, vector<16x256xf32>
    %99 = arith.addf %92, %98 : vector<16x256xf32>
    %100 = vector.broadcast %1 : vector<16x1xf32> to vector<16x256xf32>
    %101 = arith.addf %99, %100 : vector<16x256xf32>
    %cst_38 = arith.constant 0.000000e+00 : f32
    %102 = vector.broadcast %cst_38 : f32 to vector<16x256xf32>
    %103 = arith.maximumf %101, %102 : vector<16x256xf32>
    %cst_39 = arith.constant dense<0.000000e+00> : vector<32x256xf32>
    %104 = tpu.matmul %5, %103, %cst_39 {dimension_numbers = #tpu.dot_dimension_numbers<[1], [0], [0], [1], [0, 0, 1, 1], [], []>, precision = #tpu.contract_precision<fp32>} : vector<32x16xf32>, vector<16x256xf32>, vector<32x256xf32> -> vector<32x256xf32>
    %105 = vector.broadcast %2 : vector<32x1xf32> to vector<32x256xf32>
    %106 = arith.addf %104, %105 : vector<32x256xf32>
    %cst_40 = arith.constant 0.000000e+00 : f32
    %107 = vector.broadcast %cst_40 : f32 to vector<32x256xf32>
    %108 = arith.maximumf %106, %107 : vector<32x256xf32>
    %c1_41 = arith.constant 1 : index
    %c0_42 = arith.constant 0 : index
    %c0_43 = arith.constant 0 : index
    %109 = vector.load %arg6[%c1_41, %c0_42, %c0_43] : memref<2x32x256xf32, #tpu.memory_space<vmem>>, vector<1x32x256xf32>
    %110 = vector.shape_cast %109 : vector<1x32x256xf32> to vector<32x256xf32>
    %111 = vector.shape_cast %108 : vector<32x256xf32> to vector<1x32x256xf32>
    tpu.vector_store %arg6[%c1_41, %c0_42, %c0_43], %111 {strides = array<i32>} : memref<2x32x256xf32, #tpu.memory_space<vmem>>, vector<1x32x256xf32>,
    return
  }
  func.func @transform_0(%arg0: i32) -> (i32, i32, i32) {
    %c0_i32 = arith.constant 0 : i32
    %c0_i32_0 = arith.constant 0 : i32
    %c0_i32_1 = arith.constant 0 : i32
    return %arg0, %c0_i32, %c0_i32_0 : i32, i32, i32
  }
  func.func @transform_1(%arg0: i32) -> (i32, i32) {
    %c0_i32 = arith.constant 0 : i32
    %c0_i32_0 = arith.constant 0 : i32
    %c0_i32_1 = arith.constant 0 : i32
    return %c0_i32, %c0_i32_0 : i32, i32
  }
  func.func @transform_2(%arg0: i32) -> (i32, i32) {
    %c0_i32 = arith.constant 0 : i32
    %c0_i32_0 = arith.constant 0 : i32
    %c0_i32_1 = arith.constant 0 : i32
    return %c0_i32, %c0_i32_0 : i32, i32
  }
  func.func @transform_3(%arg0: i32) -> (i32, i32) {
    %c0_i32 = arith.constant 0 : i32
    %c0_i32_0 = arith.constant 0 : i32
    %c0_i32_1 = arith.constant 0 : i32
    return %c0_i32, %c0_i32_0 : i32, i32
  }
  func.func @transform_4(%arg0: i32) -> (i32, i32) {
    %c0_i32 = arith.constant 0 : i32
    %c0_i32_0 = arith.constant 0 : i32
    %c0_i32_1 = arith.constant 0 : i32
    return %c0_i32, %c0_i32_0 : i32, i32
  }
  func.func @transform_5(%arg0: i32) -> (i32, i32, i32) {
    %c0_i32 = arith.constant 0 : i32
    %c0_i32_0 = arith.constant 0 : i32
    %c0_i32_1 = arith.constant 0 : i32
    return %arg0, %c0_i32, %c0_i32_0 : i32, i32, i32
  }
}

</mosaic_0001>

<llo_original>
// kernel: tile.18
$region0: #{tile.18}
  #allocation0 [shape = 's32[1]{0}', space=sflag, size = 0x4, scoped, tag = 'scoped memory for tile.18']
  %s0 = inlined_call_operand.vmem [shape: f32[8], index: 0, kind: input, shape index: {}]
  %s1 = inlined_call_operand.vmem [shape: f32[4,8], index: 1, kind: output, shape index: {}]
  // Predicated region
  $region2: #{tile.18} parent=0 // pred_check
    _
  $region3: #{tile.18} parent=0 // pred_check_branch
    %3 = sbr.rel (0) target = $region5
  $region4: #{tile.18} parent=0 // pred_region
    _
  $region5: #{tile.18} parent=0 // pred_fallthru
    _
  %v4 = vld [vmem:[%s0] ss:$0 sm:$0xff]
  %5 = vst [vmem:[%s1] sm:$0xf] %v4

// kernel: tile.13
$region0: #{tile.13}
  #allocation0 [shape = 's32[1]{0}', space=sflag, size = 0x4, scoped, tag = 'scoped memory for tile.13']
  %s0 = inlined_call_operand.vmem [shape: f32[4], index: 0, kind: input, shape index: {}]
  %s1 = inlined_call_operand.vmem [shape: f32[4,4], index: 1, kind: output, shape index: {}]
  // Predicated region
  $region2: #{tile.13} parent=0 // pred_check
    _
  $region3: #{tile.13} parent=0 // pred_check_branch
    %3 = sbr.rel (0) target = $region5
  $region4: #{tile.13} parent=0 // pred_region
    _
  $region5: #{tile.13} parent=0 // pred_fallthru
    _
  %v4 = vld [vmem:[%s0] ss:$0 sm:$0xff]
  %5 = vst [vmem:[%s1] sm:$0xf] %v4

// kernel: decoder_block_forward.1
$region0: #{decoder_block_forward.1}
  #allocation0 [shape = 'u32[]', space=smem, size = 0x4, offset = 0x4, fixed_abs, tag = 'smem constant byte address 0x4 - core index']
  #allocation1 [shape = 'u32[144,128]{1,0:T(1,128)}', space=vmem, size = 0x12000, scoped, tag = 'internal scratch']
  %s0 = inlined_call_operand.vmem [shape: f32[2,16,256], index: 0, kind: input, shape index: {}]
  %s1 = inlined_call_operand.vmem [shape: f32[4,16], index: 1, kind: input, shape index: {}]
  %s2 = inlined_call_operand.vmem [shape: f32[64,4], index: 2, kind: input, shape index: {}]
  %s3 = inlined_call_operand.vmem [shape: f32[32,16], index: 3, kind: input, shape index: {}]
  %s4 = inlined_call_operand.vmem [shape: f32[56,1], index: 4, kind: input, shape index: {}]
  %s5 = inlined_call_operand.vmem [shape: f32[2,32,256], index: 5, kind: output, shape index: {}]
  %s6 = sld [smem:[#allocation0]]
  $region30: #{decoder_block_forward.1} parent=0
    _
  %s8 = ssub.s32 1, %s6
  %s9 = scalar_select 0, %s8, %s6
  // Predicated region
  $region2: #{decoder_block_forward.1} parent=0 // pred_check
    _
  $region3: #{decoder_block_forward.1} parent=0 // pred_check_branch
    %11 = sbr.rel (0) target = $region5
  $region4: #{decoder_block_forward.1} parent=0 // pred_region
    _
  $region5: #{decoder_block_forward.1} parent=0 // pred_fallthru
    _
  // Predicated region
  $region6: #{decoder_block_forward.1} parent=0 // pred_check
    _
  $region7: #{decoder_block_forward.1} parent=0 // pred_check_branch
    %13 = sbr.rel (0) target = $region9
  $region8: #{decoder_block_forward.1} parent=0 // pred_region
    _
  $region9: #{decoder_block_forward.1} parent=0 // pred_fallthru
    _
  // Predicated region
  $region10: #{decoder_block_forward.1} parent=0 // pred_check
    _
  $region11: #{decoder_block_forward.1} parent=0 // pred_check_branch
    %15 = sbr.rel (0) target = $region13
  $region12: #{decoder_block_forward.1} parent=0 // pred_region
    _
  $region13: #{decoder_block_forward.1} parent=0 // pred_fallthru
    _
  // Predicated region
  $region14: #{decoder_block_forward.1} parent=0 // pred_check
    _
  $region15: #{decoder_block_forward.1} parent=0 // pred_check_branch
    %17 = sbr.rel (0) target = $region17
  $region16: #{decoder_block_forward.1} parent=0 // pred_region
    _
  $region17: #{decoder_block_forward.1} parent=0 // pred_fallthru
    _
  // Predicated region
  $region18: #{decoder_block_forward.1} parent=0 // pred_check
    _
  $region19: #{decoder_block_forward.1} parent=0 // pred_check_branch
    %19 = sbr.rel (0) target = $region21
  $region20: #{decoder_block_forward.1} parent=0 // pred_region
    _
  $region21: #{decoder_block_forward.1} parent=0 // pred_fallthru
    _
  %v20 = vld [vmem:[%s4] sm:$0xf]
  %v21 = vld [vmem:[%s4 + $0x8] sm:$0xff]
  %v22 = vld [vmem:[%s4 + $0x10] sm:$0xff]
  %v23 = vld [vmem:[%s4 + $0x18] sm:$0xff]
  %v24 = vld [vmem:[%s4 + $0x20] sm:$0xff]
  %v25 = vld [vmem:[%s4 + $0x28] sm:$0xff]
  %v26 = vld [vmem:[%s4 + $0x30] sm:$0xff]
  %v27 = vld [vmem:[%s1] sm:$0xf]
  %v28 = vld [vmem:[%s2] sm:$0xff]
  %v29 = vld [vmem:[%s2 + $0x8] sm:$0xff]
  %v30 = vld [vmem:[%s2 + $0x10] sm:$0xff]
  %v31 = vld [vmem:[%s2 + $0x18] sm:$0xff]
  %v32 = vld [vmem:[%s2 + $0x20] sm:$0xff]
  %v33 = vld [vmem:[%s2 + $0x28] sm:$0xff]
  %v34 = vld [vmem:[%s2 + $0x30] sm:$0xff]
  %v35 = vld [vmem:[%s2 + $0x38] sm:$0xff]
  %v36 = vld [vmem:[%s3] sm:$0xff]
  %v37 = vld [vmem:[%s3 + $0x8] sm:$0xff]
  %v38 = vld [vmem:[%s3 + $0x10] sm:$0xff]
  %v39 = vld [vmem:[%s3 + $0x18] sm:$0xff]
  %v40 = vlaneseq
  %v41 = vand.u32 %v40, 127
  %v42 = vadd.s32 %v41, 128
  %vm43 = vcmp.lt.s32.totalorder %v41, 0
  %v44 = vsub.s32 0, %v41
  %v45 = vsel %vm43, %v44, %v41
  %v46 = vshrl.u32 %v45, 4
  %v47 = vand.u32 %v45, 15
  %v48 = vsub.s32 0, %v47
  %v49 = vsel %vm43, %v48, %v47
  %vm50 = vcmp.lt.s32.totalorder %v42, 0
  %v51 = vsub.s32 0, %v42
  %v52 = vsel %vm50, %v51, %v42
  %v53 = vshrl.u32 %v52, 4
  %v54 = vand.u32 %v52, 15
  %v55 = vsub.s32 0, %v54
  %v56 = vsel %vm50, %v55, %v54
  %vm57 = vcmp.ne.s32.totalorder %v49, 0
  %vm58 = vcmp.ne.s32.totalorder %v56, 0
  %vm59 = vcmp.lt.s32.totalorder %v49, 0
  %vm60 = vcmp.lt.s32.totalorder %v56, 0
  %vm61 = vmand %vm59, %vm57
  %vm62 = vmand %vm60, %vm58
  %v63 = vadd.s32 %v49, 16
  %v64 = vadd.s32 %v56, 16
  %v65 = vsel %vm61, %v63, %v49
  %v66 = vsel %vm62, %v64, %v56
  %vm67 = vcmp.ne.s32.totalorder %v65, 15
  %vm68 = vcmp.ne.s32.totalorder %v66, 15
  %vm69 = vcmp.lt.s32.totalorder %v41, 240
  %vm70 = vcmp.lt.s32.totalorder %v42, 240
  %vm71 = vmand %vm67, %vm69
  %vm72 = vmand %vm68, %vm70
  %v73 = vld [vmem:[%s0] sm:$0xff]
  %v74 = vld [vmem:[%s0 + $0x8] sm:$0xff]
  %v75 = vld [vmem:[%s0 + $0x10] sm:$0xff]
  %v76 = vld [vmem:[%s0 + $0x18] sm:$0xff]
  %78 = vset.pattern.permute.xlu0 0
  %79 = vperm.xlu0 %78, %v20
  %v80 = vpop.permute.xlu0 %79
  %vm82 = vcmask 130048
  %v84 = vsel %vm82, %v27, 0
  %v86 = vand.u32 %v74, 4294901760
  %87 = vmatprep.subr.mxu0 %v86
  %v88 = vand.u32 %v73, 4294901760
  %89 = vmatpush1.msra.mxu0 %v88
  %v90 = vand.u32 %v76, 4294901760
  %91 = vmatprep.subr.mxu0 %v90
  %v92 = vand.u32 %v75, 4294901760
  %93 = vmatpush1.msra.mxu0 %v92
  %94 = vmatprep.subr.mxu0 0.0
  %95 = vmatpush1.msra.mxu0 0.0
  %96 = vmatprep.subr.mxu0 0.0
  %97 = vmatpush1.msra.mxu0 0.0
  %98 = vmatprep.subr.mxu0 0.0
  %99 = vmatpush1.msra.mxu0 0.0
  %100 = vmatprep.subr.mxu0 0.0
  %101 = vmatpush1.msra.mxu0 0.0
  %102 = vmatprep.subr.mxu0 0.0
  %103 = vmatpush1.msra.mxu0 0.0
  %104 = vmatprep.subr.mxu0 0.0
  %105 = vmatpush1.msra.mxu0 0.0
  %106 = vmatprep.subr.mxu0 0.0
  %107 = vmatpush1.msra.mxu0 0.0
  %108 = vmatprep.subr.mxu0 0.0
  %109 = vmatpush1.msra.mxu0 0.0
  %110 = vmatprep.subr.mxu0 0.0
  %111 = vmatpush1.msra.mxu0 0.0
  %112 = vmatprep.subr.mxu0 0.0
  %113 = vmatpush1.msra.mxu0 0.0
  %114 = vmatprep.subr.mxu0 0.0
  %115 = vmatpush1.msra.mxu0 0.0
  %116 = vmatprep.subr.mxu0 0.0
  %117 = vmatpush1.msra.mxu0 0.0
  %118 = vmatprep.subr.mxu0 0.0
  %119 = vmatpush1.msra.mxu0 0.0
  %120 = vmatprep.subr.mxu0 0.0
  %121 = vmatpush1.msra.mxu0 0.0
  %122 = vmatprep.subr.mxu0 0.0
  %123 = vmatpush1.msra.mxu0 0.0
  %124 = vmatprep.subr.mxu0 0.0
  %125 = vmatpush1.msra.mxu0 0.0
  %126 = vmatprep.subr.mxu0 0.0
  %127 = vmatpush1.msra.mxu0 0.0
  %128 = vmatprep.subr.mxu0 0.0
  %129 = vmatpush1.msra.mxu0 0.0
  %130 = vmatprep.subr.mxu0 0.0
  %131 = vmatpush1.msra.mxu0 0.0
  %132 = vmatprep.subr.mxu0 0.0
  %133 = vmatpush1.msra.mxu0 0.0
  %134 = vmatprep.subr.mxu0 0.0
  %135 = vmatpush1.msra.mxu0 0.0
  %136 = vmatprep.subr.mxu0 0.0
  %137 = vmatpush1.msra.mxu0 0.0
  %138 = vmatprep.subr.mxu0 0.0
  %139 = vmatpush1.msra.mxu0 0.0
  %140 = vmatprep.subr.mxu0 0.0
  %141 = vmatpush1.msra.mxu0 0.0
  %142 = vmatprep.subr.mxu0 0.0
  %143 = vmatpush1.msra.mxu0 0.0
  %144 = vmatprep.subr.mxu0 0.0
  %145 = vmatpush1.msra.mxu0 0.0
  %146 = vmatprep.subr.mxu0 0.0
  %147 = vmatpush1.msra.mxu0 0.0
  %148 = vmatprep.subr.mxu0 0.0
  %149 = vmatpush1.msra.mxu0 0.0
  %150 = vmatprep.subr.mxu0 0.0
  %151 = vmatpush1.msra.mxu0 0.0
  %152 = vmatprep.subr.mxu0 0.0
  %153 = vmatpush1.msra.mxu0 0.0
  %154 = vmatprep.mubr.f32.mxu0 0.0
  %v155 = vand.u32 %v84, 4294901760
  %v156 = vsub.f32 %v84, %v155
  %v157 = vand.u32 %v156, 4294901760
  %v158 = vsub.f32 %v156, %v157
  %v159 = vand.u32 %v158, 4294901760
  %160 = vmatmul.mubr.f32.gmra.mrb[0].mxu0 %v159
  %v161 = vpop.f32.mrb[0].mxu0
  %v162 = vadd.f32 %v80, %v161
  %v163 = vpop.f32.mrb[0].mxu0
  %v164 = vadd.f32 %v80, %v163
  %165 = vdwg.mxu0
  %v166 = vand.u32 %v74, 4294901760
  %v167 = vsub.f32 %v74, %v166
  %v168 = vand.u32 %v167, 4294901760
  %v169 = vsub.f32 %v167, %v168
  %v170 = vand.u32 %v169, 4294901760
  %171 = vmatprep.subr.mxu0 %v170
  %v172 = vand.u32 %v73, 4294901760
  %v173 = vsub.f32 %v73, %v172
  %v174 = vand.u32 %v173, 4294901760
  %v175 = vsub.f32 %v173, %v174
  %v176 = vand.u32 %v175, 4294901760
  %177 = vmatpush1.msra.mxu0 %v176
  %v178 = vand.u32 %v76, 4294901760
  %v179 = vsub.f32 %v76, %v178
  %v180 = vand.u32 %v179, 4294901760
  %v181 = vsub.f32 %v179, %v180
  %v182 = vand.u32 %v181, 4294901760
  %183 = vmatprep.subr.mxu0 %v182
  %v184 = vand.u32 %v75, 4294901760
  %v185 = vsub.f32 %v75, %v184
  %v186 = vand.u32 %v185, 4294901760
  %v187 = vsub.f32 %v185, %v186
  %v188 = vand.u32 %v187, 4294901760
  %189 = vmatpush1.msra.mxu0 %v188
  %190 = vmatprep.subr.mxu0 0.0
  %191 = vmatpush1.msra.mxu0 0.0
  %192 = vmatprep.subr.mxu0 0.0
  %193 = vmatpush1.msra.mxu0 0.0
  %194 = vmatprep.subr.mxu0 0.0
  %195 = vmatpush1.msra.mxu0 0.0
  %196 = vmatprep.subr.mxu0 0.0
  %197 = vmatpush1.msra.mxu0 0.0
  %198 = vmatprep.subr.mxu0 0.0
  %199 = vmatpush1.msra.mxu0 0.0
  %200 = vmatprep.subr.mxu0 0.0
  %201 = vmatpush1.msra.mxu0 0.0
  %202 = vmatprep.subr.mxu0 0.0
  %203 = vmatpush1.msra.mxu0 0.0
  %204 = vmatprep.subr.mxu0 0.0
  %205 = vmatpush1.msra.mxu0 0.0
  %206 = vmatprep.subr.mxu0 0.0
  %207 = vmatpush1.msra.mxu0 0.0
  %208 = vmatprep.subr.mxu0 0.0
  %209 = vmatpush1.msra.mxu0 0.0
  %210 = vmatprep.subr.mxu0 0.0
  %211 = vmatpush1.msra.mxu0 0.0
  %212 = vmatprep.subr.mxu0 0.0
  %213 = vmatpush1.msra.mxu0 0.0
  %214 = vmatprep.subr.mxu0 0.0
  %215 = vmatpush1.msra.mxu0 0.0
  %216 = vmatprep.subr.mxu0 0.0
  %217 = vmatpush1.msra.mxu0 0.0
  %218 = vmatprep.subr.mxu0 0.0
  %219 = vmatpush1.msra.mxu0 0.0
  %220 = vmatprep.subr.mxu0 0.0
  %221 = vmatpush1.msra.mxu0 0.0
  %222 = vmatprep.subr.mxu0 0.0
  %223 = vmatpush1.msra.mxu0 0.0
  %224 = vmatprep.subr.mxu0 0.0
  %225 = vmatpush1.msra.mxu0 0.0
  %226 = vmatprep.subr.mxu0 0.0
  %227 = vmatpush1.msra.mxu0 0.0
  %228 = vmatprep.subr.mxu0 0.0
  %229 = vmatpush1.msra.mxu0 0.0
  %230 = vmatprep.subr.mxu0 0.0
  %231 = vmatpush1.msra.mxu0 0.0
  %232 = vmatprep.subr.mxu0 0.0
  %233 = vmatpush1.msra.mxu0 0.0
  %234 = vmatprep.subr.mxu0 0.0
  %235 = vmatpush1.msra.mxu0 0.0
  %236 = vmatprep.subr.mxu0 0.0
  %237 = vmatpush1.msra.mxu0 0.0
  %238 = vmatprep.subr.mxu0 0.0
  %239 = vmatpush1.msra.mxu0 0.0
  %240 = vmatprep.subr.mxu0 0.0
  %241 = vmatpush1.msra.mxu0 0.0
  %242 = vmatprep.subr.mxu0 0.0
  %243 = vmatpush1.msra.mxu0 0.0
  %244 = vmatprep.subr.mxu0 0.0
  %245 = vmatpush1.msra.mxu0 0.0
  %246 = vmatprep.subr.mxu0 0.0
  %247 = vmatpush1.msra.mxu0 0.0
  %248 = vmatprep.subr.mxu0 0.0
  %249 = vmatpush1.msra.mxu0 0.0
  %250 = vmatprep.mubr.f32.mxu0 0.0
  %v251 = vand.u32 %v84, 4294901760
  %252 = vmatmul.mubr.f32.gmra.mrb[0].mxu0 %v251
  %v253 = vpop.f32.mrb[0].mxu0
  %v254 = vadd.f32 %v162, %v253
  %v255 = vpop.f32.mrb[0].mxu0
  %v256 = vadd.f32 %v164, %v255
  %257 = vdwg.mxu0
  %v258 = vand.u32 %v74, 4294901760
  %v259 = vsub.f32 %v74, %v258
  %260 = vmatprep.subr.mxu0 %v259
  %v261 = vand.u32 %v73, 4294901760
  %v262 = vsub.f32 %v73, %v261
  %263 = vmatpush1.msra.mxu0 %v262
  %v264 = vand.u32 %v76, 4294901760
  %v265 = vsub.f32 %v76, %v264
  %266 = vmatprep.subr.mxu0 %v265
  %v267 = vand.u32 %v75, 4294901760
  %v268 = vsub.f32 %v75, %v267
  %269 = vmatpush1.msra.mxu0 %v268
  %270 = vmatprep.subr.mxu0 0.0
  %271 = vmatpush1.msra.mxu0 0.0
  %272 = vmatprep.subr.mxu0 0.0
  %273 = vmatpush1.msra.mxu0 0.0
  %274 = vmatprep.subr.mxu0 0.0
  %275 = vmatpush1.msra.mxu0 0.0
  %276 = vmatprep.subr.mxu0 0.0
  %277 = vmatpush1.msra.mxu0 0.0
  %278 = vmatprep.subr.mxu0 0.0
  %279 = vmatpush1.msra.mxu0 0.0
  %280 = vmatprep.subr.mxu0 0.0
  %281 = vmatpush1.msra.mxu0 0.0
  %282 = vmatprep.subr.mxu0 0.0
  %283 = vmatpush1.msra.mxu0 0.0
  %284 = vmatprep.subr.mxu0 0.0
  %285 = vmatpush1.msra.mxu0 0.0
  %286 = vmatprep.subr.mxu0 0.0
  %287 = vmatpush1.msra.mxu0 0.0
  %288 = vmatprep.subr.mxu0 0.0
  %289 = vmatpush1.msra.mxu0 0.0
  %290 = vmatprep.subr.mxu0 0.0
  %291 = vmatpush1.msra.mxu0 0.0
  %292 = vmatprep.subr.mxu0 0.0
  %293 = vmatpush1.msra.mxu0 0.0
  %294 = vmatprep.subr.mxu0 0.0
  %295 = vmatpush1.msra.mxu0 0.0
  %296 = vmatprep.subr.mxu0 0.0
  %297 = vmatpush1.msra.mxu0 0.0
  %298 = vmatprep.subr.mxu0 0.0
  %299 = vmatpush1.msra.mxu0 0.0
  %300 = vmatprep.subr.mxu0 0.0
  %301 = vmatpush1.msra.mxu0 0.0
  %302 = vmatprep.subr.mxu0 0.0
  %303 = vmatpush1.msra.mxu0 0.0
  %304 = vmatprep.subr.mxu0 0.0
  %305 = vmatpush1.msra.mxu0 0.0
  %306 = vmatprep.subr.mxu0 0.0
  %307 = vmatpush1.msra.mxu0 0.0
  %308 = vmatprep.subr.mxu0 0.0
  %309 = vmatpush1.msra.mxu0 0.0
  %310 = vmatprep.subr.mxu0 0.0
  %311 = vmatpush1.msra.mxu0 0.0
  %312 = vmatprep.subr.mxu0 0.0
  %313 = vmatpush1.msra.mxu0 0.0
  %314 = vmatprep.subr.mxu0 0.0
  %315 = vmatpush1.msra.mxu0 0.0
  %316 = vmatprep.subr.mxu0 0.0
  %317 = vmatpush1.msra.mxu0 0.0
  %318 = vmatprep.subr.mxu0 0.0
  %319 = vmatpush1.msra.mxu0 0.0
  %320 = vmatprep.subr.mxu0 0.0
  %321 = vmatpush1.msra.mxu0 0.0
  %322 = vmatprep.subr.mxu0 0.0
  %323 = vmatpush1.msra.mxu0 0.0
  %324 = vmatprep.subr.mxu0 0.0
  %325 = vmatpush1.msra.mxu0 0.0
  %326 = vmatprep.subr.mxu0 0.0
  %327 = vmatpush1.msra.mxu0 0.0
  %328 = vmatprep.subr.mxu0 0.0
  %329 = vmatpush1.msra.mxu0 0.0
  %330 = vmatprep.mubr.f32.mxu0 0.0
  %v331 = vand.u32 %v84, 4294901760
  %v332 = vsub.f32 %v84, %v331
  %333 = vmatmul.mubr.f32.gmra.mrb[0].mxu0 %v332
  %v334 = vpop.f32.mrb[0].mxu0
  %v335 = vadd.f32 %v254, %v334
  %v336 = vpop.f32.mrb[0].mxu0
  %v337 = vadd.f32 %v256, %v336
  %338 = vdwg.mxu0
  %v339 = vand.u32 %v74, 4294901760
  %340 = vmatprep.subr.mxu0 %v339
  %v341 = vand.u32 %v73, 4294901760
  %342 = vmatpush1.msra.mxu0 %v341
  %v343 = vand.u32 %v76, 4294901760
  %344 = vmatprep.subr.mxu0 %v343
  %v345 = vand.u32 %v75, 4294901760
  %346 = vmatpush1.msra.mxu0 %v345
  %347 = vmatprep.subr.mxu0 0.0
  %348 = vmatpush1.msra.mxu0 0.0
  %349 = vmatprep.subr.mxu0 0.0
  %350 = vmatpush1.msra.mxu0 0.0
  %351 = vmatprep.subr.mxu0 0.0
  %352 = vmatpush1.msra.mxu0 0.0
  %353 = vmatprep.subr.mxu0 0.0
  %354 = vmatpush1.msra.mxu0 0.0
  %355 = vmatprep.subr.mxu0 0.0
  %356 = vmatpush1.msra.mxu0 0.0
  %357 = vmatprep.subr.mxu0 0.0
  %358 = vmatpush1.msra.mxu0 0.0
  %359 = vmatprep.subr.mxu0 0.0
  %360 = vmatpush1.msra.mxu0 0.0
  %361 = vmatprep.subr.mxu0 0.0
  %362 = vmatpush1.msra.mxu0 0.0
  %363 = vmatprep.subr.mxu0 0.0
  %364 = vmatpush1.msra.mxu0 0.0
  %365 = vmatprep.subr.mxu0 0.0
  %366 = vmatpush1.msra.mxu0 0.0
  %367 = vmatprep.subr.mxu0 0.0
  %368 = vmatpush1.msra.mxu0 0.0
  %369 = vmatprep.subr.mxu0 0.0
  %370 = vmatpush1.msra.mxu0 0.0
  %371 = vmatprep.subr.mxu0 0.0
  %372 = vmatpush1.msra.mxu0 0.0
  %373 = vmatprep.subr.mxu0 0.0
  %374 = vmatpush1.msra.mxu0 0.0
  %375 = vmatprep.subr.mxu0 0.0
  %376 = vmatpush1.msra.mxu0 0.0
  %377 = vmatprep.subr.mxu0 0.0
  %378 = vmatpush1.msra.mxu0 0.0
  %379 = vmatprep.subr.mxu0 0.0
  %380 = vmatpush1.msra.mxu0 0.0
  %381 = vmatprep.subr.mxu0 0.0
  %382 = vmatpush1.msra.mxu0 0.0
  %383 = vmatprep.subr.mxu0 0.0
  %384 = vmatpush1.msra.mxu0 0.0
  %385 = vmatprep.subr.mxu0 0.0
  %386 = vmatpush1.msra.mxu0 0.0
  %387 = vmatprep.subr.mxu0 0.0
  %388 = vmatpush1.msra.mxu0 0.0
  %389 = vmatprep.subr.mxu0 0.0
  %390 = vmatpush1.msra.mxu0 0.0
  %391 = vmatprep.subr.mxu0 0.0
  %392 = vmatpush1.msra.mxu0 0.0
  %393 = vmatprep.subr.mxu0 0.0
  %394 = vmatpush1.msra.mxu0 0.0
  %395 = vmatprep.subr.mxu0 0.0
  %396 = vmatpush1.msra.mxu0 0.0
  %397 = vmatprep.subr.mxu0 0.0
  %398 = vmatpush1.msra.mxu0 0.0
  %399 = vmatprep.subr.mxu0 0.0
  %400 = vmatpush1.msra.mxu0 0.0
  %401 = vmatprep.subr.mxu0 0.0
  %402 = vmatpush1.msra.mxu0 0.0
  %403 = vmatprep.subr.mxu0 0.0
  %404 = vmatpush1.msra.mxu0 0.0
  %405 = vmatprep.subr.mxu0 0.0
  %406 = vmatpush1.msra.mxu0 0.0
  %407 = vmatprep.mubr.f32.mxu0 0.0
  %v408 = vand.u32 %v84, 4294901760
  %v409 = vsub.f32 %v84, %v408
  %v410 = vand.u32 %v409, 4294901760
  %411 = vmatmul.mubr.f32.gmra.mrb[0].mxu0 %v410
  %v412 = vpop.f32.mrb[0].mxu0
  %v413 = vadd.f32 %v335, %v412
  %v414 = vpop.f32.mrb[0].mxu0
  %v415 = vadd.f32 %v337, %v414
  %416 = vdwg.mxu0
  %v417 = vand.u32 %v74, 4294901760
  %v418 = vsub.f32 %v74, %v417
  %v419 = vand.u32 %v418, 4294901760
  %420 = vmatprep.subr.mxu0 %v419
  %v421 = vand.u32 %v73, 4294901760
  %v422 = vsub.f32 %v73, %v421
  %v423 = vand.u32 %v422, 4294901760
  %424 = vmatpush1.msra.mxu0 %v423
  %v425 = vand.u32 %v76, 4294901760
  %v426 = vsub.f32 %v76, %v425
  %v427 = vand.u32 %v426, 4294901760
  %428 = vmatprep.subr.mxu0 %v427
  %v429 = vand.u32 %v75, 4294901760
  %v430 = vsub.f32 %v75, %v429
  %v431 = vand.u32 %v430, 4294901760
  %432 = vmatpush1.msra.mxu0 %v431
  %433 = vmatprep.subr.mxu0 0.0
  %434 = vmatpush1.msra.mxu0 0.0
  %435 = vmatprep.subr.mxu0 0.0
  %436 = vmatpush1.msra.mxu0 0.0
  %437 = vmatprep.subr.mxu0 0.0
  %438 = vmatpush1.msra.mxu0 0.0
  %439 = vmatprep.subr.mxu0 0.0
  %440 = vmatpush1.msra.mxu0 0.0
  %441 = vmatprep.subr.mxu0 0.0
  %442 = vmatpush1.msra.mxu0 0.0
  %443 = vmatprep.subr.mxu0 0.0
  %444 = vmatpush1.msra.mxu0 0.0
  %445 = vmatprep.subr.mxu0 0.0
  %446 = vmatpush1.msra.mxu0 0.0
  %447 = vmatprep.subr.mxu0 0.0
  %448 = vmatpush1.msra.mxu0 0.0
  %449 = vmatprep.subr.mxu0 0.0
  %450 = vmatpush1.msra.mxu0 0.0
  %451 = vmatprep.subr.mxu0 0.0
  %452 = vmatpush1.msra.mxu0 0.0
  %453 = vmatprep.subr.mxu0 0.0
  %454 = vmatpush1.msra.mxu0 0.0
  %455 = vmatprep.subr.mxu0 0.0
  %456 = vmatpush1.msra.mxu0 0.0
  %457 = vmatprep.subr.mxu0 0.0
  %458 = vmatpush1.msra.mxu0 0.0
  %459 = vmatprep.subr.mxu0 0.0
  %460 = vmatpush1.msra.mxu0 0.0
  %461 = vmatprep.subr.mxu0 0.0
  %462 = vmatpush1.msra.mxu0 0.0
  %463 = vmatprep.subr.mxu0 0.0
  %464 = vmatpush1.msra.mxu0 0.0
  %465 = vmatprep.subr.mxu0 0.0
  %466 = vmatpush1.msra.mxu0 0.0
  %467 = vmatprep.subr.mxu0 0.0
  %468 = vmatpush1.msra.mxu0 0.0
  %469 = vmatprep.subr.mxu0 0.0
  %470 = vmatpush1.msra.mxu0 0.0
  %471 = vmatprep.subr.mxu0 0.0
  %472 = vmatpush1.msra.mxu0 0.0
  %473 = vmatprep.subr.mxu0 0.0
  %474 = vmatpush1.msra.mxu0 0.0
  %475 = vmatprep.subr.mxu0 0.0
  %476 = vmatpush1.msra.mxu0 0.0
  %477 = vmatprep.subr.mxu0 0.0
  %478 = vmatpush1.msra.mxu0 0.0
  %479 = vmatprep.subr.mxu0 0.0
  %480 = vmatpush1.msra.mxu0 0.0
  %481 = vmatprep.subr.mxu0 0.0
  %482 = vmatpush1.msra.mxu0 0.0
  %483 = vmatprep.subr.mxu0 0.0
  %484 = vmatpush1.msra.mxu0 0.0
  %485 = vmatprep.subr.mxu0 0.0
  %486 = vmatpush1.msra.mxu0 0.0
  %487 = vmatprep.subr.mxu0 0.0
  %488 = vmatpush1.msra.mxu0 0.0
  %489 = vmatprep.subr.mxu0 0.0
  %490 = vmatpush1.msra.mxu0 0.0
  %491 = vmatprep.subr.mxu0 0.0
  %492 = vmatpush1.msra.mxu0 0.0
  %493 = vmatprep.mubr.f32.mxu0 0.0
  %v494 = vand.u32 %v84, 4294901760
  %495 = vmatmul.mubr.f32.gmra.mrb[0].mxu0 %v494
  %v496 = vpop.f32.mrb[0].mxu0
  %v497 = vadd.f32 %v413, %v496
  %v498 = vpop.f32.mrb[0].mxu0
  %v499 = vadd.f32 %v415, %v498
  %500 = vdwg.mxu0
  %v501 = vand.u32 %v74, 4294901760
  %502 = vmatprep.subr.mxu0 %v501
  %v503 = vand.u32 %v73, 4294901760
  %504 = vmatpush1.msra.mxu0 %v503
  %v505 = vand.u32 %v76, 4294901760
  %506 = vmatprep.subr.mxu0 %v505
  %v507 = vand.u32 %v75, 4294901760
  %508 = vmatpush1.msra.mxu0 %v507
  %509 = vmatprep.subr.mxu0 0.0
  %510 = vmatpush1.msra.mxu0 0.0
  %511 = vmatprep.subr.mxu0 0.0
  %512 = vmatpush1.msra.mxu0 0.0
  %513 = vmatprep.subr.mxu0 0.0
  %514 = vmatpush1.msra.mxu0 0.0
  %515 = vmatprep.subr.mxu0 0.0
  %516 = vmatpush1.msra.mxu0 0.0
  %517 = vmatprep.subr.mxu0 0.0
  %518 = vmatpush1.msra.mxu0 0.0
  %519 = vmatprep.subr.mxu0 0.0
  %520 = vmatpush1.msra.mxu0 0.0
  %521 = vmatprep.subr.mxu0 0.0
  %522 = vmatpush1.msra.mxu0 0.0
  %523 = vmatprep.subr.mxu0 0.0
  %524 = vmatpush1.msra.mxu0 0.0
  %525 = vmatprep.subr.mxu0 0.0
  %526 = vmatpush1.msra.mxu0 0.0
  %527 = vmatprep.subr.mxu0 0.0
  %528 = vmatpush1.msra.mxu0 0.0
  %529 = vmatprep.subr.mxu0 0.0
  %530 = vmatpush1.msra.mxu0 0.0
  %531 = vmatprep.subr.mxu0 0.0
  %532 = vmatpush1.msra.mxu0 0.0
  %533 = vmatprep.subr.mxu0 0.0
  %534 = vmatpush1.msra.mxu0 0.0
  %535 = vmatprep.subr.mxu0 0.0
  %536 = vmatpush1.msra.mxu0 0.0
  %537 = vmatprep.subr.mxu0 0.0
  %538 = vmatpush1.msra.mxu0 0.0
  %539 = vmatprep.subr.mxu0 0.0
  %540 = vmatpush1.msra.mxu0 0.0
  %541 = vmatprep.subr.mxu0 0.0
  %542 = vmatpush1.msra.mxu0 0.0
  %543 = vmatprep.subr.mxu0 0.0
  %544 = vmatpush1.msra.mxu0 0.0
  %545 = vmatprep.subr.mxu0 0.0
  %546 = vmatpush1.msra.mxu0 0.0
  %547 = vmatprep.subr.mxu0 0.0
  %548 = vmatpush1.msra.mxu0 0.0
  %549 = vmatprep.subr.mxu0 0.0
  %550 = vmatpush1.msra.mxu0 0.0
  %551 = vmatprep.subr.mxu0 0.0
  %552 = vmatpush1.msra.mxu0 0.0
  %553 = vmatprep.subr.mxu0 0.0
  %554 = vmatpush1.msra.mxu0 0.0
  %555 = vmatprep.subr.mxu0 0.0
  %556 = vmatpush1.msra.mxu0 0.0
  %557 = vmatprep.subr.mxu0 0.0
  %558 = vmatpush1.msra.mxu0 0.0
  %559 = vmatprep.subr.mxu0 0.0
  %560 = vmatpush1.msra.mxu0 0.0
  %561 = vmatprep.subr.mxu0 0.0
  %562 = vmatpush1.msra.mxu0 0.0
  %563 = vmatprep.subr.mxu0 0.0
  %564 = vmatpush1.msra.mxu0 0.0
  %565 = vmatprep.subr.mxu0 0.0
  %566 = vmatpush1.msra.mxu0 0.0
  %567 = vmatprep.subr.mxu0 0.0
  %568 = vmatpush1.msra.mxu0 0.0
  %569 = vmatprep.mubr.f32.mxu0 0.0
  %v570 = vand.u32 %v84, 4294901760
  %571 = vmatmul.mubr.f32.gmra.mrb[0].mxu0 %v570
  %v572 = vpop.f32.mrb[0].mxu0
  %v573 = vadd.f32 %v497, %v572
  %v574 = vpop.f32.mrb[0].mxu0
  %v575 = vadd.f32 %v499, %v574
  %576 = vdwg.mxu0
  %v577 = vmax.f32 %v573, 0.0
  %v578 = vmax.f32 %v575, 0.0
  %vm579 = vcmask 31744
  %v581 = vsel %vm579, %v28, 0
  %v584 = vsel %vm579, %v29, 0
  %v587 = vsel %vm579, %v30, 0
  %v590 = vsel %vm579, %v31, 0
  %v593 = vsel %vm579, %v32, 0
  %v596 = vsel %vm579, %v33, 0
  %v599 = vsel %vm579, %v34, 0
  %v602 = vsel %vm579, %v35, 0
  %vm604 = vcmask 1043456
  %v606 = vsel %vm604, %v577, 0
  %v609 = vsel %vm604, %v578, 0
  %v611 = vand.u32 %v609, 4294901760
  %612 = vmatprep.subr.mxu0 %v611
  %v613 = vand.u32 %v606, 4294901760
  %614 = vmatpush1.msra.mxu0 %v613
  %615 = vmatprep.subr.mxu0 0.0
  %616 = vmatpush1.msra.mxu0 0.0
  %617 = vmatprep.subr.mxu0 0.0
  %618 = vmatpush1.msra.mxu0 0.0
  %619 = vmatprep.subr.mxu0 0.0
  %620 = vmatpush1.msra.mxu0 0.0
  %621 = vmatprep.subr.mxu0 0.0
  %622 = vmatpush1.msra.mxu0 0.0
  %623 = vmatprep.subr.mxu0 0.0
  %624 = vmatpush1.msra.mxu0 0.0
  %625 = vmatprep.subr.mxu0 0.0
  %626 = vmatpush1.msra.mxu0 0.0
  %627 = vmatprep.subr.mxu0 0.0
  %628 = vmatpush1.msra.mxu0 0.0
  %629 = vmatprep.subr.mxu0 0.0
  %630 = vmatpush1.msra.mxu0 0.0
  %631 = vmatprep.subr.mxu0 0.0
  %632 = vmatpush1.msra.mxu0 0.0
  %633 = vmatprep.subr.mxu0 0.0
  %634 = vmatpush1.msra.mxu0 0.0
  %635 = vmatprep.subr.mxu0 0.0
  %636 = vmatpush1.msra.mxu0 0.0
  %637 = vmatprep.subr.mxu0 0.0
  %638 = vmatpush1.msra.mxu0 0.0
  %639 = vmatprep.subr.mxu0 0.0
  %640 = vmatpush1.msra.mxu0 0.0
  %641 = vmatprep.subr.mxu0 0.0
  %642 = vmatpush1.msra.mxu0 0.0
  %643 = vmatprep.subr.mxu0 0.0
  %644 = vmatpush1.msra.mxu0 0.0
  %645 = vmatprep.subr.mxu0 0.0
  %646 = vmatpush1.msra.mxu0 0.0
  %647 = vmatprep.subr.mxu0 0.0
  %648 = vmatpush1.msra.mxu0 0.0
  %649 = vmatprep.subr.mxu0 0.0
  %650 = vmatpush1.msra.mxu0 0.0
  %651 = vmatprep.subr.mxu0 0.0
  %652 = vmatpush1.msra.mxu0 0.0
  %653 = vmatprep.subr.mxu0 0.0
  %654 = vmatpush1.msra.mxu0 0.0
  %655 = vmatprep.subr.mxu0 0.0
  %656 = vmatpush1.msra.mxu0 0.0
  %657 = vmatprep.subr.mxu0 0.0
  %658 = vmatpush1.msra.mxu0 0.0
  %659 = vmatprep.subr.mxu0 0.0
  %660 = vmatpush1.msra.mxu0 0.0
  %661 = vmatprep.subr.mxu0 0.0
  %662 = vmatpush1.msra.mxu0 0.0
  %663 = vmatprep.subr.mxu0 0.0
  %664 = vmatpush1.msra.mxu0 0.0
  %665 = vmatprep.subr.mxu0 0.0
  %666 = vmatpush1.msra.mxu0 0.0
  %667 = vmatprep.subr.mxu0 0.0
  %668 = vmatpush1.msra.mxu0 0.0
  %669 = vmatprep.subr.mxu0 0.0
  %670 = vmatpush1.msra.mxu0 0.0
  %671 = vmatprep.subr.mxu0 0.0
  %672 = vmatpush1.msra.mxu0 0.0
  %673 = vmatprep.subr.mxu0 0.0
  %674 = vmatpush1.msra.mxu0 0.0
  %675 = vmatprep.subr.mxu0 0.0
  %676 = vmatpush1.msra.mxu0 0.0
  %677 = vmatprep.mubr.f32.mxu0 0.0
  %v678 = vand.u32 %v581, 4294901760
  %v679 = vsub.f32 %v581, %v678
  %v680 = vand.u32 %v679, 4294901760
  %v681 = vsub.f32 %v679, %v680
  %v682 = vand.u32 %v681, 4294901760
  %683 = vmatmul.mubr.f32.gmra.mrb[0].mxu0 %v682
  %v684 = vpop.f32.mrb[0].mxu0
  %v685 = vadd.f32 0.0, %v684
  %v686 = vpop.f32.mrb[0].mxu0
  %v687 = vadd.f32 0.0, %v686
  %688 = vmatprep.mubr.f32.mxu0 0.0
  %v689 = vand.u32 %v584, 4294901760
  %v690 = vsub.f32 %v584, %v689
  %v691 = vand.u32 %v690, 4294901760
  %v692 = vsub.f32 %v690, %v691
  %v693 = vand.u32 %v692, 4294901760
  %694 = vmatmul.mubr.f32.gmra.mrb[0].mxu0 %v693
  %v695 = vpop.f32.mrb[0].mxu0
  %v696 = vadd.f32 0.0, %v695
  %v697 = vpop.f32.mrb[0].mxu0
  %v698 = vadd.f32 0.0, %v697
  %699 = vmatprep.mubr.f32.mxu0 0.0
  %v700 = vand.u32 %v587, 4294901760
  %v701 = vsub.f32 %v587, %v700
  %v702 = vand.u32 %v701, 4294901760
  %v703 = vsub.f32 %v701, %v702
  %v704 = vand.u32 %v703, 4294901760
  %705 = vmatmul.mubr.f32.gmra.mrb[0].mxu0 %v704
  %v706 = vpop.f32.mrb[0].mxu0
  %v707 = vadd.f32 0.0, %v706
  %v708 = vpop.f32.mrb[0].mxu0
  %v709 = vadd.f32 0.0, %v708
  %710 = vmatprep.mubr.f32.mxu0 0.0
  %v711 = vand.u32 %v590, 4294901760
  %v712 = vsub.f32 %v590, %v711
  %v713 = vand.u32 %v712, 4294901760
  %v714 = vsub.f32 %v712, %v713
  %v715 = vand.u32 %v714, 4294901760
  %716 = vmatmul.mubr.f32.gmra.mrb[0].mxu0 %v715
  %v717 = vpop.f32.mrb[0].mxu0
  %v718 = vadd.f32 0.0, %v717
  %v719 = vpop.f32.mrb[0].mxu0
  %v720 = vadd.f32 0.0, %v719
  %721 = vmatprep.mubr.f32.mxu0 0.0
  %v722 = vand.u32 %v593, 4294901760
  %v723 = vsub.f32 %v593, %v722
  %v724 = vand.u32 %v723, 4294901760
  %v725 = vsub.f32 %v723, %v724
  %v726 = vand.u32 %v725, 4294901760
  %727 = vmatmul.mubr.f32.gmra.mrb[0].mxu0 %v726
  %v728 = vpop.f32.mrb[0].mxu0
  %v729 = vadd.f32 0.0, %v728
  %v730 = vpop.f32.mrb[0].mxu0
  %v731 = vadd.f32 0.0, %v730
  %732 = vmatprep.mubr.f32.mxu0 0.0
  %v733 = vand.u32 %v596, 4294901760
  %v734 = vsub.f32 %v596, %v733
  %v735 = vand.u32 %v734, 4294901760
  %v736 = vsub.f32 %v734, %v735
  %v737 = vand.u32 %v736, 4294901760
  %738 = vmatmul.mubr.f32.gmra.mrb[0].mxu0 %v737
  %v739 = vpop.f32.mrb[0].mxu0
  %v740 = vadd.f32 0.0, %v739
  %v741 = vpop.f32.mrb[0].mxu0
  %v742 = vadd.f32 0.0, %v741
  %743 = vmatprep.mubr.f32.mxu0 0.0
  %v744 = vand.u32 %v599, 4294901760
  %v745 = vsub.f32 %v599, %v744
  %v746 = vand.u32 %v745, 4294901760
  %v747 = vsub.f32 %v745, %v746
  %v748 = vand.u32 %v747, 4294901760
  %749 = vmatmul.mubr.f32.gmra.mrb[0].mxu0 %v748
  %v750 = vpop.f32.mrb[0].mxu0
  %v751 = vadd.f32 0.0, %v750
  %v752 = vpop.f32.mrb[0].mxu0
  %v753 = vadd.f32 0.0, %v752
  %754 = vmatprep.mubr.f32.mxu0 0.0
  %v755 = vand.u32 %v602, 4294901760
  %v756 = vsub.f32 %v602, %v755
  %v757 = vand.u32 %v756, 4294901760
  %v758 = vsub.f32 %v756, %v757
  %v759 = vand.u32 %v758, 4294901760
  %760 = vmatmul.mubr.f32.gmra.mrb[0].mxu0 %v759
  %v761 = vpop.f32.mrb[0].mxu0
  %v762 = vadd.f32 0.0, %v761
  %v763 = vpop.f32.mrb[0].mxu0
  %v764 = vadd.f32 0.0, %v763
  %765 = vdwg.mxu0
  %v766 = vand.u32 %v609, 4294901760
  %v767 = vsub.f32 %v609, %v766
  %v768 = vand.u32 %v767, 4294901760
  %v769 = vsub.f32 %v767, %v768
  %v770 = vand.u32 %v769, 4294901760
  %771 = vmatprep.subr.mxu0 %v770
  %v772 = vand.u32 %v606, 4294901760
  %v773 = vsub.f32 %v606, %v772
  %v774 = vand.u32 %v773, 4294901760
  %v775 = vsub.f32 %v773, %v774
  %v776 = vand.u32 %v775, 4294901760
  %777 = vmatpush1.msra.mxu0 %v776
  %778 = vmatprep.subr.mxu0 0.0
  %779 = vmatpush1.msra.mxu0 0.0
  %780 = vmatprep.subr.mxu0 0.0
  %781 = vmatpush1.msra.mxu0 0.0
  %782 = vmatprep.subr.mxu0 0.0
  %783 = vmatpush1.msra.mxu0 0.0
  %784 = vmatprep.subr.mxu0 0.0
  %785 = vmatpush1.msra.mxu0 0.0
  %786 = vmatprep.subr.mxu0 0.0
  %787 = vmatpush1.msra.mxu0 0.0
  %788 = vmatprep.subr.mxu0 0.0
  %789 = vmatpush1.msra.mxu0 0.0
  %790 = vmatprep.subr.mxu0 0.0
  %791 = vmatpush1.msra.mxu0 0.0
  %792 = vmatprep.subr.mxu0 0.0
  %793 = vmatpush1.msra.mxu0 0.0
  %794 = vmatprep.subr.mxu0 0.0
  %795 = vmatpush1.msra.mxu0 0.0
  %796 = vmatprep.subr.mxu0 0.0
  %797 = vmatpush1.msra.mxu0 0.0
  %798 = vmatprep.subr.mxu0 0.0
  %799 = vmatpush1.msra.mxu0 0.0
  %800 = vmatprep.subr.mxu0 0.0
  %801 = vmatpush1.msra.mxu0 0.0
  %802 = vmatprep.subr.mxu0 0.0
  %803 = vmatpush1.msra.mxu0 0.0
  %804 = vmatprep.subr.mxu0 0.0
  %805 = vmatpush1.msra.mxu0 0.0
  %806 = vmatprep.subr.mxu0 0.0
  %807 = vmatpush1.msra.mxu0 0.0
  %808 = vmatprep.subr.mxu0 0.0
  %809 = vmatpush1.msra.mxu0 0.0
  %810 = vmatprep.subr.mxu0 0.0
  %811 = vmatpush1.msra.mxu0 0.0
  %812 = vmatprep.subr.mxu0 0.0
  %813 = vmatpush1.msra.mxu0 0.0
  %814 = vmatprep.subr.mxu0 0.0
  %815 = vmatpush1.msra.mxu0 0.0
  %816 = vmatprep.subr.mxu0 0.0
  %817 = vmatpush1.msra.mxu0 0.0
  %818 = vmatprep.subr.mxu0 0.0
  %819 = vmatpush1.msra.mxu0 0.0
  %820 = vmatprep.subr.mxu0 0.0
  %821 = vmatpush1.msra.mxu0 0.0
  %822 = vmatprep.subr.mxu0 0.0
  %823 = vmatpush1.msra.mxu0 0.0
  %824 = vmatprep.subr.mxu0 0.0
  %825 = vmatpush1.msra.mxu0 0.0
  %826 = vmatprep.subr.mxu0 0.0
  %827 = vmatpush1.msra.mxu0 0.0
  %828 = vmatprep.subr.mxu0 0.0
  %829 = vmatpush1.msra.mxu0 0.0
  %830 = vmatprep.subr.mxu0 0.0
  %831 = vmatpush1.msra.mxu0 0.0
  %832 = vmatprep.subr.mxu0 0.0
  %833 = vmatpush1.msra.mxu0 0.0
  %834 = vmatprep.subr.mxu0 0.0
  %835 = vmatpush1.msra.mxu0 0.0
  %836 = vmatprep.subr.mxu0 0.0
  %837 = vmatpush1.msra.mxu0 0.0
  %838 = vmatprep.subr.mxu0 0.0
  %839 = vmatpush1.msra.mxu0 0.0
  %840 = vmatprep.mubr.f32.mxu0 0.0
  %v841 = vand.u32 %v581, 4294901760
  %842 = vmatmul.mubr.f32.gmra.mrb[0].mxu0 %v841
  %v843 = vpop.f32.mrb[0].mxu0
  %v844 = vadd.f32 %v685, %v843
  %v845 = vpop.f32.mrb[0].mxu0
  %v846 = vadd.f32 %v687, %v845
  %847 = vmatprep.mubr.f32.mxu0 0.0
  %v848 = vand.u32 %v584, 4294901760
  %849 = vmatmul.mubr.f32.gmra.mrb[0].mxu0 %v848
  %v850 = vpop.f32.mrb[0].mxu0
  %v851 = vadd.f32 %v696, %v850
  %v852 = vpop.f32.mrb[0].mxu0
  %v853 = vadd.f32 %v698, %v852
  %854 = vmatprep.mubr.f32.mxu0 0.0
  %v855 = vand.u32 %v587, 4294901760
  %856 = vmatmul.mubr.f32.gmra.mrb[0].mxu0 %v855
  %v857 = vpop.f32.mrb[0].mxu0
  %v858 = vadd.f32 %v707, %v857
  %v859 = vpop.f32.mrb[0].mxu0
  %v860 = vadd.f32 %v709, %v859
  %861 = vmatprep.mubr.f32.mxu0 0.0
  %v862 = vand.u32 %v590, 4294901760
  %863 = vmatmul.mubr.f32.gmra.mrb[0].mxu0 %v862
  %v864 = vpop.f32.mrb[0].mxu0
  %v865 = vadd.f32 %v718, %v864
  %v866 = vpop.f32.mrb[0].mxu0
  %v867 = vadd.f32 %v720, %v866
  %868 = vmatprep.mubr.f32.mxu0 0.0
  %v869 = vand.u32 %v593, 4294901760
  %870 = vmatmul.mubr.f32.gmra.mrb[0].mxu0 %v869
  %v871 = vpop.f32.mrb[0].mxu0
  %v872 = vadd.f32 %v729, %v871
  %v873 = vpop.f32.mrb[0].mxu0
  %v874 = vadd.f32 %v731, %v873
  %875 = vmatprep.mubr.f32.mxu0 0.0
  %v876 = vand.u32 %v596, 4294901760
  %877 = vmatmul.mubr.f32.gmra.mrb[0].mxu0 %v876
  %v878 = vpop.f32.mrb[0].mxu0
  %v879 = vadd.f32 %v740, %v878
  %v880 = vpop.f32.mrb[0].mxu0
  %v881 = vadd.f32 %v742, %v880
  %882 = vmatprep.mubr.f32.mxu0 0.0
  %v883 = vand.u32 %v599, 4294901760
  %884 = vmatmul.mubr.f32.gmra.mrb[0].mxu0 %v883
  %v885 = vpop.f32.mrb[0].mxu0
  %v886 = vadd.f32 %v751, %v885
  %v887 = vpop.f32.mrb[0].mxu0
  %v888 = vadd.f32 %v753, %v887
  %889 = vmatprep.mubr.f32.mxu0 0.0
  %v890 = vand.u32 %v602, 4294901760
  %891 = vmatmul.mubr.f32.gmra.mrb[0].mxu0 %v890
  %v892 = vpop.f32.mrb[0].mxu0
  %v893 = vadd.f32 %v762, %v892
  %v894 = vpop.f32.mrb[0].mxu0
  %v895 = vadd.f32 %v764, %v894
  %896 = vdwg.mxu0
  %v897 = vand.u32 %v609, 4294901760
  %v898 = vsub.f32 %v609, %v897
  %899 = vmatprep.subr.mxu0 %v898
  %v900 = vand.u32 %v606, 4294901760
  %v901 = vsub.f32 %v606, %v900
  %902 = vmatpush1.msra.mxu0 %v901
  %903 = vmatprep.subr.mxu0 0.0
  %904 = vmatpush1.msra.mxu0 0.0
  %905 = vmatprep.subr.mxu0 0.0
  %906 = vmatpush1.msra.mxu0 0.0
  %907 = vmatprep.subr.mxu0 0.0
  %908 = vmatpush1.msra.mxu0 0.0
  %909 = vmatprep.subr.mxu0 0.0
  %910 = vmatpush1.msra.mxu0 0.0
  %911 = vmatprep.subr.mxu0 0.0
  %912 = vmatpush1.msra.mxu0 0.0
  %913 = vmatprep.subr.mxu0 0.0
  %914 = vmatpush1.msra.mxu0 0.0
  %915 = vmatprep.subr.mxu0 0.0
  %916 = vmatpush1.msra.mxu0 0.0
  %917 = vmatprep.subr.mxu0 0.0
  %918 = vmatpush1.msra.mxu0 0.0
  %919 = vmatprep.subr.mxu0 0.0
  %920 = vmatpush1.msra.mxu0 0.0
  %921 = vmatprep.subr.mxu0 0.0
  %922 = vmatpush1.msra.mxu0 0.0
  %923 = vmatprep.subr.mxu0 0.0
  %924 = vmatpush1.msra.mxu0 0.0
  %925 = vmatprep.subr.mxu0 0.0
  %926 = vmatpush1.msra.mxu0 0.0
  %927 = vmatprep.subr.mxu0 0.0
  %928 = vmatpush1.msra.mxu0 0.0
  %929 = vmatprep.subr.mxu0 0.0
  %930 = vmatpush1.msra.mxu0 0.0
  %931 = vmatprep.subr.mxu0 0.0
  %932 = vmatpush1.msra.mxu0 0.0
  %933 = vmatprep.subr.mxu0 0.0
  %934 = vmatpush1.msra.mxu0 0.0
  %935 = vmatprep.subr.mxu0 0.0
  %936 = vmatpush1.msra.mxu0 0.0
  %937 = vmatprep.subr.mxu0 0.0
  %938 = vmatpush1.msra.mxu0 0.0
  %939 = vmatprep.subr.mxu0 0.0
  %940 = vmatpush1.msra.mxu0 0.0
  %941 = vmatprep.subr.mxu0 0.0
  %942 = vmatpush1.msra.mxu0 0.0
  %943 = vmatprep.subr.mxu0 0.0
  %944 = vmatpush1.msra.mxu0 0.0
  %945 = vmatprep.subr.mxu0 0.0
  %946 = vmatpush1.msra.mxu0 0.0
  %947 = vmatprep.subr.mxu0 0.0
  %948 = vmatpush1.msra.mxu0 0.0
  %949 = vmatprep.subr.mxu0 0.0
  %950 = vmatpush1.msra.mxu0 0.0
  %951 = vmatprep.subr.mxu0 0.0
  %952 = vmatpush1.msra.mxu0 0.0
  %953 = vmatprep.subr.mxu0 0.0
  %954 = vmatpush1.msra.mxu0 0.0
  %955 = vmatprep.subr.mxu0 0.0
  %956 = vmatpush1.msra.mxu0 0.0
  %957 = vmatprep.subr.mxu0 0.0
  %958 = vmatpush1.msra.mxu0 0.0
  %959 = vmatprep.subr.mxu0 0.0
  %960 = vmatpush1.msra.mxu0 0.0
  %961 = vmatprep.subr.mxu0 0.0
  %962 = vmatpush1.msra.mxu0 0.0
  %963 = vmatprep.subr.mxu0 0.0
  %964 = vmatpush1.msra.mxu0 0.0
  %965 = vmatprep.mubr.f32.mxu0 0.0
  %v966 = vand.u32 %v581, 4294901760
  %v967 = vsub.f32 %v581, %v966
  %968 = vmatmul.mubr.f32.gmra.mrb[0].mxu0 %v967
  %v969 = vpop.f32.mrb[0].mxu0
  %v970 = vadd.f32 %v844, %v969
  %v971 = vpop.f32.mrb[0].mxu0
  %v972 = vadd.f32 %v846, %v971
  %973 = vmatprep.mubr.f32.mxu0 0.0
  %v974 = vand.u32 %v584, 4294901760
  %v975 = vsub.f32 %v584, %v974
  %976 = vmatmul.mubr.f32.gmra.mrb[0].mxu0 %v975
  %v977 = vpop.f32.mrb[0].mxu0
  %v978 = vadd.f32 %v851, %v977
  %v979 = vpop.f32.mrb[0].mxu0
  %v980 = vadd.f32 %v853, %v979
  %981 = vmatprep.mubr.f32.mxu0 0.0
  %v982 = vand.u32 %v587, 4294901760
  %v983 = vsub.f32 %v587, %v982
  %984 = vmatmul.mubr.f32.gmra.mrb[0].mxu0 %v983
  %v985 = vpop.f32.mrb[0].mxu0
  %v986 = vadd.f32 %v858, %v985
  %v987 = vpop.f32.mrb[0].mxu0
  %v988 = vadd.f32 %v860, %v987
  %989 = vmatprep.mubr.f32.mxu0 0.0
  %v990 = vand.u32 %v590, 4294901760
  %v991 = vsub.f32 %v590, %v990
  %992 = vmatmul.mubr.f32.gmra.mrb[0].mxu0 %v991
  %v993 = vpop.f32.mrb[0].mxu0
  %v994 = vadd.f32 %v865, %v993
  %v995 = vpop.f32.mrb[0].mxu0
  %v996 = vadd.f32 %v867, %v995
  %997 = vmatprep.mubr.f32.mxu0 0.0
  %v998 = vand.u32 %v593, 4294901760
  %v999 = vsub.f32 %v593, %v998
  %1000 = vmatmul.mubr.f32.gmra.mrb[0].mxu0 %v999
  %v1001 = vpop.f32.mrb[0].mxu0
  %v1002 = vadd.f32 %v872, %v1001
  %v1003 = vpop.f32.mrb[0].mxu0
  %v1004 = vadd.f32 %v874, %v1003
  %1005 = vmatprep.mubr.f32.mxu0 0.0
  %v1006 = vand.u32 %v596, 4294901760
  %v1007 = vsub.f32 %v596, %v1006
  %1008 = vmatmul.mubr.f32.gmra.mrb[0].mxu0 %v1007
  %v1009 = vpop.f32.mrb[0].mxu0
  %v1010 = vadd.f32 %v879, %v1009
  %v1011 = vpop.f32.mrb[0].mxu0
  %v1012 = vadd.f32 %v881, %v1011
  %1013 = vmatprep.mubr.f32.mxu0 0.0
  %v1014 = vand.u32 %v599, 4294901760
  %v1015 = vsub.f32 %v599, %v1014
  %1016 = vmatmul.mubr.f32.gmra.mrb[0].mxu0 %v1015
  %v1017 = vpop.f32.mrb[0].mxu0
  %v1018 = vadd.f32 %v886, %v1017
  %v1019 = vpop.f32.mrb[0].mxu0
  %v1020 = vadd.f32 %v888, %v1019
  %1021 = vmatprep.mubr.f32.mxu0 0.0
  %v1022 = vand.u32 %v602, 4294901760
  %v1023 = vsub.f32 %v602, %v1022
  %1024 = vmatmul.mubr.f32.gmra.mrb[0].mxu0 %v1023
  %v1025 = vpop.f32.mrb[0].mxu0
  %v1026 = vadd.f32 %v893, %v1025
  %v1027 = vpop.f32.mrb[0].mxu0
  %v1028 = vadd.f32 %v895, %v1027
  %1029 = vdwg.mxu0
  %v1030 = vand.u32 %v609, 4294901760
  %1031 = vmatprep.subr.mxu0 %v1030
  %v1032 = vand.u32 %v606, 4294901760
  %1033 = vmatpush1.msra.mxu0 %v1032
  %1034 = vmatprep.subr.mxu0 0.0
  %1035 = vmatpush1.msra.mxu0 0.0
  %1036 = vmatprep.subr.mxu0 0.0
  %1037 = vmatpush1.msra.mxu0 0.0
  %1038 = vmatprep.subr.mxu0 0.0
  %1039 = vmatpush1.msra.mxu0 0.0
  %1040 = vmatprep.subr.mxu0 0.0
  %1041 = vmatpush1.msra.mxu0 0.0
  %1042 = vmatprep.subr.mxu0 0.0
  %1043 = vmatpush1.msra.mxu0 0.0
  %1044 = vmatprep.subr.mxu0 0.0
  %1045 = vmatpush1.msra.mxu0 0.0
  %1046 = vmatprep.subr.mxu0 0.0
  %1047 = vmatpush1.msra.mxu0 0.0
  %1048 = vmatprep.subr.mxu0 0.0
  %1049 = vmatpush1.msra.mxu0 0.0
  %1050 = vmatprep.subr.mxu0 0.0
  %1051 = vmatpush1.msra.mxu0 0.0
  %1052 = vmatprep.subr.mxu0 0.0
  %1053 = vmatpush1.msra.mxu0 0.0
  %1054 = vmatprep.subr.mxu0 0.0
  %1055 = vmatpush1.msra.mxu0 0.0
  %1056 = vmatprep.subr.mxu0 0.0
  %1057 = vmatpush1.msra.mxu0 0.0
  %1058 = vmatprep.subr.mxu0 0.0
  %1059 = vmatpush1.msra.mxu0 0.0
  %1060 = vmatprep.subr.mxu0 0.0
  %1061 = vmatpush1.msra.mxu0 0.0
  %1062 = vmatprep.subr.mxu0 0.0
  %1063 = vmatpush1.msra.mxu0 0.0
  %1064 = vmatprep.subr.mxu0 0.0
  %1065 = vmatpush1.msra.mxu0 0.0
  %1066 = vmatprep.subr.mxu0 0.0
  %1067 = vmatpush1.msra.mxu0 0.0
  %1068 = vmatprep.subr.mxu0 0.0
  %1069 = vmatpush1.msra.mxu0 0.0
  %1070 = vmatprep.subr.mxu0 0.0
  %1071 = vmatpush1.msra.mxu0 0.0
  %1072 = vmatprep.subr.mxu0 0.0
  %1073 = vmatpush1.msra.mxu0 0.0
  %1074 = vmatprep.subr.mxu0 0.0
  %1075 = vmatpush1.msra.mxu0 0.0
  %1076 = vmatprep.subr.mxu0 0.0
  %1077 = vmatpush1.msra.mxu0 0.0
  %1078 = vmatprep.subr.mxu0 0.0
  %1079 = vmatpush1.msra.mxu0 0.0
  %1080 = vmatprep.subr.mxu0 0.0
  %1081 = vmatpush1.msra.mxu0 0.0
  %1082 = vmatprep.subr.mxu0 0.0
  %1083 = vmatpush1.msra.mxu0 0.0
  %1084 = vmatprep.subr.mxu0 0.0
  %1085 = vmatpush1.msra.mxu0 0.0
  %1086 = vmatprep.subr.mxu0 0.0
  %1087 = vmatpush1.msra.mxu0 0.0
  %1088 = vmatprep.subr.mxu0 0.0
  %1089 = vmatpush1.msra.mxu0 0.0
  %1090 = vmatprep.subr.mxu0 0.0
  %1091 = vmatpush1.msra.mxu0 0.0
  %1092 = vmatprep.subr.mxu0 0.0
  %1093 = vmatpush1.msra.mxu0 0.0
  %1094 = vmatprep.subr.mxu0 0.0
  %1095 = vmatpush1.msra.mxu0 0.0
  %1096 = vmatprep.mubr.f32.mxu0 0.0
  %v1097 = vand.u32 %v581, 4294901760
  %v1098 = vsub.f32 %v581, %v1097
  %v1099 = vand.u32 %v1098, 4294901760
  %1100 = vmatmul.mubr.f32.gmra.mrb[0].mxu0 %v1099
  %v1101 = vpop.f32.mrb[0].mxu0
  %v1102 = vadd.f32 %v970, %v1101
  %v1103 = vpop.f32.mrb[0].mxu0
  %v1104 = vadd.f32 %v972, %v1103
  %1105 = vmatprep.mubr.f32.mxu0 0.0
  %v1106 = vand.u32 %v584, 4294901760
  %v1107 = vsub.f32 %v584, %v1106
  %v1108 = vand.u32 %v1107, 4294901760
  %1109 = vmatmul.mubr.f32.gmra.mrb[0].mxu0 %v1108
  %v1110 = vpop.f32.mrb[0].mxu0
  %v1111 = vadd.f32 %v978, %v1110
  %v1112 = vpop.f32.mrb[0].mxu0
  %v1113 = vadd.f32 %v980, %v1112
  %1114 = vmatprep.mubr.f32.mxu0 0.0
  %v1115 = vand.u32 %v587, 4294901760
  %v1116 = vsub.f32 %v587, %v1115
  %v1117 = vand.u32 %v1116, 4294901760
  %1118 = vmatmul.mubr.f32.gmra.mrb[0].mxu0 %v1117
  %v1119 = vpop.f32.mrb[0].mxu0
  %v1120 = vadd.f32 %v986, %v1119
  %v1121 = vpop.f32.mrb[0].mxu0
  %v1122 = vadd.f32 %v988, %v1121
  %1123 = vmatprep.mubr.f32.mxu0 0.0
  %v1124 = vand.u32 %v590, 4294901760
  %v1125 = vsub.f32 %v590, %v1124
  %v1126 = vand.u32 %v1125, 4294901760
  %1127 = vmatmul.mubr.f32.gmra.mrb[0].mxu0 %v1126
  %v1128 = vpop.f32.mrb[0].mxu0
  %v1129 = vadd.f32 %v994, %v1128
  %v1130 = vpop.f32.mrb[0].mxu0
  %v1131 = vadd.f32 %v996, %v1130
  %1132 = vmatprep.mubr.f32.mxu0 0.0
  %v1133 = vand.u32 %v593, 4294901760
  %v1134 = vsub.f32 %v593, %v1133
  %v1135 = vand.u32 %v1134, 4294901760
  %1136 = vmatmul.mubr.f32.gmra.mrb[0].mxu0 %v1135
  %v1137 = vpop.f32.mrb[0].mxu0
  %v1138 = vadd.f32 %v1002, %v1137
  %v1139 = vpop.f32.mrb[0].mxu0
  %v1140 = vadd.f32 %v1004, %v1139
  %1141 = vmatprep.mubr.f32.mxu0 0.0
  %v1142 = vand.u32 %v596, 4294901760
  %v1143 = vsub.f32 %v596, %v1142
  %v1144 = vand.u32 %v1143, 4294901760
  %1145 = vmatmul.mubr.f32.gmra.mrb[0].mxu0 %v1144
  %v1146 = vpop.f32.mrb[0].mxu0
  %v1147 = vadd.f32 %v1010, %v1146
  %v1148 = vpop.f32.mrb[0].mxu0
  %v1149 = vadd.f32 %v1012, %v1148
  %1150 = vmatprep.mubr.f32.mxu0 0.0
  %v1151 = vand.u32 %v599, 4294901760
  %v1152 = vsub.f32 %v599, %v1151
  %v1153 = vand.u32 %v1152, 4294901760
  %1154 = vmatmul.mubr.f32.gmra.mrb[0].mxu0 %v1153
  %v1155 = vpop.f32.mrb[0].mxu0
  %v1156 = vadd.f32 %v1018, %v1155
  %v1157 = vpop.f32.mrb[0].mxu0
  %v1158 = vadd.f32 %v1020, %v1157
  %1159 = vmatprep.mubr.f32.mxu0 0.0
  %v1160 = vand.u32 %v602, 4294901760
  %v1161 = vsub.f32 %v602, %v1160
  %v1162 = vand.u32 %v1161, 4294901760
  %1163 = vmatmul.mubr.f32.gmra.mrb[0].mxu0 %v1162
  %v1164 = vpop.f32.mrb[0].mxu0
  %v1165 = vadd.f32 %v1026, %v1164
  %v1166 = vpop.f32.mrb[0].mxu0
  %v1167 = vadd.f32 %v1028, %v1166
  %1168 = vdwg.mxu0
  %v1169 = vand.u32 %v609, 4294901760
  %v1170 = vsub.f32 %v609, %v1169
  %v1171 = vand.u32 %v1170, 4294901760
  %1172 = vmatprep.subr.mxu0 %v1171
  %v1173 = vand.u32 %v606, 4294901760
  %v1174 = vsub.f32 %v606, %v1173
  %v1175 = vand.u32 %v1174, 4294901760
  %1176 = vmatpush1.msra.mxu0 %v1175
  %1177 = vmatprep.subr.mxu0 0.0
  %1178 = vmatpush1.msra.mxu0 0.0
  %1179 = vmatprep.subr.mxu0 0.0
  %1180 = vmatpush1.msra.mxu0 0.0
  %1181 = vmatprep.subr.mxu0 0.0
  %1182 = vmatpush1.msra.mxu0 0.0
  %1183 = vmatprep.subr.mxu0 0.0
  %1184 = vmatpush1.msra.mxu0 0.0
  %1185 = vmatprep.subr.mxu0 0.0
  %1186 = vmatpush1.msra.mxu0 0.0
  %1187 = vmatprep.subr.mxu0 0.0
  %1188 = vmatpush1.msra.mxu0 0.0
  %1189 = vmatprep.subr.mxu0 0.0
  %1190 = vmatpush1.msra.mxu0 0.0
  %1191 = vmatprep.subr.mxu0 0.0
  %1192 = vmatpush1.msra.mxu0 0.0
  %1193 = vmatprep.subr.mxu0 0.0
  %1194 = vmatpush1.msra.mxu0 0.0
  %1195 = vmatprep.subr.mxu0 0.0
  %1196 = vmatpush1.msra.mxu0 0.0
  %1197 = vmatprep.subr.mxu0 0.0
  %1198 = vmatpush1.msra.mxu0 0.0
  %1199 = vmatprep.subr.mxu0 0.0
  %1200 = vmatpush1.msra.mxu0 0.0
  %1201 = vmatprep.subr.mxu0 0.0
  %1202 = vmatpush1.msra.mxu0 0.0
  %1203 = vmatprep.subr.mxu0 0.0
  %1204 = vmatpush1.msra.mxu0 0.0
  %1205 = vmatprep.subr.mxu0 0.0
  %1206 = vmatpush1.msra.mxu0 0.0
  %1207 = vmatprep.subr.mxu0 0.0
  %1208 = vmatpush1.msra.mxu0 0.0
  %1209 = vmatprep.subr.mxu0 0.0
  %1210 = vmatpush1.msra.mxu0 0.0
  %1211 = vmatprep.subr.mxu0 0.0
  %1212 = vmatpush1.msra.mxu0 0.0
  %1213 = vmatprep.subr.mxu0 0.0
  %1214 = vmatpush1.msra.mxu0 0.0
  %1215 = vmatprep.subr.mxu0 0.0
  %1216 = vmatpush1.msra.mxu0 0.0
  %1217 = vmatprep.subr.mxu0 0.0
  %1218 = vmatpush1.msra.mxu0 0.0
  %1219 = vmatprep.subr.mxu0 0.0
  %1220 = vmatpush1.msra.mxu0 0.0
  %1221 = vmatprep.subr.mxu0 0.0
  %1222 = vmatpush1.msra.mxu0 0.0
  %1223 = vmatprep.subr.mxu0 0.0
  %1224 = vmatpush1.msra.mxu0 0.0
  %1225 = vmatprep.subr.mxu0 0.0
  %1226 = vmatpush1.msra.mxu0 0.0
  %1227 = vmatprep.subr.mxu0 0.0
  %1228 = vmatpush1.msra.mxu0 0.0
  %1229 = vmatprep.subr.mxu0 0.0
  %1230 = vmatpush1.msra.mxu0 0.0
  %1231 = vmatprep.subr.mxu0 0.0
  %1232 = vmatpush1.msra.mxu0 0.0
  %1233 = vmatprep.subr.mxu0 0.0
  %1234 = vmatpush1.msra.mxu0 0.0
  %1235 = vmatprep.subr.mxu0 0.0
  %1236 = vmatpush1.msra.mxu0 0.0
  %1237 = vmatprep.subr.mxu0 0.0
  %1238 = vmatpush1.msra.mxu0 0.0
  %1239 = vmatprep.mubr.f32.mxu0 0.0
  %v1240 = vand.u32 %v581, 4294901760
  %1241 = vmatmul.mubr.f32.gmra.mrb[0].mxu0 %v1240
  %v1242 = vpop.f32.mrb[0].mxu0
  %v1243 = vadd.f32 %v1102, %v1242
  %v1244 = vpop.f32.mrb[0].mxu0
  %v1245 = vadd.f32 %v1104, %v1244
  %1246 = vmatprep.mubr.f32.mxu0 0.0
  %v1247 = vand.u32 %v584, 4294901760
  %1248 = vmatmul.mubr.f32.gmra.mrb[0].mxu0 %v1247
  %v1249 = vpop.f32.mrb[0].mxu0
  %v1250 = vadd.f32 %v1111, %v1249
  %v1251 = vpop.f32.mrb[0].mxu0
  %v1252 = vadd.f32 %v1113, %v1251
  %1253 = vmatprep.mubr.f32.mxu0 0.0
  %v1254 = vand.u32 %v587, 4294901760
  %1255 = vmatmul.mubr.f32.gmra.mrb[0].mxu0 %v1254
  %v1256 = vpop.f32.mrb[0].mxu0
  %v1257 = vadd.f32 %v1120, %v1256
  %v1258 = vpop.f32.mrb[0].mxu0
  %v1259 = vadd.f32 %v1122, %v1258
  %1260 = vmatprep.mubr.f32.mxu0 0.0
  %v1261 = vand.u32 %v590, 4294901760
  %1262 = vmatmul.mubr.f32.gmra.mrb[0].mxu0 %v1261
  %v1263 = vpop.f32.mrb[0].mxu0
  %v1264 = vadd.f32 %v1129, %v1263
  %v1265 = vpop.f32.mrb[0].mxu0
  %v1266 = vadd.f32 %v1131, %v1265
  %1267 = vmatprep.mubr.f32.mxu0 0.0
  %v1268 = vand.u32 %v593, 4294901760
  %1269 = vmatmul.mubr.f32.gmra.mrb[0].mxu0 %v1268
  %v1270 = vpop.f32.mrb[0].mxu0
  %v1271 = vadd.f32 %v1138, %v1270
  %v1272 = vpop.f32.mrb[0].mxu0
  %v1273 = vadd.f32 %v1140, %v1272
  %1274 = vmatprep.mubr.f32.mxu0 0.0
  %v1275 = vand.u32 %v596, 4294901760
  %1276 = vmatmul.mubr.f32.gmra.mrb[0].mxu0 %v1275
  %v1277 = vpop.f32.mrb[0].mxu0
  %v1278 = vadd.f32 %v1147, %v1277
  %v1279 = vpop.f32.mrb[0].mxu0
  %v1280 = vadd.f32 %v1149, %v1279
  %1281 = vmatprep.mubr.f32.mxu0 0.0
  %v1282 = vand.u32 %v599, 4294901760
  %1283 = vmatmul.mubr.f32.gmra.mrb[0].mxu0 %v1282
  %v1284 = vpop.f32.mrb[0].mxu0
  %v1285 = vadd.f32 %v1156, %v1284
  %v1286 = vpop.f32.mrb[0].mxu0
  %v1287 = vadd.f32 %v1158, %v1286
  %1288 = vmatprep.mubr.f32.mxu0 0.0
  %v1289 = vand.u32 %v602, 4294901760
  %1290 = vmatmul.mubr.f32.gmra.mrb[0].mxu0 %v1289
  %v1291 = vpop.f32.mrb[0].mxu0
  %v1292 = vadd.f32 %v1165, %v1291
  %v1293 = vpop.f32.mrb[0].mxu0
  %v1294 = vadd.f32 %v1167, %v1293
  %1295 = vdwg.mxu0
  %v1296 = vand.u32 %v609, 4294901760
  %1297 = vmatprep.subr.mxu0 %v1296
  %v1298 = vand.u32 %v606, 4294901760
  %1299 = vmatpush1.msra.mxu0 %v1298
  %1300 = vmatprep.subr.mxu0 0.0
  %1301 = vmatpush1.msra.mxu0 0.0
  %1302 = vmatprep.subr.mxu0 0.0
  %1303 = vmatpush1.msra.mxu0 0.0
  %1304 = vmatprep.subr.mxu0 0.0
  %1305 = vmatpush1.msra.mxu0 0.0
  %1306 = vmatprep.subr.mxu0 0.0
  %1307 = vmatpush1.msra.mxu0 0.0
  %1308 = vmatprep.subr.mxu0 0.0
  %1309 = vmatpush1.msra.mxu0 0.0
  %1310 = vmatprep.subr.mxu0 0.0
  %1311 = vmatpush1.msra.mxu0 0.0
  %1312 = vmatprep.subr.mxu0 0.0
  %1313 = vmatpush1.msra.mxu0 0.0
  %1314 = vmatprep.subr.mxu0 0.0
  %1315 = vmatpush1.msra.mxu0 0.0
  %1316 = vmatprep.subr.mxu0 0.0
  %1317 = vmatpush1.msra.mxu0 0.0
  %1318 = vmatprep.subr.mxu0 0.0
  %1319 = vmatpush1.msra.mxu0 0.0
  %1320 = vmatprep.subr.mxu0 0.0
  %1321 = vmatpush1.msra.mxu0 0.0
  %1322 = vmatprep.subr.mxu0 0.0
  %1323 = vmatpush1.msra.mxu0 0.0
  %1324 = vmatprep.subr.mxu0 0.0
  %1325 = vmatpush1.msra.mxu0 0.0
  %1326 = vmatprep.subr.mxu0 0.0
  %1327 = vmatpush1.msra.mxu0 0.0
  %1328 = vmatprep.subr.mxu0 0.0
  %1329 = vmatpush1.msra.mxu0 0.0
  %1330 = vmatprep.subr.mxu0 0.0
  %1331 = vmatpush1.msra.mxu0 0.0
  %1332 = vmatprep.subr.mxu0 0.0
  %1333 = vmatpush1.msra.mxu0 0.0
  %1334 = vmatprep.subr.mxu0 0.0
  %1335 = vmatpush1.msra.mxu0 0.0
  %1336 = vmatprep.subr.mxu0 0.0
  %1337 = vmatpush1.msra.mxu0 0.0
  %1338 = vmatprep.subr.mxu0 0.0
  %1339 = vmatpush1.msra.mxu0 0.0
  %1340 = vmatprep.subr.mxu0 0.0
  %1341 = vmatpush1.msra.mxu0 0.0
  %1342 = vmatprep.subr.mxu0 0.0
  %1343 = vmatpush1.msra.mxu0 0.0
  %1344 = vmatprep.subr.mxu0 0.0
  %1345 = vmatpush1.msra.mxu0 0.0
  %1346 = vmatprep.subr.mxu0 0.0
  %1347 = vmatpush1.msra.mxu0 0.0
  %1348 = vmatprep.subr.mxu0 0.0
  %1349 = vmatpush1.msra.mxu0 0.0
  %1350 = vmatprep.subr.mxu0 0.0
  %1351 = vmatpush1.msra.mxu0 0.0
  %1352 = vmatprep.subr.mxu0 0.0
  %1353 = vmatpush1.msra.mxu0 0.0
  %1354 = vmatprep.subr.mxu0 0.0
  %1355 = vmatpush1.msra.mxu0 0.0
  %1356 = vmatprep.subr.mxu0 0.0
  %1357 = vmatpush1.msra.mxu0 0.0
  %1358 = vmatprep.subr.mxu0 0.0
  %1359 = vmatpush1.msra.mxu0 0.0
  %1360 = vmatprep.subr.mxu0 0.0
  %1361 = vmatpush1.msra.mxu0 0.0
  %1362 = vmatprep.mubr.f32.mxu0 0.0
  %v1363 = vand.u32 %v581, 4294901760
  %1364 = vmatmul.mubr.f32.gmra.mrb[0].mxu0 %v1363
  %v1365 = vpop.f32.mrb[0].mxu0
  %v1366 = vadd.f32 %v1243, %v1365
  %v1367 = vpop.f32.mrb[0].mxu0
  %v1368 = vadd.f32 %v1245, %v1367
  %1369 = vmatprep.mubr.f32.mxu0 0.0
  %v1370 = vand.u32 %v584, 4294901760
  %1371 = vmatmul.mubr.f32.gmra.mrb[0].mxu0 %v1370
  %v1372 = vpop.f32.mrb[0].mxu0
  %v1373 = vadd.f32 %v1250, %v1372
  %v1374 = vpop.f32.mrb[0].mxu0
  %v1375 = vadd.f32 %v1252, %v1374
  %1376 = vmatprep.mubr.f32.mxu0 0.0
  %v1377 = vand.u32 %v587, 4294901760
  %1378 = vmatmul.mubr.f32.gmra.mrb[0].mxu0 %v1377
  %v1379 = vpop.f32.mrb[0].mxu0
  %v1380 = vadd.f32 %v1257, %v1379
  %v1381 = vpop.f32.mrb[0].mxu0
  %v1382 = vadd.f32 %v1259, %v1381
  %1383 = vmatprep.mubr.f32.mxu0 0.0
  %v1384 = vand.u32 %v590, 4294901760
  %1385 = vmatmul.mubr.f32.gmra.mrb[0].mxu0 %v1384
  %v1386 = vpop.f32.mrb[0].mxu0
  %v1387 = vadd.f32 %v1264, %v1386
  %v1388 = vpop.f32.mrb[0].mxu0
  %v1389 = vadd.f32 %v1266, %v1388
  %1390 = vmatprep.mubr.f32.mxu0 0.0
  %v1391 = vand.u32 %v593, 4294901760
  %1392 = vmatmul.mubr.f32.gmra.mrb[0].mxu0 %v1391
  %v1393 = vpop.f32.mrb[0].mxu0
  %v1394 = vadd.f32 %v1271, %v1393
  %v1395 = vpop.f32.mrb[0].mxu0
  %v1396 = vadd.f32 %v1273, %v1395
  %1397 = vmatprep.mubr.f32.mxu0 0.0
  %v1398 = vand.u32 %v596, 4294901760
  %1399 = vmatmul.mubr.f32.gmra.mrb[0].mxu0 %v1398
  %v1400 = vpop.f32.mrb[0].mxu0
  %v1401 = vadd.f32 %v1278, %v1400
  %v1402 = vpop.f32.mrb[0].mxu0
  %v1403 = vadd.f32 %v1280, %v1402
  %1404 = vmatprep.mubr.f32.mxu0 0.0
  %v1405 = vand.u32 %v599, 4294901760
  %1406 = vmatmul.mubr.f32.gmra.mrb[0].mxu0 %v1405
  %v1407 = vpop.f32.mrb[0].mxu0
  %v1408 = vadd.f32 %v1285, %v1407
  %v1409 = vpop.f32.mrb[0].mxu0
  %v1410 = vadd.f32 %v1287, %v1409
  %1411 = vmatprep.mubr.f32.mxu0 0.0
  %v1412 = vand.u32 %v602, 4294901760
  %1413 = vmatmul.mubr.f32.gmra.mrb[0].mxu0 %v1412
  %v1414 = vpop.f32.mrb[0].mxu0
  %v1415 = vadd.f32 %v1292, %v1414
  %v1416 = vpop.f32.mrb[0].mxu0
  %v1417 = vadd.f32 %v1294, %v1416
  %1418 = vdwg.mxu0
  %1419 = vrot.lane.b32.xlu0 %v1380, 127
  %v1420 = vpop.permute.xlu0 %1419
  %1421 = vrot.lane.b32.xlu0 %v1387, 127
  %v1422 = vpop.permute.xlu0 %1421
  %1423 = vrot.lane.b32.xlu0 %v1382, 127
  %v1424 = vpop.permute.xlu0 %1423
  %1425 = vrot.lane.b32.xlu0 %v1389, 127
  %v1426 = vpop.permute.xlu0 %1425
  %vm1427 = vcmp.lt.s32.totalorder %v41, 127
  %v1428 = vsel %vm1427, %v1420, %v1424
  %v1429 = vsel %vm1427, %v1422, %v1426
  %v1430 = vsel %vm1427, %v1424, %v1420
  %v1431 = vsel %vm1427, %v1426, %v1422
  %v1432 = vsel %vm67, 1, 0
  %v1433 = vsel %vm68, 1, 0
  %vm1434 = vcmp.eq.s32.totalorder %v1432, 1
  %vm1435 = vcmp.eq.s32.totalorder %v1433, 1
  %v1436 = vsel %vm1434, %v1428, 0.0
  %v1437 = vsel %vm1435, %v1430, 0.0
  %v1438 = vsel %vm1434, %v1429, 0.0
  %v1439 = vsel %vm1435, %v1431, 0.0
  %v1440 = vadd.f32 %v1366, %v1436
  %v1441 = vadd.f32 %v1368, %v1437
  %v1442 = vadd.f32 %v1373, %v1438
  %v1443 = vadd.f32 %v1375, %v1439
  %1444 = vrot.lane.b32.xlu0 %v1394, 112
  %v1445 = vpop.permute.xlu0 %1444
  %1446 = vrot.lane.b32.xlu0 %v1401, 112
  %v1447 = vpop.permute.xlu0 %1446
  %1448 = vrot.lane.b32.xlu0 %v1396, 112
  %v1449 = vpop.permute.xlu0 %1448
  %1450 = vrot.lane.b32.xlu0 %v1403, 112
  %v1451 = vpop.permute.xlu0 %1450
  %vm1452 = vcmp.lt.s32.totalorder %v41, 112
  %v1453 = vsel %vm1452, %v1445, %v1449
  %v1454 = vsel %vm1452, %v1447, %v1451
  %v1455 = vsel %vm1452, %v1449, %v1445
  %v1456 = vsel %vm1452, %v1451, %v1447
  %v1457 = vsel %vm69, 1, 0
  %v1458 = vsel %vm70, 1, 0
  %vm1459 = vcmp.eq.s32.totalorder %v1457, 1
  %vm1460 = vcmp.eq.s32.totalorder %v1458, 1
  %v1461 = vsel %vm1459, %v1453, 0.0
  %v1462 = vsel %vm1460, %v1455, 0.0
  %v1463 = vsel %vm1459, %v1454, 0.0
  %v1464 = vsel %vm1460, %v1456, 0.0
  %v1465 = vadd.f32 %v1440, %v1461
  %v1466 = vadd.f32 %v1441, %v1462
  %v1467 = vadd.f32 %v1442, %v1463
  %v1468 = vadd.f32 %v1443, %v1464
  %1469 = vrot.lane.b32.xlu0 %v1408, 111
  %v1470 = vpop.permute.xlu0 %1469
  %1471 = vrot.lane.b32.xlu0 %v1415, 111
  %v1472 = vpop.permute.xlu0 %1471
  %1473 = vrot.lane.b32.xlu0 %v1410, 111
  %v1474 = vpop.permute.xlu0 %1473
  %1475 = vrot.lane.b32.xlu0 %v1417, 111
  %v1476 = vpop.permute.xlu0 %1475
  %vm1477 = vcmp.lt.s32.totalorder %v41, 111
  %v1478 = vsel %vm1477, %v1470, %v1474
  %v1479 = vsel %vm1477, %v1472, %v1476
  %v1480 = vsel %vm1477, %v1474, %v1470
  %v1481 = vsel %vm1477, %v1476, %v1472
  %v1482 = vsel %vm71, 1, 0
  %v1483 = vsel %vm72, 1, 0
  %vm1484 = vcmp.eq.s32.totalorder %v1482, 1
  %vm1485 = vcmp.eq.s32.totalorder %v1483, 1
  %v1486 = vsel %vm1484, %v1478, 0.0
  %v1487 = vsel %vm1485, %v1480, 0.0
  %v1488 = vsel %vm1484, %v1479, 0.0
  %v1489 = vsel %vm1485, %v1481, 0.0
  %v1490 = vadd.f32 %v1465, %v1486
  %v1491 = vadd.f32 %v1466, %v1487
  %v1492 = vadd.f32 %v1467, %v1488
  %v1493 = vadd.f32 %v1468, %v1489
  %1495 = vset.pattern.permute.xlu0 0
  %1496 = vperm.xlu0 %1495, %v21
  %v1497 = vpop.permute.xlu0 %1496
  %1500 = vset.pattern.permute.xlu0 0
  %1501 = vperm.xlu0 %1500, %v22
  %v1502 = vpop.permute.xlu0 %1501
  %v1504 = vadd.f32 %v1490, %v1497
  %v1505 = vadd.f32 %v1491, %v1497
  %v1506 = vadd.f32 %v1492, %v1502
  %v1507 = vadd.f32 %v1493, %v1502
  %v1508 = vmax.f32 %v1504, 0.0
  %v1509 = vmax.f32 %v1505, 0.0
  %v1510 = vmax.f32 %v1506, 0.0
  %v1511 = vmax.f32 %v1507, 0.0
  %1513 = vset.pattern.permute.xlu0 0
  %1514 = vperm.xlu0 %1513, %v23
  %v1515 = vpop.permute.xlu0 %1514
  %1518 = vset.pattern.permute.xlu0 0
  %1519 = vperm.xlu0 %1518, %v24
  %v1520 = vpop.permute.xlu0 %1519
  %1523 = vset.pattern.permute.xlu0 0
  %1524 = vperm.xlu0 %1523, %v25
  %v1525 = vpop.permute.xlu0 %1524
  %1528 = vset.pattern.permute.xlu0 0
  %1529 = vperm.xlu0 %1528, %v26
  %v1530 = vpop.permute.xlu0 %1529
  %v1533 = vsel %vm82, %v36, 0
  %v1536 = vsel %vm82, %v37, 0
  %v1539 = vsel %vm82, %v38, 0
  %v1542 = vsel %vm82, %v39, 0
  %v1544 = vand.u32 %v1509, 4294901760
  %1545 = vmatprep.subr.mxu0 %v1544
  %v1546 = vand.u32 %v1508, 4294901760
  %1547 = vmatpush1.msra.mxu0 %v1546
  %v1548 = vand.u32 %v1511, 4294901760
  %1549 = vmatprep.subr.mxu0 %v1548
  %v1550 = vand.u32 %v1510, 4294901760
  %1551 = vmatpush1.msra.mxu0 %v1550
  %1552 = vmatprep.subr.mxu0 0.0
  %1553 = vmatpush1.msra.mxu0 0.0
  %1554 = vmatprep.subr.mxu0 0.0
  %1555 = vmatpush1.msra.mxu0 0.0
  %1556 = vmatprep.subr.mxu0 0.0
  %1557 = vmatpush1.msra.mxu0 0.0
  %1558 = vmatprep.subr.mxu0 0.0
  %1559 = vmatpush1.msra.mxu0 0.0
  %1560 = vmatprep.subr.mxu0 0.0
  %1561 = vmatpush1.msra.mxu0 0.0
  %1562 = vmatprep.subr.mxu0 0.0
  %1563 = vmatpush1.msra.mxu0 0.0
  %1564 = vmatprep.subr.mxu0 0.0
  %1565 = vmatpush1.msra.mxu0 0.0
  %1566 = vmatprep.subr.mxu0 0.0
  %1567 = vmatpush1.msra.mxu0 0.0
  %1568 = vmatprep.subr.mxu0 0.0
  %1569 = vmatpush1.msra.mxu0 0.0
  %1570 = vmatprep.subr.mxu0 0.0
  %1571 = vmatpush1.msra.mxu0 0.0
  %1572 = vmatprep.subr.mxu0 0.0
  %1573 = vmatpush1.msra.mxu0 0.0
  %1574 = vmatprep.subr.mxu0 0.0
  %1575 = vmatpush1.msra.mxu0 0.0
  %1576 = vmatprep.subr.mxu0 0.0
  %1577 = vmatpush1.msra.mxu0 0.0
  %1578 = vmatprep.subr.mxu0 0.0
  %1579 = vmatpush1.msra.mxu0 0.0
  %1580 = vmatprep.subr.mxu0 0.0
  %1581 = vmatpush1.msra.mxu0 0.0
  %1582 = vmatprep.subr.mxu0 0.0
  %1583 = vmatpush1.msra.mxu0 0.0
  %1584 = vmatprep.subr.mxu0 0.0
  %1585 = vmatpush1.msra.mxu0 0.0
  %1586 = vmatprep.subr.mxu0 0.0
  %1587 = vmatpush1.msra.mxu0 0.0
  %1588 = vmatprep.subr.mxu0 0.0
  %1589 = vmatpush1.msra.mxu0 0.0
  %1590 = vmatprep.subr.mxu0 0.0
  %1591 = vmatpush1.msra.mxu0 0.0
  %1592 = vmatprep.subr.mxu0 0.0
  %1593 = vmatpush1.msra.mxu0 0.0
  %1594 = vmatprep.subr.mxu0 0.0
  %1595 = vmatpush1.msra.mxu0 0.0
  %1596 = vmatprep.subr.mxu0 0.0
  %1597 = vmatpush1.msra.mxu0 0.0
  %1598 = vmatprep.subr.mxu0 0.0
  %1599 = vmatpush1.msra.mxu0 0.0
  %1600 = vmatprep.subr.mxu0 0.0
  %1601 = vmatpush1.msra.mxu0 0.0
  %1602 = vmatprep.subr.mxu0 0.0
  %1603 = vmatpush1.msra.mxu0 0.0
  %1604 = vmatprep.subr.mxu0 0.0
  %1605 = vmatpush1.msra.mxu0 0.0
  %1606 = vmatprep.subr.mxu0 0.0
  %1607 = vmatpush1.msra.mxu0 0.0
  %1608 = vmatprep.subr.mxu0 0.0
  %1609 = vmatpush1.msra.mxu0 0.0
  %1610 = vmatprep.subr.mxu0 0.0
  %1611 = vmatpush1.msra.mxu0 0.0
  %1612 = vmatprep.mubr.f32.mxu0 0.0
  %v1613 = vand.u32 %v1533, 4294901760
  %v1614 = vsub.f32 %v1533, %v1613
  %v1615 = vand.u32 %v1614, 4294901760
  %v1616 = vsub.f32 %v1614, %v1615
  %v1617 = vand.u32 %v1616, 4294901760
  %1618 = vmatmul.mubr.f32.gmra.mrb[0].mxu0 %v1617
  %v1619 = vpop.f32.mrb[0].mxu0
  %v1620 = vadd.f32 %v1515, %v1619
  %v1621 = vpop.f32.mrb[0].mxu0
  %v1622 = vadd.f32 %v1515, %v1621
  %1623 = vmatprep.mubr.f32.mxu0 0.0
  %v1624 = vand.u32 %v1536, 4294901760
  %v1625 = vsub.f32 %v1536, %v1624
  %v1626 = vand.u32 %v1625, 4294901760
  %v1627 = vsub.f32 %v1625, %v1626
  %v1628 = vand.u32 %v1627, 4294901760
  %1629 = vmatmul.mubr.f32.gmra.mrb[0].mxu0 %v1628
  %v1630 = vpop.f32.mrb[0].mxu0
  %v1631 = vadd.f32 %v1520, %v1630
  %v1632 = vpop.f32.mrb[0].mxu0
  %v1633 = vadd.f32 %v1520, %v1632
  %1634 = vmatprep.mubr.f32.mxu0 0.0
  %v1635 = vand.u32 %v1539, 4294901760
  %v1636 = vsub.f32 %v1539, %v1635
  %v1637 = vand.u32 %v1636, 4294901760
  %v1638 = vsub.f32 %v1636, %v1637
  %v1639 = vand.u32 %v1638, 4294901760
  %1640 = vmatmul.mubr.f32.gmra.mrb[0].mxu0 %v1639
  %v1641 = vpop.f32.mrb[0].mxu0
  %v1642 = vadd.f32 %v1525, %v1641
  %v1643 = vpop.f32.mrb[0].mxu0
  %v1644 = vadd.f32 %v1525, %v1643
  %1645 = vmatprep.mubr.f32.mxu0 0.0
  %v1646 = vand.u32 %v1542, 4294901760
  %v1647 = vsub.f32 %v1542, %v1646
  %v1648 = vand.u32 %v1647, 4294901760
  %v1649 = vsub.f32 %v1647, %v1648
  %v1650 = vand.u32 %v1649, 4294901760
  %1651 = vmatmul.mubr.f32.gmra.mrb[0].mxu0 %v1650
  %v1652 = vpop.f32.mrb[0].mxu0
  %v1653 = vadd.f32 %v1530, %v1652
  %v1654 = vpop.f32.mrb[0].mxu0
  %v1655 = vadd.f32 %v1530, %v1654
  %1656 = vdwg.mxu0
  %v1657 = vand.u32 %v1509, 4294901760
  %v1658 = vsub.f32 %v1509, %v1657
  %v1659 = vand.u32 %v1658, 4294901760
  %v1660 = vsub.f32 %v1658, %v1659
  %v1661 = vand.u32 %v1660, 4294901760
  %1662 = vmatprep.subr.mxu0 %v1661
  %v1663 = vand.u32 %v1508, 4294901760
  %v1664 = vsub.f32 %v1508, %v1663
  %v1665 = vand.u32 %v1664, 4294901760
  %v1666 = vsub.f32 %v1664, %v1665
  %v1667 = vand.u32 %v1666, 4294901760
  %1668 = vmatpush1.msra.mxu0 %v1667
  %v1669 = vand.u32 %v1511, 4294901760
  %v1670 = vsub.f32 %v1511, %v1669
  %v1671 = vand.u32 %v1670, 4294901760
  %v1672 = vsub.f32 %v1670, %v1671
  %v1673 = vand.u32 %v1672, 4294901760
  %1674 = vmatprep.subr.mxu0 %v1673
  %v1675 = vand.u32 %v1510, 4294901760
  %v1676 = vsub.f32 %v1510, %v1675
  %v1677 = vand.u32 %v1676, 4294901760
  %v1678 = vsub.f32 %v1676, %v1677
  %v1679 = vand.u32 %v1678, 4294901760
  %1680 = vmatpush1.msra.mxu0 %v1679
  %1681 = vmatprep.subr.mxu0 0.0
  %1682 = vmatpush1.msra.mxu0 0.0
  %1683 = vmatprep.subr.mxu0 0.0
  %1684 = vmatpush1.msra.mxu0 0.0
  %1685 = vmatprep.subr.mxu0 0.0
  %1686 = vmatpush1.msra.mxu0 0.0
  %1687 = vmatprep.subr.mxu0 0.0
  %1688 = vmatpush1.msra.mxu0 0.0
  %1689 = vmatprep.subr.mxu0 0.0
  %1690 = vmatpush1.msra.mxu0 0.0
  %1691 = vmatprep.subr.mxu0 0.0
  %1692 = vmatpush1.msra.mxu0 0.0
  %1693 = vmatprep.subr.mxu0 0.0
  %1694 = vmatpush1.msra.mxu0 0.0
  %1695 = vmatprep.subr.mxu0 0.0
  %1696 = vmatpush1.msra.mxu0 0.0
  %1697 = vmatprep.subr.mxu0 0.0
  %1698 = vmatpush1.msra.mxu0 0.0
  %1699 = vmatprep.subr.mxu0 0.0
  %1700 = vmatpush1.msra.mxu0 0.0
  %1701 = vmatprep.subr.mxu0 0.0
  %1702 = vmatpush1.msra.mxu0 0.0
  %1703 = vmatprep.subr.mxu0 0.0
  %1704 = vmatpush1.msra.mxu0 0.0
  %1705 = vmatprep.subr.mxu0 0.0
  %1706 = vmatpush1.msra.mxu0 0.0
  %1707 = vmatprep.subr.mxu0 0.0
  %1708 = vmatpush1.msra.mxu0 0.0
  %1709 = vmatprep.subr.mxu0 0.0
  %1710 = vmatpush1.msra.mxu0 0.0
  %1711 = vmatprep.subr.mxu0 0.0
  %1712 = vmatpush1.msra.mxu0 0.0
  %1713 = vmatprep.subr.mxu0 0.0
  %1714 = vmatpush1.msra.mxu0 0.0
  %1715 = vmatprep.subr.mxu0 0.0
  %1716 = vmatpush1.msra.mxu0 0.0
  %1717 = vmatprep.subr.mxu0 0.0
  %1718 = vmatpush1.msra.mxu0 0.0
  %1719 = vmatprep.subr.mxu0 0.0
  %1720 = vmatpush1.msra.mxu0 0.0
  %1721 = vmatprep.subr.mxu0 0.0
  %1722 = vmatpush1.msra.mxu0 0.0
  %1723 = vmatprep.subr.mxu0 0.0
  %1724 = vmatpush1.msra.mxu0 0.0
  %1725 = vmatprep.subr.mxu0 0.0
  %1726 = vmatpush1.msra.mxu0 0.0
  %1727 = vmatprep.subr.mxu0 0.0
  %1728 = vmatpush1.msra.mxu0 0.0
  %1729 = vmatprep.subr.mxu0 0.0
  %1730 = vmatpush1.msra.mxu0 0.0
  %1731 = vmatprep.subr.mxu0 0.0
  %1732 = vmatpush1.msra.mxu0 0.0
  %1733 = vmatprep.subr.mxu0 0.0
  %1734 = vmatpush1.msra.mxu0 0.0
  %1735 = vmatprep.subr.mxu0 0.0
  %1736 = vmatpush1.msra.mxu0 0.0
  %1737 = vmatprep.subr.mxu0 0.0
  %1738 = vmatpush1.msra.mxu0 0.0
  %1739 = vmatprep.subr.mxu0 0.0
  %1740 = vmatpush1.msra.mxu0 0.0
  %1741 = vmatprep.mubr.f32.mxu0 0.0
  %v1742 = vand.u32 %v1533, 4294901760
  %1743 = vmatmul.mubr.f32.gmra.mrb[0].mxu0 %v1742
  %v1744 = vpop.f32.mrb[0].mxu0
  %v1745 = vadd.f32 %v1620, %v1744
  %v1746 = vpop.f32.mrb[0].mxu0
  %v1747 = vadd.f32 %v1622, %v1746
  %1748 = vmatprep.mubr.f32.mxu0 0.0
  %v1749 = vand.u32 %v1536, 4294901760
  %1750 = vmatmul.mubr.f32.gmra.mrb[0].mxu0 %v1749
  %v1751 = vpop.f32.mrb[0].mxu0
  %v1752 = vadd.f32 %v1631, %v1751
  %v1753 = vpop.f32.mrb[0].mxu0
  %v1754 = vadd.f32 %v1633, %v1753
  %1755 = vmatprep.mubr.f32.mxu0 0.0
  %v1756 = vand.u32 %v1539, 4294901760
  %1757 = vmatmul.mubr.f32.gmra.mrb[0].mxu0 %v1756
  %v1758 = vpop.f32.mrb[0].mxu0
  %v1759 = vadd.f32 %v1642, %v1758
  %v1760 = vpop.f32.mrb[0].mxu0
  %v1761 = vadd.f32 %v1644, %v1760
  %1762 = vmatprep.mubr.f32.mxu0 0.0
  %v1763 = vand.u32 %v1542, 4294901760
  %1764 = vmatmul.mubr.f32.gmra.mrb[0].mxu0 %v1763
  %v1765 = vpop.f32.mrb[0].mxu0
  %v1766 = vadd.f32 %v1653, %v1765
  %v1767 = vpop.f32.mrb[0].mxu0
  %v1768 = vadd.f32 %v1655, %v1767
  %1769 = vdwg.mxu0
  %v1770 = vand.u32 %v1509, 4294901760
  %v1771 = vsub.f32 %v1509, %v1770
  %1772 = vmatprep.subr.mxu0 %v1771
  %v1773 = vand.u32 %v1508, 4294901760
  %v1774 = vsub.f32 %v1508, %v1773
  %1775 = vmatpush1.msra.mxu0 %v1774
  %v1776 = vand.u32 %v1511, 4294901760
  %v1777 = vsub.f32 %v1511, %v1776
  %1778 = vmatprep.subr.mxu0 %v1777
  %v1779 = vand.u32 %v1510, 4294901760
  %v1780 = vsub.f32 %v1510, %v1779
  %1781 = vmatpush1.msra.mxu0 %v1780
  %1782 = vmatprep.subr.mxu0 0.0
  %1783 = vmatpush1.msra.mxu0 0.0
  %1784 = vmatprep.subr.mxu0 0.0
  %1785 = vmatpush1.msra.mxu0 0.0
  %1786 = vmatprep.subr.mxu0 0.0
  %1787 = vmatpush1.msra.mxu0 0.0
  %1788 = vmatprep.subr.mxu0 0.0
  %1789 = vmatpush1.msra.mxu0 0.0
  %1790 = vmatprep.subr.mxu0 0.0
  %1791 = vmatpush1.msra.mxu0 0.0
  %1792 = vmatprep.subr.mxu0 0.0
  %1793 = vmatpush1.msra.mxu0 0.0
  %1794 = vmatprep.subr.mxu0 0.0
  %1795 = vmatpush1.msra.mxu0 0.0
  %1796 = vmatprep.subr.mxu0 0.0
  %1797 = vmatpush1.msra.mxu0 0.0
  %1798 = vmatprep.subr.mxu0 0.0
  %1799 = vmatpush1.msra.mxu0 0.0
  %1800 = vmatprep.subr.mxu0 0.0
  %1801 = vmatpush1.msra.mxu0 0.0
  %1802 = vmatprep.subr.mxu0 0.0
  %1803 = vmatpush1.msra.mxu0 0.0
  %1804 = vmatprep.subr.mxu0 0.0
  %1805 = vmatpush1.msra.mxu0 0.0
  %1806 = vmatprep.subr.mxu0 0.0
  %1807 = vmatpush1.msra.mxu0 0.0
  %1808 = vmatprep.subr.mxu0 0.0
  %1809 = vmatpush1.msra.mxu0 0.0
  %1810 = vmatprep.subr.mxu0 0.0
  %1811 = vmatpush1.msra.mxu0 0.0
  %1812 = vmatprep.subr.mxu0 0.0
  %1813 = vmatpush1.msra.mxu0 0.0
  %1814 = vmatprep.subr.mxu0 0.0
  %1815 = vmatpush1.msra.mxu0 0.0
  %1816 = vmatprep.subr.mxu0 0.0
  %1817 = vmatpush1.msra.mxu0 0.0
  %1818 = vmatprep.subr.mxu0 0.0
  %1819 = vmatpush1.msra.mxu0 0.0
  %1820 = vmatprep.subr.mxu0 0.0
  %1821 = vmatpush1.msra.mxu0 0.0
  %1822 = vmatprep.subr.mxu0 0.0
  %1823 = vmatpush1.msra.mxu0 0.0
  %1824 = vmatprep.subr.mxu0 0.0
  %1825 = vmatpush1.msra.mxu0 0.0
  %1826 = vmatprep.subr.mxu0 0.0
  %1827 = vmatpush1.msra.mxu0 0.0
  %1828 = vmatprep.subr.mxu0 0.0
  %1829 = vmatpush1.msra.mxu0 0.0
  %1830 = vmatprep.subr.mxu0 0.0
  %1831 = vmatpush1.msra.mxu0 0.0
  %1832 = vmatprep.subr.mxu0 0.0
  %1833 = vmatpush1.msra.mxu0 0.0
  %1834 = vmatprep.subr.mxu0 0.0
  %1835 = vmatpush1.msra.mxu0 0.0
  %1836 = vmatprep.subr.mxu0 0.0
  %1837 = vmatpush1.msra.mxu0 0.0
  %1838 = vmatprep.subr.mxu0 0.0
  %1839 = vmatpush1.msra.mxu0 0.0
  %1840 = vmatprep.subr.mxu0 0.0
  %1841 = vmatpush1.msra.mxu0 0.0
  %1842 = vmatprep.mubr.f32.mxu0 0.0
  %v1843 = vand.u32 %v1533, 4294901760
  %v1844 = vsub.f32 %v1533, %v1843
  %1845 = vmatmul.mubr.f32.gmra.mrb[0].mxu0 %v1844
  %v1846 = vpop.f32.mrb[0].mxu0
  %v1847 = vadd.f32 %v1745, %v1846
  %v1848 = vpop.f32.mrb[0].mxu0
  %v1849 = vadd.f32 %v1747, %v1848
  %1850 = vmatprep.mubr.f32.mxu0 0.0
  %v1851 = vand.u32 %v1536, 4294901760
  %v1852 = vsub.f32 %v1536, %v1851
  %1853 = vmatmul.mubr.f32.gmra.mrb[0].mxu0 %v1852
  %v1854 = vpop.f32.mrb[0].mxu0
  %v1855 = vadd.f32 %v1752, %v1854
  %v1856 = vpop.f32.mrb[0].mxu0
  %v1857 = vadd.f32 %v1754, %v1856
  %1858 = vmatprep.mubr.f32.mxu0 0.0
  %v1859 = vand.u32 %v1539, 4294901760
  %v1860 = vsub.f32 %v1539, %v1859
  %1861 = vmatmul.mubr.f32.gmra.mrb[0].mxu0 %v1860
  %v1862 = vpop.f32.mrb[0].mxu0
  %v1863 = vadd.f32 %v1759, %v1862
  %v1864 = vpop.f32.mrb[0].mxu0
  %v1865 = vadd.f32 %v1761, %v1864
  %1866 = vmatprep.mubr.f32.mxu0 0.0
  %v1867 = vand.u32 %v1542, 4294901760
  %v1868 = vsub.f32 %v1542, %v1867
  %1869 = vmatmul.mubr.f32.gmra.mrb[0].mxu0 %v1868
  %v1870 = vpop.f32.mrb[0].mxu0
  %v1871 = vadd.f32 %v1766, %v1870
  %v1872 = vpop.f32.mrb[0].mxu0
  %v1873 = vadd.f32 %v1768, %v1872
  %1874 = vdwg.mxu0
  %v1875 = vand.u32 %v1509, 4294901760
  %1876 = vmatprep.subr.mxu0 %v1875
  %v1877 = vand.u32 %v1508, 4294901760
  %1878 = vmatpush1.msra.mxu0 %v1877
  %v1879 = vand.u32 %v1511, 4294901760
  %1880 = vmatprep.subr.mxu0 %v1879
  %v1881 = vand.u32 %v1510, 4294901760
  %1882 = vmatpush1.msra.mxu0 %v1881
  %1883 = vmatprep.subr.mxu0 0.0
  %1884 = vmatpush1.msra.mxu0 0.0
  %1885 = vmatprep.subr.mxu0 0.0
  %1886 = vmatpush1.msra.mxu0 0.0
  %1887 = vmatprep.subr.mxu0 0.0
  %1888 = vmatpush1.msra.mxu0 0.0
  %1889 = vmatprep.subr.mxu0 0.0
  %1890 = vmatpush1.msra.mxu0 0.0
  %1891 = vmatprep.subr.mxu0 0.0
  %1892 = vmatpush1.msra.mxu0 0.0
  %1893 = vmatprep.subr.mxu0 0.0
  %1894 = vmatpush1.msra.mxu0 0.0
  %1895 = vmatprep.subr.mxu0 0.0
  %1896 = vmatpush1.msra.mxu0 0.0
  %1897 = vmatprep.subr.mxu0 0.0
  %1898 = vmatpush1.msra.mxu0 0.0
  %1899 = vmatprep.subr.mxu0 0.0
  %1900 = vmatpush1.msra.mxu0 0.0
  %1901 = vmatprep.subr.mxu0 0.0
  %1902 = vmatpush1.msra.mxu0 0.0
  %1903 = vmatprep.subr.mxu0 0.0
  %1904 = vmatpush1.msra.mxu0 0.0
  %1905 = vmatprep.subr.mxu0 0.0
  %1906 = vmatpush1.msra.mxu0 0.0
  %1907 = vmatprep.subr.mxu0 0.0
  %1908 = vmatpush1.msra.mxu0 0.0
  %1909 = vmatprep.subr.mxu0 0.0
  %1910 = vmatpush1.msra.mxu0 0.0
  %1911 = vmatprep.subr.mxu0 0.0
  %1912 = vmatpush1.msra.mxu0 0.0
  %1913 = vmatprep.subr.mxu0 0.0
  %1914 = vmatpush1.msra.mxu0 0.0
  %1915 = vmatprep.subr.mxu0 0.0
  %1916 = vmatpush1.msra.mxu0 0.0
  %1917 = vmatprep.subr.mxu0 0.0
  %1918 = vmatpush1.msra.mxu0 0.0
  %1919 = vmatprep.subr.mxu0 0.0
  %1920 = vmatpush1.msra.mxu0 0.0
  %1921 = vmatprep.subr.mxu0 0.0
  %1922 = vmatpush1.msra.mxu0 0.0
  %1923 = vmatprep.subr.mxu0 0.0
  %1924 = vmatpush1.msra.mxu0 0.0
  %1925 = vmatprep.subr.mxu0 0.0
  %1926 = vmatpush1.msra.mxu0 0.0
  %1927 = vmatprep.subr.mxu0 0.0
  %1928 = vmatpush1.msra.mxu0 0.0
  %1929 = vmatprep.subr.mxu0 0.0
  %1930 = vmatpush1.msra.mxu0 0.0
  %1931 = vmatprep.subr.mxu0 0.0
  %1932 = vmatpush1.msra.mxu0 0.0
  %1933 = vmatprep.subr.mxu0 0.0
  %1934 = vmatpush1.msra.mxu0 0.0
  %1935 = vmatprep.subr.mxu0 0.0
  %1936 = vmatpush1.msra.mxu0 0.0
  %1937 = vmatprep.subr.mxu0 0.0
  %1938 = vmatpush1.msra.mxu0 0.0
  %1939 = vmatprep.subr.mxu0 0.0
  %1940 = vmatpush1.msra.mxu0 0.0
  %1941 = vmatprep.subr.mxu0 0.0
  %1942 = vmatpush1.msra.mxu0 0.0
  %1943 = vmatprep.mubr.f32.mxu0 0.0
  %v1944 = vand.u32 %v1533, 4294901760
  %v1945 = vsub.f32 %v1533, %v1944
  %v1946 = vand.u32 %v1945, 4294901760
  %1947 = vmatmul.mubr.f32.gmra.mrb[0].mxu0 %v1946
  %v1948 = vpop.f32.mrb[0].mxu0
  %v1949 = vadd.f32 %v1847, %v1948
  %v1950 = vpop.f32.mrb[0].mxu0
  %v1951 = vadd.f32 %v1849, %v1950
  %1952 = vmatprep.mubr.f32.mxu0 0.0
  %v1953 = vand.u32 %v1536, 4294901760
  %v1954 = vsub.f32 %v1536, %v1953
  %v1955 = vand.u32 %v1954, 4294901760
  %1956 = vmatmul.mubr.f32.gmra.mrb[0].mxu0 %v1955
  %v1957 = vpop.f32.mrb[0].mxu0
  %v1958 = vadd.f32 %v1855, %v1957
  %v1959 = vpop.f32.mrb[0].mxu0
  %v1960 = vadd.f32 %v1857, %v1959
  %1961 = vmatprep.mubr.f32.mxu0 0.0
  %v1962 = vand.u32 %v1539, 4294901760
  %v1963 = vsub.f32 %v1539, %v1962
  %v1964 = vand.u32 %v1963, 4294901760
  %1965 = vmatmul.mubr.f32.gmra.mrb[0].mxu0 %v1964
  %v1966 = vpop.f32.mrb[0].mxu0
  %v1967 = vadd.f32 %v1863, %v1966
  %v1968 = vpop.f32.mrb[0].mxu0
  %v1969 = vadd.f32 %v1865, %v1968
  %1970 = vmatprep.mubr.f32.mxu0 0.0
  %v1971 = vand.u32 %v1542, 4294901760
  %v1972 = vsub.f32 %v1542, %v1971
  %v1973 = vand.u32 %v1972, 4294901760
  %1974 = vmatmul.mubr.f32.gmra.mrb[0].mxu0 %v1973
  %v1975 = vpop.f32.mrb[0].mxu0
  %v1976 = vadd.f32 %v1871, %v1975
  %v1977 = vpop.f32.mrb[0].mxu0
  %v1978 = vadd.f32 %v1873, %v1977
  %1979 = vdwg.mxu0
  %v1980 = vand.u32 %v1509, 4294901760
  %v1981 = vsub.f32 %v1509, %v1980
  %v1982 = vand.u32 %v1981, 4294901760
  %1983 = vmatprep.subr.mxu0 %v1982
  %v1984 = vand.u32 %v1508, 4294901760
  %v1985 = vsub.f32 %v1508, %v1984
  %v1986 = vand.u32 %v1985, 4294901760
  %1987 = vmatpush1.msra.mxu0 %v1986
  %v1988 = vand.u32 %v1511, 4294901760
  %v1989 = vsub.f32 %v1511, %v1988
  %v1990 = vand.u32 %v1989, 4294901760
  %1991 = vmatprep.subr.mxu0 %v1990
  %v1992 = vand.u32 %v1510, 4294901760
  %v1993 = vsub.f32 %v1510, %v1992
  %v1994 = vand.u32 %v1993, 4294901760
  %1995 = vmatpush1.msra.mxu0 %v1994
  %1996 = vmatprep.subr.mxu0 0.0
  %1997 = vmatpush1.msra.mxu0 0.0
  %1998 = vmatprep.subr.mxu0 0.0
  %1999 = vmatpush1.msra.mxu0 0.0
  %2000 = vmatprep.subr.mxu0 0.0
  %2001 = vmatpush1.msra.mxu0 0.0
  %2002 = vmatprep.subr.mxu0 0.0
  %2003 = vmatpush1.msra.mxu0 0.0
  %2004 = vmatprep.subr.mxu0 0.0
  %2005 = vmatpush1.msra.mxu0 0.0
  %2006 = vmatprep.subr.mxu0 0.0
  %2007 = vmatpush1.msra.mxu0 0.0
  %2008 = vmatprep.subr.mxu0 0.0
  %2009 = vmatpush1.msra.mxu0 0.0
  %2010 = vmatprep.subr.mxu0 0.0
  %2011 = vmatpush1.msra.mxu0 0.0
  %2012 = vmatprep.subr.mxu0 0.0
  %2013 = vmatpush1.msra.mxu0 0.0
  %2014 = vmatprep.subr.mxu0 0.0
  %2015 = vmatpush1.msra.mxu0 0.0
  %2016 = vmatprep.subr.mxu0 0.0
  %2017 = vmatpush1.msra.mxu0 0.0
  %2018 = vmatprep.subr.mxu0 0.0
  %2019 = vmatpush1.msra.mxu0 0.0
  %2020 = vmatprep.subr.mxu0 0.0
  %2021 = vmatpush1.msra.mxu0 0.0
  %2022 = vmatprep.subr.mxu0 0.0
  %2023 = vmatpush1.msra.mxu0 0.0
  %2024 = vmatprep.subr.mxu0 0.0
  %2025 = vmatpush1.msra.mxu0 0.0
  %2026 = vmatprep.subr.mxu0 0.0
  %2027 = vmatpush1.msra.mxu0 0.0
  %2028 = vmatprep.subr.mxu0 0.0
  %2029 = vmatpush1.msra.mxu0 0.0
  %2030 = vmatprep.subr.mxu0 0.0
  %2031 = vmatpush1.msra.mxu0 0.0
  %2032 = vmatprep.subr.mxu0 0.0
  %2033 = vmatpush1.msra.mxu0 0.0
  %2034 = vmatprep.subr.mxu0 0.0
  %2035 = vmatpush1.msra.mxu0 0.0
  %2036 = vmatprep.subr.mxu0 0.0
  %2037 = vmatpush1.msra.mxu0 0.0
  %2038 = vmatprep.subr.mxu0 0.0
  %2039 = vmatpush1.msra.mxu0 0.0
  %2040 = vmatprep.subr.mxu0 0.0
  %2041 = vmatpush1.msra.mxu0 0.0
  %2042 = vmatprep.subr.mxu0 0.0
  %2043 = vmatpush1.msra.mxu0 0.0
  %2044 = vmatprep.subr.mxu0 0.0
  %2045 = vmatpush1.msra.mxu0 0.0
  %2046 = vmatprep.subr.mxu0 0.0
  %2047 = vmatpush1.msra.mxu0 0.0
  %2048 = vmatprep.subr.mxu0 0.0
  %2049 = vmatpush1.msra.mxu0 0.0
  %2050 = vmatprep.subr.mxu0 0.0
  %2051 = vmatpush1.msra.mxu0 0.0
  %2052 = vmatprep.subr.mxu0 0.0
  %2053 = vmatpush1.msra.mxu0 0.0
  %2054 = vmatprep.subr.mxu0 0.0
  %2055 = vmatpush1.msra.mxu0 0.0
  %2056 = vmatprep.mubr.f32.mxu0 0.0
  %v2057 = vand.u32 %v1533, 4294901760
  %2058 = vmatmul.mubr.f32.gmra.mrb[0].mxu0 %v2057
  %v2059 = vpop.f32.mrb[0].mxu0
  %v2060 = vadd.f32 %v1949, %v2059
  %v2061 = vpop.f32.mrb[0].mxu0
  %v2062 = vadd.f32 %v1951, %v2061
  %2063 = vmatprep.mubr.f32.mxu0 0.0
  %v2064 = vand.u32 %v1536, 4294901760
  %2065 = vmatmul.mubr.f32.gmra.mrb[0].mxu0 %v2064
  %v2066 = vpop.f32.mrb[0].mxu0
  %v2067 = vadd.f32 %v1958, %v2066
  %v2068 = vpop.f32.mrb[0].mxu0
  %v2069 = vadd.f32 %v1960, %v2068
  %2070 = vmatprep.mubr.f32.mxu0 0.0
  %v2071 = vand.u32 %v1539, 4294901760
  %2072 = vmatmul.mubr.f32.gmra.mrb[0].mxu0 %v2071
  %v2073 = vpop.f32.mrb[0].mxu0
  %v2074 = vadd.f32 %v1967, %v2073
  %v2075 = vpop.f32.mrb[0].mxu0
  %v2076 = vadd.f32 %v1969, %v2075
  %2077 = vmatprep.mubr.f32.mxu0 0.0
  %v2078 = vand.u32 %v1542, 4294901760
  %2079 = vmatmul.mubr.f32.gmra.mrb[0].mxu0 %v2078
  %v2080 = vpop.f32.mrb[0].mxu0
  %v2081 = vadd.f32 %v1976, %v2080
  %v2082 = vpop.f32.mrb[0].mxu0
  %v2083 = vadd.f32 %v1978, %v2082
  %2084 = vdwg.mxu0
  %v2085 = vand.u32 %v1509, 4294901760
  %2086 = vmatprep.subr.mxu0 %v2085
  %v2087 = vand.u32 %v1508, 4294901760
  %2088 = vmatpush1.msra.mxu0 %v2087
  %v2089 = vand.u32 %v1511, 4294901760
  %2090 = vmatprep.subr.mxu0 %v2089
  %v2091 = vand.u32 %v1510, 4294901760
  %2092 = vmatpush1.msra.mxu0 %v2091
  %2093 = vmatprep.subr.mxu0 0.0
  %2094 = vmatpush1.msra.mxu0 0.0
  %2095 = vmatprep.subr.mxu0 0.0
  %2096 = vmatpush1.msra.mxu0 0.0
  %2097 = vmatprep.subr.mxu0 0.0
  %2098 = vmatpush1.msra.mxu0 0.0
  %2099 = vmatprep.subr.mxu0 0.0
  %2100 = vmatpush1.msra.mxu0 0.0
  %2101 = vmatprep.subr.mxu0 0.0
  %2102 = vmatpush1.msra.mxu0 0.0
  %2103 = vmatprep.subr.mxu0 0.0
  %2104 = vmatpush1.msra.mxu0 0.0
  %2105 = vmatprep.subr.mxu0 0.0
  %2106 = vmatpush1.msra.mxu0 0.0
  %2107 = vmatprep.subr.mxu0 0.0
  %2108 = vmatpush1.msra.mxu0 0.0
  %2109 = vmatprep.subr.mxu0 0.0
  %2110 = vmatpush1.msra.mxu0 0.0
  %2111 = vmatprep.subr.mxu0 0.0
  %2112 = vmatpush1.msra.mxu0 0.0
  %2113 = vmatprep.subr.mxu0 0.0
  %2114 = vmatpush1.msra.mxu0 0.0
  %2115 = vmatprep.subr.mxu0 0.0
  %2116 = vmatpush1.msra.mxu0 0.0
  %2117 = vmatprep.subr.mxu0 0.0
  %2118 = vmatpush1.msra.mxu0 0.0
  %2119 = vmatprep.subr.mxu0 0.0
  %2120 = vmatpush1.msra.mxu0 0.0
  %2121 = vmatprep.subr.mxu0 0.0
  %2122 = vmatpush1.msra.mxu0 0.0
  %2123 = vmatprep.subr.mxu0 0.0
  %2124 = vmatpush1.msra.mxu0 0.0
  %2125 = vmatprep.subr.mxu0 0.0
  %2126 = vmatpush1.msra.mxu0 0.0
  %2127 = vmatprep.subr.mxu0 0.0
  %2128 = vmatpush1.msra.mxu0 0.0
  %2129 = vmatprep.subr.mxu0 0.0
  %2130 = vmatpush1.msra.mxu0 0.0
  %2131 = vmatprep.subr.mxu0 0.0
  %2132 = vmatpush1.msra.mxu0 0.0
  %2133 = vmatprep.subr.mxu0 0.0
  %2134 = vmatpush1.msra.mxu0 0.0
  %2135 = vmatprep.subr.mxu0 0.0
  %2136 = vmatpush1.msra.mxu0 0.0
  %2137 = vmatprep.subr.mxu0 0.0
  %2138 = vmatpush1.msra.mxu0 0.0
  %2139 = vmatprep.subr.mxu0 0.0
  %2140 = vmatpush1.msra.mxu0 0.0
  %2141 = vmatprep.subr.mxu0 0.0
  %2142 = vmatpush1.msra.mxu0 0.0
  %2143 = vmatprep.subr.mxu0 0.0
  %2144 = vmatpush1.msra.mxu0 0.0
  %2145 = vmatprep.subr.mxu0 0.0
  %2146 = vmatpush1.msra.mxu0 0.0
  %2147 = vmatprep.subr.mxu0 0.0
  %2148 = vmatpush1.msra.mxu0 0.0
  %2149 = vmatprep.subr.mxu0 0.0
  %2150 = vmatpush1.msra.mxu0 0.0
  %2151 = vmatprep.subr.mxu0 0.0
  %2152 = vmatpush1.msra.mxu0 0.0
  %2153 = vmatprep.mubr.f32.mxu0 0.0
  %v2154 = vand.u32 %v1533, 4294901760
  %2155 = vmatmul.mubr.f32.gmra.mrb[0].mxu0 %v2154
  %v2156 = vpop.f32.mrb[0].mxu0
  %v2157 = vadd.f32 %v2060, %v2156
  %v2158 = vpop.f32.mrb[0].mxu0
  %v2159 = vadd.f32 %v2062, %v2158
  %2160 = vmatprep.mubr.f32.mxu0 0.0
  %v2161 = vand.u32 %v1536, 4294901760
  %2162 = vmatmul.mubr.f32.gmra.mrb[0].mxu0 %v2161
  %v2163 = vpop.f32.mrb[0].mxu0
  %v2164 = vadd.f32 %v2067, %v2163
  %v2165 = vpop.f32.mrb[0].mxu0
  %v2166 = vadd.f32 %v2069, %v2165
  %2167 = vmatprep.mubr.f32.mxu0 0.0
  %v2168 = vand.u32 %v1539, 4294901760
  %2169 = vmatmul.mubr.f32.gmra.mrb[0].mxu0 %v2168
  %v2170 = vpop.f32.mrb[0].mxu0
  %v2171 = vadd.f32 %v2074, %v2170
  %v2172 = vpop.f32.mrb[0].mxu0
  %v2173 = vadd.f32 %v2076, %v2172
  %2174 = vmatprep.mubr.f32.mxu0 0.0
  %v2175 = vand.u32 %v1542, 4294901760
  %2176 = vmatmul.mubr.f32.gmra.mrb[0].mxu0 %v2175
  %v2177 = vpop.f32.mrb[0].mxu0
  %v2178 = vadd.f32 %v2081, %v2177
  %v2179 = vpop.f32.mrb[0].mxu0
  %v2180 = vadd.f32 %v2083, %v2179
  %2181 = vdwg.mxu0
  %v2182 = vmax.f32 %v2157, 0.0
  %v2183 = vmax.f32 %v2159, 0.0
  %v2184 = vmax.f32 %v2164, 0.0
  %v2185 = vmax.f32 %v2166, 0.0
  %v2186 = vmax.f32 %v2171, 0.0
  %v2187 = vmax.f32 %v2173, 0.0
  %v2188 = vmax.f32 %v2178, 0.0
  %v2189 = vmax.f32 %v2180, 0.0
  %2190 = vst [vmem:[%s5] sm:$0xff] %v2182
  %2191 = vst [vmem:[%s5 + $0x8] sm:$0xff] %v2183
  %2192 = vst [vmem:[%s5 + $0x10] sm:$0xff] %v2184
  %2193 = vst [vmem:[%s5 + $0x18] sm:$0xff] %v2185
  %2194 = vst [vmem:[%s5 + $0x20] sm:$0xff] %v2186
  %2195 = vst [vmem:[%s5 + $0x28] sm:$0xff] %v2187
  %2196 = vst [vmem:[%s5 + $0x30] sm:$0xff] %v2188
  %2197 = vst [vmem:[%s5 + $0x38] sm:$0xff] %v2189
  %s2198 = scalar_lea.vmem %s0, 32
  %v2199 = vld [vmem:[%s2198] sm:$0xff]
  %v2200 = vld [vmem:[%s2198 + $0x8] sm:$0xff]
  %v2201 = vld [vmem:[%s2198 + $0x10] sm:$0xff]
  %v2202 = vld [vmem:[%s2198 + $0x18] sm:$0xff]
  %v2203 = vand.u32 %v2200, 4294901760
  %2204 = vmatprep.subr.mxu0 %v2203
  %v2205 = vand.u32 %v2199, 4294901760
  %2206 = vmatpush1.msra.mxu0 %v2205
  %v2207 = vand.u32 %v2202, 4294901760
  %2208 = vmatprep.subr.mxu0 %v2207
  %v2209 = vand.u32 %v2201, 4294901760
  %2210 = vmatpush1.msra.mxu0 %v2209
  %2211 = vmatprep.subr.mxu0 0.0
  %2212 = vmatpush1.msra.mxu0 0.0
  %2213 = vmatprep.subr.mxu0 0.0
  %2214 = vmatpush1.msra.mxu0 0.0
  %2215 = vmatprep.subr.mxu0 0.0
  %2216 = vmatpush1.msra.mxu0 0.0
  %2217 = vmatprep.subr.mxu0 0.0
  %2218 = vmatpush1.msra.mxu0 0.0
  %2219 = vmatprep.subr.mxu0 0.0
  %2220 = vmatpush1.msra.mxu0 0.0
  %2221 = vmatprep.subr.mxu0 0.0
  %2222 = vmatpush1.msra.mxu0 0.0
  %2223 = vmatprep.subr.mxu0 0.0
  %2224 = vmatpush1.msra.mxu0 0.0
  %2225 = vmatprep.subr.mxu0 0.0
  %2226 = vmatpush1.msra.mxu0 0.0
  %2227 = vmatprep.subr.mxu0 0.0
  %2228 = vmatpush1.msra.mxu0 0.0
  %2229 = vmatprep.subr.mxu0 0.0
  %2230 = vmatpush1.msra.mxu0 0.0
  %2231 = vmatprep.subr.mxu0 0.0
  %2232 = vmatpush1.msra.mxu0 0.0
  %2233 = vmatprep.subr.mxu0 0.0
  %2234 = vmatpush1.msra.mxu0 0.0
  %2235 = vmatprep.subr.mxu0 0.0
  %2236 = vmatpush1.msra.mxu0 0.0
  %2237 = vmatprep.subr.mxu0 0.0
  %2238 = vmatpush1.msra.mxu0 0.0
  %2239 = vmatprep.subr.mxu0 0.0
  %2240 = vmatpush1.msra.mxu0 0.0
  %2241 = vmatprep.subr.mxu0 0.0
  %2242 = vmatpush1.msra.mxu0 0.0
  %2243 = vmatprep.subr.mxu0 0.0
  %2244 = vmatpush1.msra.mxu0 0.0
  %2245 = vmatprep.subr.mxu0 0.0
  %2246 = vmatpush1.msra.mxu0 0.0
  %2247 = vmatprep.subr.mxu0 0.0
  %2248 = vmatpush1.msra.mxu0 0.0
  %2249 = vmatprep.subr.mxu0 0.0
  %2250 = vmatpush1.msra.mxu0 0.0
  %2251 = vmatprep.subr.mxu0 0.0
  %2252 = vmatpush1.msra.mxu0 0.0
  %2253 = vmatprep.subr.mxu0 0.0
  %2254 = vmatpush1.msra.mxu0 0.0
  %2255 = vmatprep.subr.mxu0 0.0
  %2256 = vmatpush1.msra.mxu0 0.0
  %2257 = vmatprep.subr.mxu0 0.0
  %2258 = vmatpush1.msra.mxu0 0.0
  %2259 = vmatprep.subr.mxu0 0.0
  %2260 = vmatpush1.msra.mxu0 0.0
  %2261 = vmatprep.subr.mxu0 0.0
  %2262 = vmatpush1.msra.mxu0 0.0
  %2263 = vmatprep.subr.mxu0 0.0
  %2264 = vmatpush1.msra.mxu0 0.0
  %2265 = vmatprep.subr.mxu0 0.0
  %2266 = vmatpush1.msra.mxu0 0.0
  %2267 = vmatprep.subr.mxu0 0.0
  %2268 = vmatpush1.msra.mxu0 0.0
  %2269 = vmatprep.subr.mxu0 0.0
  %2270 = vmatpush1.msra.mxu0 0.0
  %2271 = vmatprep.mubr.f32.mxu0 0.0
  %v2272 = vand.u32 %v84, 4294901760
  %v2273 = vsub.f32 %v84, %v2272
  %v2274 = vand.u32 %v2273, 4294901760
  %v2275 = vsub.f32 %v2273, %v2274
  %v2276 = vand.u32 %v2275, 4294901760
  %2277 = vmatmul.mubr.f32.gmra.mrb[0].mxu0 %v2276
  %v2278 = vpop.f32.mrb[0].mxu0
  %v2279 = vadd.f32 %v80, %v2278
  %v2280 = vpop.f32.mrb[0].mxu0
  %v2281 = vadd.f32 %v80, %v2280
  %2282 = vdwg.mxu0
  %v2283 = vand.u32 %v2200, 4294901760
  %v2284 = vsub.f32 %v2200, %v2283
  %v2285 = vand.u32 %v2284, 4294901760
  %v2286 = vsub.f32 %v2284, %v2285
  %v2287 = vand.u32 %v2286, 4294901760
  %2288 = vmatprep.subr.mxu0 %v2287
  %v2289 = vand.u32 %v2199, 4294901760
  %v2290 = vsub.f32 %v2199, %v2289
  %v2291 = vand.u32 %v2290, 4294901760
  %v2292 = vsub.f32 %v2290, %v2291
  %v2293 = vand.u32 %v2292, 4294901760
  %2294 = vmatpush1.msra.mxu0 %v2293
  %v2295 = vand.u32 %v2202, 4294901760
  %v2296 = vsub.f32 %v2202, %v2295
  %v2297 = vand.u32 %v2296, 4294901760
  %v2298 = vsub.f32 %v2296, %v2297
  %v2299 = vand.u32 %v2298, 4294901760
  %2300 = vmatprep.subr.mxu0 %v2299
  %v2301 = vand.u32 %v2201, 4294901760
  %v2302 = vsub.f32 %v2201, %v2301
  %v2303 = vand.u32 %v2302, 4294901760
  %v2304 = vsub.f32 %v2302, %v2303
  %v2305 = vand.u32 %v2304, 4294901760
  %2306 = vmatpush1.msra.mxu0 %v2305
  %2307 = vmatprep.subr.mxu0 0.0
  %2308 = vmatpush1.msra.mxu0 0.0
  %2309 = vmatprep.subr.mxu0 0.0
  %2310 = vmatpush1.msra.mxu0 0.0
  %2311 = vmatprep.subr.mxu0 0.0
  %2312 = vmatpush1.msra.mxu0 0.0
  %2313 = vmatprep.subr.mxu0 0.0
  %2314 = vmatpush1.msra.mxu0 0.0
  %2315 = vmatprep.subr.mxu0 0.0
  %2316 = vmatpush1.msra.mxu0 0.0
  %2317 = vmatprep.subr.mxu0 0.0
  %2318 = vmatpush1.msra.mxu0 0.0
  %2319 = vmatprep.subr.mxu0 0.0
  %2320 = vmatpush1.msra.mxu0 0.0
  %2321 = vmatprep.subr.mxu0 0.0
  %2322 = vmatpush1.msra.mxu0 0.0
  %2323 = vmatprep.subr.mxu0 0.0
  %2324 = vmatpush1.msra.mxu0 0.0
  %2325 = vmatprep.subr.mxu0 0.0
  %2326 = vmatpush1.msra.mxu0 0.0
  %2327 = vmatprep.subr.mxu0 0.0
  %2328 = vmatpush1.msra.mxu0 0.0
  %2329 = vmatprep.subr.mxu0 0.0
  %2330 = vmatpush1.msra.mxu0 0.0
  %2331 = vmatprep.subr.mxu0 0.0
  %2332 = vmatpush1.msra.mxu0 0.0
  %2333 = vmatprep.subr.mxu0 0.0
  %2334 = vmatpush1.msra.mxu0 0.0
  %2335 = vmatprep.subr.mxu0 0.0
  %2336 = vmatpush1.msra.mxu0 0.0
  %2337 = vmatprep.subr.mxu0 0.0
  %2338 = vmatpush1.msra.mxu0 0.0
  %2339 = vmatprep.subr.mxu0 0.0
  %2340 = vmatpush1.msra.mxu0 0.0
  %2341 = vmatprep.subr.mxu0 0.0
  %2342 = vmatpush1.msra.mxu0 0.0
  %2343 = vmatprep.subr.mxu0 0.0
  %2344 = vmatpush1.msra.mxu0 0.0
  %2345 = vmatprep.subr.mxu0 0.0
  %2346 = vmatpush1.msra.mxu0 0.0
  %2347 = vmatprep.subr.mxu0 0.0
  %2348 = vmatpush1.msra.mxu0 0.0
  %2349 = vmatprep.subr.mxu0 0.0
  %2350 = vmatpush1.msra.mxu0 0.0
  %2351 = vmatprep.subr.mxu0 0.0
  %2352 = vmatpush1.msra.mxu0 0.0
  %2353 = vmatprep.subr.mxu0 0.0
  %2354 = vmatpush1.msra.mxu0 0.0
  %2355 = vmatprep.subr.mxu0 0.0
  %2356 = vmatpush1.msra.mxu0 0.0
  %2357 = vmatprep.subr.mxu0 0.0
  %2358 = vmatpush1.msra.mxu0 0.0
  %2359 = vmatprep.subr.mxu0 0.0
  %2360 = vmatpush1.msra.mxu0 0.0
  %2361 = vmatprep.subr.mxu0 0.0
  %2362 = vmatpush1.msra.mxu0 0.0
  %2363 = vmatprep.subr.mxu0 0.0
  %2364 = vmatpush1.msra.mxu0 0.0
  %2365 = vmatprep.subr.mxu0 0.0
  %2366 = vmatpush1.msra.mxu0 0.0
  %2367 = vmatprep.mubr.f32.mxu0 0.0
  %v2368 = vand.u32 %v84, 4294901760
  %2369 = vmatmul.mubr.f32.gmra.mrb[0].mxu0 %v2368
  %v2370 = vpop.f32.mrb[0].mxu0
  %v2371 = vadd.f32 %v2279, %v2370
  %v2372 = vpop.f32.mrb[0].mxu0
  %v2373 = vadd.f32 %v2281, %v2372
  %2374 = vdwg.mxu0
  %v2375 = vand.u32 %v2200, 4294901760
  %v2376 = vsub.f32 %v2200, %v2375
  %2377 = vmatprep.subr.mxu0 %v2376
  %v2378 = vand.u32 %v2199, 4294901760
  %v2379 = vsub.f32 %v2199, %v2378
  %2380 = vmatpush1.msra.mxu0 %v2379
  %v2381 = vand.u32 %v2202, 4294901760
  %v2382 = vsub.f32 %v2202, %v2381
  %2383 = vmatprep.subr.mxu0 %v2382
  %v2384 = vand.u32 %v2201, 4294901760
  %v2385 = vsub.f32 %v2201, %v2384
  %2386 = vmatpush1.msra.mxu0 %v2385
  %2387 = vmatprep.subr.mxu0 0.0
  %2388 = vmatpush1.msra.mxu0 0.0
  %2389 = vmatprep.subr.mxu0 0.0
  %2390 = vmatpush1.msra.mxu0 0.0
  %2391 = vmatprep.subr.mxu0 0.0
  %2392 = vmatpush1.msra.mxu0 0.0
  %2393 = vmatprep.subr.mxu0 0.0
  %2394 = vmatpush1.msra.mxu0 0.0
  %2395 = vmatprep.subr.mxu0 0.0
  %2396 = vmatpush1.msra.mxu0 0.0
  %2397 = vmatprep.subr.mxu0 0.0
  %2398 = vmatpush1.msra.mxu0 0.0
  %2399 = vmatprep.subr.mxu0 0.0
  %2400 = vmatpush1.msra.mxu0 0.0
  %2401 = vmatprep.subr.mxu0 0.0
  %2402 = vmatpush1.msra.mxu0 0.0
  %2403 = vmatprep.subr.mxu0 0.0
  %2404 = vmatpush1.msra.mxu0 0.0
  %2405 = vmatprep.subr.mxu0 0.0
  %2406 = vmatpush1.msra.mxu0 0.0
  %2407 = vmatprep.subr.mxu0 0.0
  %2408 = vmatpush1.msra.mxu0 0.0
  %2409 = vmatprep.subr.mxu0 0.0
  %2410 = vmatpush1.msra.mxu0 0.0
  %2411 = vmatprep.subr.mxu0 0.0
  %2412 = vmatpush1.msra.mxu0 0.0
  %2413 = vmatprep.subr.mxu0 0.0
  %2414 = vmatpush1.msra.mxu0 0.0
  %2415 = vmatprep.subr.mxu0 0.0
  %2416 = vmatpush1.msra.mxu0 0.0
  %2417 = vmatprep.subr.mxu0 0.0
  %2418 = vmatpush1.msra.mxu0 0.0
  %2419 = vmatprep.subr.mxu0 0.0
  %2420 = vmatpush1.msra.mxu0 0.0
  %2421 = vmatprep.subr.mxu0 0.0
  %2422 = vmatpush1.msra.mxu0 0.0
  %2423 = vmatprep.subr.mxu0 0.0
  %2424 = vmatpush1.msra.mxu0 0.0
  %2425 = vmatprep.subr.mxu0 0.0
  %2426 = vmatpush1.msra.mxu0 0.0
  %2427 = vmatprep.subr.mxu0 0.0
  %2428 = vmatpush1.msra.mxu0 0.0
  %2429 = vmatprep.subr.mxu0 0.0
  %2430 = vmatpush1.msra.mxu0 0.0
  %2431 = vmatprep.subr.mxu0 0.0
  %2432 = vmatpush1.msra.mxu0 0.0
  %2433 = vmatprep.subr.mxu0 0.0
  %2434 = vmatpush1.msra.mxu0 0.0
  %2435 = vmatprep.subr.mxu0 0.0
  %2436 = vmatpush1.msra.mxu0 0.0
  %2437 = vmatprep.subr.mxu0 0.0
  %2438 = vmatpush1.msra.mxu0 0.0
  %2439 = vmatprep.subr.mxu0 0.0
  %2440 = vmatpush1.msra.mxu0 0.0
  %2441 = vmatprep.subr.mxu0 0.0
  %2442 = vmatpush1.msra.mxu0 0.0
  %2443 = vmatprep.subr.mxu0 0.0
  %2444 = vmatpush1.msra.mxu0 0.0
  %2445 = vmatprep.subr.mxu0 0.0
  %2446 = vmatpush1.msra.mxu0 0.0
  %2447 = vmatprep.mubr.f32.mxu0 0.0
  %v2448 = vand.u32 %v84, 4294901760
  %v2449 = vsub.f32 %v84, %v2448
  %2450 = vmatmul.mubr.f32.gmra.mrb[0].mxu0 %v2449
  %v2451 = vpop.f32.mrb[0].mxu0
  %v2452 = vadd.f32 %v2371, %v2451
  %v2453 = vpop.f32.mrb[0].mxu0
  %v2454 = vadd.f32 %v2373, %v2453
  %2455 = vdwg.mxu0
  %v2456 = vand.u32 %v2200, 4294901760
  %2457 = vmatprep.subr.mxu0 %v2456
  %v2458 = vand.u32 %v2199, 4294901760
  %2459 = vmatpush1.msra.mxu0 %v2458
  %v2460 = vand.u32 %v2202, 4294901760
  %2461 = vmatprep.subr.mxu0 %v2460
  %v2462 = vand.u32 %v2201, 4294901760
  %2463 = vmatpush1.msra.mxu0 %v2462
  %2464 = vmatprep.subr.mxu0 0.0
  %2465 = vmatpush1.msra.mxu0 0.0
  %2466 = vmatprep.subr.mxu0 0.0
  %2467 = vmatpush1.msra.mxu0 0.0
  %2468 = vmatprep.subr.mxu0 0.0
  %2469 = vmatpush1.msra.mxu0 0.0
  %2470 = vmatprep.subr.mxu0 0.0
  %2471 = vmatpush1.msra.mxu0 0.0
  %2472 = vmatprep.subr.mxu0 0.0
  %2473 = vmatpush1.msra.mxu0 0.0
  %2474 = vmatprep.subr.mxu0 0.0
  %2475 = vmatpush1.msra.mxu0 0.0
  %2476 = vmatprep.subr.mxu0 0.0
  %2477 = vmatpush1.msra.mxu0 0.0
  %2478 = vmatprep.subr.mxu0 0.0
  %2479 = vmatpush1.msra.mxu0 0.0
  %2480 = vmatprep.subr.mxu0 0.0
  %2481 = vmatpush1.msra.mxu0 0.0
  %2482 = vmatprep.subr.mxu0 0.0
  %2483 = vmatpush1.msra.mxu0 0.0
  %2484 = vmatprep.subr.mxu0 0.0
  %2485 = vmatpush1.msra.mxu0 0.0
  %2486 = vmatprep.subr.mxu0 0.0
  %2487 = vmatpush1.msra.mxu0 0.0
  %2488 = vmatprep.subr.mxu0 0.0
  %2489 = vmatpush1.msra.mxu0 0.0
  %2490 = vmatprep.subr.mxu0 0.0
  %2491 = vmatpush1.msra.mxu0 0.0
  %2492 = vmatprep.subr.mxu0 0.0
  %2493 = vmatpush1.msra.mxu0 0.0
  %2494 = vmatprep.subr.mxu0 0.0
  %2495 = vmatpush1.msra.mxu0 0.0
  %2496 = vmatprep.subr.mxu0 0.0
  %2497 = vmatpush1.msra.mxu0 0.0
  %2498 = vmatprep.subr.mxu0 0.0
  %2499 = vmatpush1.msra.mxu0 0.0
  %2500 = vmatprep.subr.mxu0 0.0
  %2501 = vmatpush1.msra.mxu0 0.0
  %2502 = vmatprep.subr.mxu0 0.0
  %2503 = vmatpush1.msra.mxu0 0.0
  %2504 = vmatprep.subr.mxu0 0.0
  %2505 = vmatpush1.msra.mxu0 0.0
  %2506 = vmatprep.subr.mxu0 0.0
  %2507 = vmatpush1.msra.mxu0 0.0
  %2508 = vmatprep.subr.mxu0 0.0
  %2509 = vmatpush1.msra.mxu0 0.0
  %2510 = vmatprep.subr.mxu0 0.0
  %2511 = vmatpush1.msra.mxu0 0.0
  %2512 = vmatprep.subr.mxu0 0.0
  %2513 = vmatpush1.msra.mxu0 0.0
  %2514 = vmatprep.subr.mxu0 0.0
  %2515 = vmatpush1.msra.mxu0 0.0
  %2516 = vmatprep.subr.mxu0 0.0
  %2517 = vmatpush1.msra.mxu0 0.0
  %2518 = vmatprep.subr.mxu0 0.0
  %2519 = vmatpush1.msra.mxu0 0.0
  %2520 = vmatprep.subr.mxu0 0.0
  %2521 = vmatpush1.msra.mxu0 0.0
  %2522 = vmatprep.subr.mxu0 0.0
  %2523 = vmatpush1.msra.mxu0 0.0
  %2524 = vmatprep.mubr.f32.mxu0 0.0
  %v2525 = vand.u32 %v84, 4294901760
  %v2526 = vsub.f32 %v84, %v2525
  %v2527 = vand.u32 %v2526, 4294901760
  %2528 = vmatmul.mubr.f32.gmra.mrb[0].mxu0 %v2527
  %v2529 = vpop.f32.mrb[0].mxu0
  %v2530 = vadd.f32 %v2452, %v2529
  %v2531 = vpop.f32.mrb[0].mxu0
  %v2532 = vadd.f32 %v2454, %v2531
  %2533 = vdwg.mxu0
  %v2534 = vand.u32 %v2200, 4294901760
  %v2535 = vsub.f32 %v2200, %v2534
  %v2536 = vand.u32 %v2535, 4294901760
  %2537 = vmatprep.subr.mxu0 %v2536
  %v2538 = vand.u32 %v2199, 4294901760
  %v2539 = vsub.f32 %v2199, %v2538
  %v2540 = vand.u32 %v2539, 4294901760
  %2541 = vmatpush1.msra.mxu0 %v2540
  %v2542 = vand.u32 %v2202, 4294901760
  %v2543 = vsub.f32 %v2202, %v2542
  %v2544 = vand.u32 %v2543, 4294901760
  %2545 = vmatprep.subr.mxu0 %v2544
  %v2546 = vand.u32 %v2201, 4294901760
  %v2547 = vsub.f32 %v2201, %v2546
  %v2548 = vand.u32 %v2547, 4294901760
  %2549 = vmatpush1.msra.mxu0 %v2548
  %2550 = vmatprep.subr.mxu0 0.0
  %2551 = vmatpush1.msra.mxu0 0.0
  %2552 = vmatprep.subr.mxu0 0.0
  %2553 = vmatpush1.msra.mxu0 0.0
  %2554 = vmatprep.subr.mxu0 0.0
  %2555 = vmatpush1.msra.mxu0 0.0
  %2556 = vmatprep.subr.mxu0 0.0
  %2557 = vmatpush1.msra.mxu0 0.0
  %2558 = vmatprep.subr.mxu0 0.0
  %2559 = vmatpush1.msra.mxu0 0.0
  %2560 = vmatprep.subr.mxu0 0.0
  %2561 = vmatpush1.msra.mxu0 0.0
  %2562 = vmatprep.subr.mxu0 0.0
  %2563 = vmatpush1.msra.mxu0 0.0
  %2564 = vmatprep.subr.mxu0 0.0
  %2565 = vmatpush1.msra.mxu0 0.0
  %2566 = vmatprep.subr.mxu0 0.0
  %2567 = vmatpush1.msra.mxu0 0.0
  %2568 = vmatprep.subr.mxu0 0.0
  %2569 = vmatpush1.msra.mxu0 0.0
  %2570 = vmatprep.subr.mxu0 0.0
  %2571 = vmatpush1.msra.mxu0 0.0
  %2572 = vmatprep.subr.mxu0 0.0
  %2573 = vmatpush1.msra.mxu0 0.0
  %2574 = vmatprep.subr.mxu0 0.0
  %2575 = vmatpush1.msra.mxu0 0.0
  %2576 = vmatprep.subr.mxu0 0.0
  %2577 = vmatpush1.msra.mxu0 0.0
  %2578 = vmatprep.subr.mxu0 0.0
  %2579 = vmatpush1.msra.mxu0 0.0
  %2580 = vmatprep.subr.mxu0 0.0
  %2581 = vmatpush1.msra.mxu0 0.0
  %2582 = vmatprep.subr.mxu0 0.0
  %2583 = vmatpush1.msra.mxu0 0.0
  %2584 = vmatprep.subr.mxu0 0.0
  %2585 = vmatpush1.msra.mxu0 0.0
  %2586 = vmatprep.subr.mxu0 0.0
  %2587 = vmatpush1.msra.mxu0 0.0
  %2588 = vmatprep.subr.mxu0 0.0
  %2589 = vmatpush1.msra.mxu0 0.0
  %2590 = vmatprep.subr.mxu0 0.0
  %2591 = vmatpush1.msra.mxu0 0.0
  %2592 = vmatprep.subr.mxu0 0.0
  %2593 = vmatpush1.msra.mxu0 0.0
  %2594 = vmatprep.subr.mxu0 0.0
  %2595 = vmatpush1.msra.mxu0 0.0
  %2596 = vmatprep.subr.mxu0 0.0
  %2597 = vmatpush1.msra.mxu0 0.0
  %2598 = vmatprep.subr.mxu0 0.0
  %2599 = vmatpush1.msra.mxu0 0.0
  %2600 = vmatprep.subr.mxu0 0.0
  %2601 = vmatpush1.msra.mxu0 0.0
  %2602 = vmatprep.subr.mxu0 0.0
  %2603 = vmatpush1.msra.mxu0 0.0
  %2604 = vmatprep.subr.mxu0 0.0
  %2605 = vmatpush1.msra.mxu0 0.0
  %2606 = vmatprep.subr.mxu0 0.0
  %2607 = vmatpush1.msra.mxu0 0.0
  %2608 = vmatprep.subr.mxu0 0.0
  %2609 = vmatpush1.msra.mxu0 0.0
  %2610 = vmatprep.mubr.f32.mxu0 0.0
  %v2611 = vand.u32 %v84, 4294901760
  %2612 = vmatmul.mubr.f32.gmra.mrb[0].mxu0 %v2611
  %v2613 = vpop.f32.mrb[0].mxu0
  %v2614 = vadd.f32 %v2530, %v2613
  %v2615 = vpop.f32.mrb[0].mxu0
  %v2616 = vadd.f32 %v2532, %v2615
  %2617 = vdwg.mxu0
  %v2618 = vand.u32 %v2200, 4294901760
  %2619 = vmatprep.subr.mxu0 %v2618
  %v2620 = vand.u32 %v2199, 4294901760
  %2621 = vmatpush1.msra.mxu0 %v2620
  %v2622 = vand.u32 %v2202, 4294901760
  %2623 = vmatprep.subr.mxu0 %v2622
  %v2624 = vand.u32 %v2201, 4294901760
  %2625 = vmatpush1.msra.mxu0 %v2624
  %2626 = vmatprep.subr.mxu0 0.0
  %2627 = vmatpush1.msra.mxu0 0.0
  %2628 = vmatprep.subr.mxu0 0.0
  %2629 = vmatpush1.msra.mxu0 0.0
  %2630 = vmatprep.subr.mxu0 0.0
  %2631 = vmatpush1.msra.mxu0 0.0
  %2632 = vmatprep.subr.mxu0 0.0
  %2633 = vmatpush1.msra.mxu0 0.0
  %2634 = vmatprep.subr.mxu0 0.0
  %2635 = vmatpush1.msra.mxu0 0.0
  %2636 = vmatprep.subr.mxu0 0.0
  %2637 = vmatpush1.msra.mxu0 0.0
  %2638 = vmatprep.subr.mxu0 0.0
  %2639 = vmatpush1.msra.mxu0 0.0
  %2640 = vmatprep.subr.mxu0 0.0
  %2641 = vmatpush1.msra.mxu0 0.0
  %2642 = vmatprep.subr.mxu0 0.0
  %2643 = vmatpush1.msra.mxu0 0.0
  %2644 = vmatprep.subr.mxu0 0.0
  %2645 = vmatpush1.msra.mxu0 0.0
  %2646 = vmatprep.subr.mxu0 0.0
  %2647 = vmatpush1.msra.mxu0 0.0
  %2648 = vmatprep.subr.mxu0 0.0
  %2649 = vmatpush1.msra.mxu0 0.0
  %2650 = vmatprep.subr.mxu0 0.0
  %2651 = vmatpush1.msra.mxu0 0.0
  %2652 = vmatprep.subr.mxu0 0.0
  %2653 = vmatpush1.msra.mxu0 0.0
  %2654 = vmatprep.subr.mxu0 0.0
  %2655 = vmatpush1.msra.mxu0 0.0
  %2656 = vmatprep.subr.mxu0 0.0
  %2657 = vmatpush1.msra.mxu0 0.0
  %2658 = vmatprep.subr.mxu0 0.0
  %2659 = vmatpush1.msra.mxu0 0.0
  %2660 = vmatprep.subr.mxu0 0.0
  %2661 = vmatpush1.msra.mxu0 0.0
  %2662 = vmatprep.subr.mxu0 0.0
  %2663 = vmatpush1.msra.mxu0 0.0
  %2664 = vmatprep.subr.mxu0 0.0
  %2665 = vmatpush1.msra.mxu0 0.0
  %2666 = vmatprep.subr.mxu0 0.0
  %2667 = vmatpush1.msra.mxu0 0.0
  %2668 = vmatprep.subr.mxu0 0.0
  %2669 = vmatpush1.msra.mxu0 0.0
  %2670 = vmatprep.subr.mxu0 0.0
  %2671 = vmatpush1.msra.mxu0 0.0
  %2672 = vmatprep.subr.mxu0 0.0
  %2673 = vmatpush1.msra.mxu0 0.0
  %2674 = vmatprep.subr.mxu0 0.0
  %2675 = vmatpush1.msra.mxu0 0.0
  %2676 = vmatprep.subr.mxu0 0.0
  %2677 = vmatpush1.msra.mxu0 0.0
  %2678 = vmatprep.subr.mxu0 0.0
  %2679 = vmatpush1.msra.mxu0 0.0
  %2680 = vmatprep.subr.mxu0 0.0
  %2681 = vmatpush1.msra.mxu0 0.0
  %2682 = vmatprep.subr.mxu0 0.0
  %2683 = vmatpush1.msra.mxu0 0.0
  %2684 = vmatprep.subr.mxu0 0.0
  %2685 = vmatpush1.msra.mxu0 0.0
  %2686 = vmatprep.mubr.f32.mxu0 0.0
  %v2687 = vand.u32 %v84, 4294901760
  %2688 = vmatmul.mubr.f32.gmra.mrb[0].mxu0 %v2687
  %v2689 = vpop.f32.mrb[0].mxu0
  %v2690 = vadd.f32 %v2614, %v2689
  %v2691 = vpop.f32.mrb[0].mxu0
  %v2692 = vadd.f32 %v2616, %v2691
  %2693 = vdwg.mxu0
  %v2694 = vmax.f32 %v2690, 0.0
  %v2695 = vmax.f32 %v2692, 0.0
  %v2697 = vsel %vm604, %v2694, 0
  %v2700 = vsel %vm604, %v2695, 0
  %v2702 = vand.u32 %v2700, 4294901760
  %2703 = vmatprep.subr.mxu0 %v2702
  %v2704 = vand.u32 %v2697, 4294901760
  %2705 = vmatpush1.msra.mxu0 %v2704
  %2706 = vmatprep.subr.mxu0 0.0
  %2707 = vmatpush1.msra.mxu0 0.0
  %2708 = vmatprep.subr.mxu0 0.0
  %2709 = vmatpush1.msra.mxu0 0.0
  %2710 = vmatprep.subr.mxu0 0.0
  %2711 = vmatpush1.msra.mxu0 0.0
  %2712 = vmatprep.subr.mxu0 0.0
  %2713 = vmatpush1.msra.mxu0 0.0
  %2714 = vmatprep.subr.mxu0 0.0
  %2715 = vmatpush1.msra.mxu0 0.0
  %2716 = vmatprep.subr.mxu0 0.0
  %2717 = vmatpush1.msra.mxu0 0.0
  %2718 = vmatprep.subr.mxu0 0.0
  %2719 = vmatpush1.msra.mxu0 0.0
  %2720 = vmatprep.subr.mxu0 0.0
  %2721 = vmatpush1.msra.mxu0 0.0
  %2722 = vmatprep.subr.mxu0 0.0
  %2723 = vmatpush1.msra.mxu0 0.0
  %2724 = vmatprep.subr.mxu0 0.0
  %2725 = vmatpush1.msra.mxu0 0.0
  %2726 = vmatprep.subr.mxu0 0.0
  %2727 = vmatpush1.msra.mxu0 0.0
  %2728 = vmatprep.subr.mxu0 0.0
  %2729 = vmatpush1.msra.mxu0 0.0
  %2730 = vmatprep.subr.mxu0 0.0
  %2731 = vmatpush1.msra.mxu0 0.0
  %2732 = vmatprep.subr.mxu0 0.0
  %2733 = vmatpush1.msra.mxu0 0.0
  %2734 = vmatprep.subr.mxu0 0.0
  %2735 = vmatpush1.msra.mxu0 0.0
  %2736 = vmatprep.subr.mxu0 0.0
  %2737 = vmatpush1.msra.mxu0 0.0
  %2738 = vmatprep.subr.mxu0 0.0
  %2739 = vmatpush1.msra.mxu0 0.0
  %2740 = vmatprep.subr.mxu0 0.0
  %2741 = vmatpush1.msra.mxu0 0.0
  %2742 = vmatprep.subr.mxu0 0.0
  %2743 = vmatpush1.msra.mxu0 0.0
  %2744 = vmatprep.subr.mxu0 0.0
  %2745 = vmatpush1.msra.mxu0 0.0
  %2746 = vmatprep.subr.mxu0 0.0
  %2747 = vmatpush1.msra.mxu0 0.0
  %2748 = vmatprep.subr.mxu0 0.0
  %2749 = vmatpush1.msra.mxu0 0.0
  %2750 = vmatprep.subr.mxu0 0.0
  %2751 = vmatpush1.msra.mxu0 0.0
  %2752 = vmatprep.subr.mxu0 0.0
  %2753 = vmatpush1.msra.mxu0 0.0
  %2754 = vmatprep.subr.mxu0 0.0
  %2755 = vmatpush1.msra.mxu0 0.0
  %2756 = vmatprep.subr.mxu0 0.0
  %2757 = vmatpush1.msra.mxu0 0.0
  %2758 = vmatprep.subr.mxu0 0.0
  %2759 = vmatpush1.msra.mxu0 0.0
  %2760 = vmatprep.subr.mxu0 0.0
  %2761 = vmatpush1.msra.mxu0 0.0
  %2762 = vmatprep.subr.mxu0 0.0
  %2763 = vmatpush1.msra.mxu0 0.0
  %2764 = vmatprep.subr.mxu0 0.0
  %2765 = vmatpush1.msra.mxu0 0.0
  %2766 = vmatprep.subr.mxu0 0.0
  %2767 = vmatpush1.msra.mxu0 0.0
  %2768 = vmatprep.mubr.f32.mxu0 0.0
  %v2769 = vand.u32 %v581, 4294901760
  %v2770 = vsub.f32 %v581, %v2769
  %v2771 = vand.u32 %v2770, 4294901760
  %v2772 = vsub.f32 %v2770, %v2771
  %v2773 = vand.u32 %v2772, 4294901760
  %2774 = vmatmul.mubr.f32.gmra.mrb[0].mxu0 %v2773
  %v2775 = vpop.f32.mrb[0].mxu0
  %v2776 = vadd.f32 0.0, %v2775
  %v2777 = vpop.f32.mrb[0].mxu0
  %v2778 = vadd.f32 0.0, %v2777
  %2779 = vmatprep.mubr.f32.mxu0 0.0
  %v2780 = vand.u32 %v584, 4294901760
  %v2781 = vsub.f32 %v584, %v2780
  %v2782 = vand.u32 %v2781, 4294901760
  %v2783 = vsub.f32 %v2781, %v2782
  %v2784 = vand.u32 %v2783, 4294901760
  %2785 = vmatmul.mubr.f32.gmra.mrb[0].mxu0 %v2784
  %v2786 = vpop.f32.mrb[0].mxu0
  %v2787 = vadd.f32 0.0, %v2786
  %v2788 = vpop.f32.mrb[0].mxu0
  %v2789 = vadd.f32 0.0, %v2788
  %2790 = vmatprep.mubr.f32.mxu0 0.0
  %v2791 = vand.u32 %v587, 4294901760
  %v2792 = vsub.f32 %v587, %v2791
  %v2793 = vand.u32 %v2792, 4294901760
  %v2794 = vsub.f32 %v2792, %v2793
  %v2795 = vand.u32 %v2794, 4294901760
  %2796 = vmatmul.mubr.f32.gmra.mrb[0].mxu0 %v2795
  %v2797 = vpop.f32.mrb[0].mxu0
  %v2798 = vadd.f32 0.0, %v2797
  %v2799 = vpop.f32.mrb[0].mxu0
  %v2800 = vadd.f32 0.0, %v2799
  %2801 = vmatprep.mubr.f32.mxu0 0.0
  %v2802 = vand.u32 %v590, 4294901760
  %v2803 = vsub.f32 %v590, %v2802
  %v2804 = vand.u32 %v2803, 4294901760
  %v2805 = vsub.f32 %v2803, %v2804
  %v2806 = vand.u32 %v2805, 4294901760
  %2807 = vmatmul.mubr.f32.gmra.mrb[0].mxu0 %v2806
  %v2808 = vpop.f32.mrb[0].mxu0
  %v2809 = vadd.f32 0.0, %v2808
  %v2810 = vpop.f32.mrb[0].mxu0
  %v2811 = vadd.f32 0.0, %v2810
  %2812 = vmatprep.mubr.f32.mxu0 0.0
  %v2813 = vand.u32 %v593, 4294901760
  %v2814 = vsub.f32 %v593, %v2813
  %v2815 = vand.u32 %v2814, 4294901760
  %v2816 = vsub.f32 %v2814, %v2815
  %v2817 = vand.u32 %v2816, 4294901760
  %2818 = vmatmul.mubr.f32.gmra.mrb[0].mxu0 %v2817
  %v2819 = vpop.f32.mrb[0].mxu0
  %v2820 = vadd.f32 0.0, %v2819
  %v2821 = vpop.f32.mrb[0].mxu0
  %v2822 = vadd.f32 0.0, %v2821
  %2823 = vmatprep.mubr.f32.mxu0 0.0
  %v2824 = vand.u32 %v596, 4294901760
  %v2825 = vsub.f32 %v596, %v2824
  %v2826 = vand.u32 %v2825, 4294901760
  %v2827 = vsub.f32 %v2825, %v2826
  %v2828 = vand.u32 %v2827, 4294901760
  %2829 = vmatmul.mubr.f32.gmra.mrb[0].mxu0 %v2828
  %v2830 = vpop.f32.mrb[0].mxu0
  %v2831 = vadd.f32 0.0, %v2830
  %v2832 = vpop.f32.mrb[0].mxu0
  %v2833 = vadd.f32 0.0, %v2832
  %2834 = vmatprep.mubr.f32.mxu0 0.0
  %v2835 = vand.u32 %v599, 4294901760
  %v2836 = vsub.f32 %v599, %v2835
  %v2837 = vand.u32 %v2836, 4294901760
  %v2838 = vsub.f32 %v2836, %v2837
  %v2839 = vand.u32 %v2838, 4294901760
  %2840 = vmatmul.mubr.f32.gmra.mrb[0].mxu0 %v2839
  %v2841 = vpop.f32.mrb[0].mxu0
  %v2842 = vadd.f32 0.0, %v2841
  %v2843 = vpop.f32.mrb[0].mxu0
  %v2844 = vadd.f32 0.0, %v2843
  %2845 = vmatprep.mubr.f32.mxu0 0.0
  %v2846 = vand.u32 %v602, 4294901760
  %v2847 = vsub.f32 %v602, %v2846
  %v2848 = vand.u32 %v2847, 4294901760
  %v2849 = vsub.f32 %v2847, %v2848
  %v2850 = vand.u32 %v2849, 4294901760
  %2851 = vmatmul.mubr.f32.gmra.mrb[0].mxu0 %v2850
  %v2852 = vpop.f32.mrb[0].mxu0
  %v2853 = vadd.f32 0.0, %v2852
  %v2854 = vpop.f32.mrb[0].mxu0
  %v2855 = vadd.f32 0.0, %v2854
  %2856 = vdwg.mxu0
  %v2857 = vand.u32 %v2700, 4294901760
  %v2858 = vsub.f32 %v2700, %v2857
  %v2859 = vand.u32 %v2858, 4294901760
  %v2860 = vsub.f32 %v2858, %v2859
  %v2861 = vand.u32 %v2860, 4294901760
  %2862 = vmatprep.subr.mxu0 %v2861
  %v2863 = vand.u32 %v2697, 4294901760
  %v2864 = vsub.f32 %v2697, %v2863
  %v2865 = vand.u32 %v2864, 4294901760
  %v2866 = vsub.f32 %v2864, %v2865
  %v2867 = vand.u32 %v2866, 4294901760
  %2868 = vmatpush1.msra.mxu0 %v2867
  %2869 = vmatprep.subr.mxu0 0.0
  %2870 = vmatpush1.msra.mxu0 0.0
  %2871 = vmatprep.subr.mxu0 0.0
  %2872 = vmatpush1.msra.mxu0 0.0
  %2873 = vmatprep.subr.mxu0 0.0
  %2874 = vmatpush1.msra.mxu0 0.0
  %2875 = vmatprep.subr.mxu0 0.0
  %2876 = vmatpush1.msra.mxu0 0.0
  %2877 = vmatprep.subr.mxu0 0.0
  %2878 = vmatpush1.msra.mxu0 0.0
  %2879 = vmatprep.subr.mxu0 0.0
  %2880 = vmatpush1.msra.mxu0 0.0
  %2881 = vmatprep.subr.mxu0 0.0
  %2882 = vmatpush1.msra.mxu0 0.0
  %2883 = vmatprep.subr.mxu0 0.0
  %2884 = vmatpush1.msra.mxu0 0.0
  %2885 = vmatprep.subr.mxu0 0.0
  %2886 = vmatpush1.msra.mxu0 0.0
  %2887 = vmatprep.subr.mxu0 0.0
  %2888 = vmatpush1.msra.mxu0 0.0
  %2889 = vmatprep.subr.mxu0 0.0
  %2890 = vmatpush1.msra.mxu0 0.0
  %2891 = vmatprep.subr.mxu0 0.0
  %2892 = vmatpush1.msra.mxu0 0.0
  %2893 = vmatprep.subr.mxu0 0.0
  %2894 = vmatpush1.msra.mxu0 0.0
  %2895 = vmatprep.subr.mxu0 0.0
  %2896 = vmatpush1.msra.mxu0 0.0
  %2897 = vmatprep.subr.mxu0 0.0
  %2898 = vmatpush1.msra.mxu0 0.0
  %2899 = vmatprep.subr.mxu0 0.0
  %2900 = vmatpush1.msra.mxu0 0.0
  %2901 = vmatprep.subr.mxu0 0.0
  %2902 = vmatpush1.msra.mxu0 0.0
  %2903 = vmatprep.subr.mxu0 0.0
  %2904 = vmatpush1.msra.mxu0 0.0
  %2905 = vmatprep.subr.mxu0 0.0
  %2906 = vmatpush1.msra.mxu0 0.0
  %2907 = vmatprep.subr.mxu0 0.0
  %2908 = vmatpush1.msra.mxu0 0.0
  %2909 = vmatprep.subr.mxu0 0.0
  %2910 = vmatpush1.msra.mxu0 0.0
  %2911 = vmatprep.subr.mxu0 0.0
  %2912 = vmatpush1.msra.mxu0 0.0
  %2913 = vmatprep.subr.mxu0 0.0
  %2914 = vmatpush1.msra.mxu0 0.0
  %2915 = vmatprep.subr.mxu0 0.0
  %2916 = vmatpush1.msra.mxu0 0.0
  %2917 = vmatprep.subr.mxu0 0.0
  %2918 = vmatpush1.msra.mxu0 0.0
  %2919 = vmatprep.subr.mxu0 0.0
  %2920 = vmatpush1.msra.mxu0 0.0
  %2921 = vmatprep.subr.mxu0 0.0
  %2922 = vmatpush1.msra.mxu0 0.0
  %2923 = vmatprep.subr.mxu0 0.0
  %2924 = vmatpush1.msra.mxu0 0.0
  %2925 = vmatprep.subr.mxu0 0.0
  %2926 = vmatpush1.msra.mxu0 0.0
  %2927 = vmatprep.subr.mxu0 0.0
  %2928 = vmatpush1.msra.mxu0 0.0
  %2929 = vmatprep.subr.mxu0 0.0
  %2930 = vmatpush1.msra.mxu0 0.0
  %2931 = vmatprep.mubr.f32.mxu0 0.0
  %v2932 = vand.u32 %v581, 4294901760
  %2933 = vmatmul.mubr.f32.gmra.mrb[0].mxu0 %v2932
  %v2934 = vpop.f32.mrb[0].mxu0
  %v2935 = vadd.f32 %v2776, %v2934
  %v2936 = vpop.f32.mrb[0].mxu0
  %v2937 = vadd.f32 %v2778, %v2936
  %2938 = vmatprep.mubr.f32.mxu0 0.0
  %v2939 = vand.u32 %v584, 4294901760
  %2940 = vmatmul.mubr.f32.gmra.mrb[0].mxu0 %v2939
  %v2941 = vpop.f32.mrb[0].mxu0
  %v2942 = vadd.f32 %v2787, %v2941
  %v2943 = vpop.f32.mrb[0].mxu0
  %v2944 = vadd.f32 %v2789, %v2943
  %2945 = vmatprep.mubr.f32.mxu0 0.0
  %v2946 = vand.u32 %v587, 4294901760
  %2947 = vmatmul.mubr.f32.gmra.mrb[0].mxu0 %v2946
  %v2948 = vpop.f32.mrb[0].mxu0
  %v2949 = vadd.f32 %v2798, %v2948
  %v2950 = vpop.f32.mrb[0].mxu0
  %v2951 = vadd.f32 %v2800, %v2950
  %2952 = vmatprep.mubr.f32.mxu0 0.0
  %v2953 = vand.u32 %v590, 4294901760
  %2954 = vmatmul.mubr.f32.gmra.mrb[0].mxu0 %v2953
  %v2955 = vpop.f32.mrb[0].mxu0
  %v2956 = vadd.f32 %v2809, %v2955
  %v2957 = vpop.f32.mrb[0].mxu0
  %v2958 = vadd.f32 %v2811, %v2957
  %2959 = vmatprep.mubr.f32.mxu0 0.0
  %v2960 = vand.u32 %v593, 4294901760
  %2961 = vmatmul.mubr.f32.gmra.mrb[0].mxu0 %v2960
  %v2962 = vpop.f32.mrb[0].mxu0
  %v2963 = vadd.f32 %v2820, %v2962
  %v2964 = vpop.f32.mrb[0].mxu0
  %v2965 = vadd.f32 %v2822, %v2964
  %2966 = vmatprep.mubr.f32.mxu0 0.0
  %v2967 = vand.u32 %v596, 4294901760
  %2968 = vmatmul.mubr.f32.gmra.mrb[0].mxu0 %v2967
  %v2969 = vpop.f32.mrb[0].mxu0
  %v2970 = vadd.f32 %v2831, %v2969
  %v2971 = vpop.f32.mrb[0].mxu0
  %v2972 = vadd.f32 %v2833, %v2971
  %2973 = vmatprep.mubr.f32.mxu0 0.0
  %v2974 = vand.u32 %v599, 4294901760
  %2975 = vmatmul.mubr.f32.gmra.mrb[0].mxu0 %v2974
  %v2976 = vpop.f32.mrb[0].mxu0
  %v2977 = vadd.f32 %v2842, %v2976
  %v2978 = vpop.f32.mrb[0].mxu0
  %v2979 = vadd.f32 %v2844, %v2978
  %2980 = vmatprep.mubr.f32.mxu0 0.0
  %v2981 = vand.u32 %v602, 4294901760
  %2982 = vmatmul.mubr.f32.gmra.mrb[0].mxu0 %v2981
  %v2983 = vpop.f32.mrb[0].mxu0
  %v2984 = vadd.f32 %v2853, %v2983
  %v2985 = vpop.f32.mrb[0].mxu0
  %v2986 = vadd.f32 %v2855, %v2985
  %2987 = vdwg.mxu0
  %v2988 = vand.u32 %v2700, 4294901760
  %v2989 = vsub.f32 %v2700, %v2988
  %2990 = vmatprep.subr.mxu0 %v2989
  %v2991 = vand.u32 %v2697, 4294901760
  %v2992 = vsub.f32 %v2697, %v2991
  %2993 = vmatpush1.msra.mxu0 %v2992
  %2994 = vmatprep.subr.mxu0 0.0
  %2995 = vmatpush1.msra.mxu0 0.0
  %2996 = vmatprep.subr.mxu0 0.0
  %2997 = vmatpush1.msra.mxu0 0.0
  %2998 = vmatprep.subr.mxu0 0.0
  %2999 = vmatpush1.msra.mxu0 0.0
  %3000 = vmatprep.subr.mxu0 0.0
  %3001 = vmatpush1.msra.mxu0 0.0
  %3002 = vmatprep.subr.mxu0 0.0
  %3003 = vmatpush1.msra.mxu0 0.0
  %3004 = vmatprep.subr.mxu0 0.0
  %3005 = vmatpush1.msra.mxu0 0.0
  %3006 = vmatprep.subr.mxu0 0.0
  %3007 = vmatpush1.msra.mxu0 0.0
  %3008 = vmatprep.subr.mxu0 0.0
  %3009 = vmatpush1.msra.mxu0 0.0
  %3010 = vmatprep.subr.mxu0 0.0
  %3011 = vmatpush1.msra.mxu0 0.0
  %3012 = vmatprep.subr.mxu0 0.0
  %3013 = vmatpush1.msra.mxu0 0.0
  %3014 = vmatprep.subr.mxu0 0.0
  %3015 = vmatpush1.msra.mxu0 0.0
  %3016 = vmatprep.subr.mxu0 0.0
  %3017 = vmatpush1.msra.mxu0 0.0
  %3018 = vmatprep.subr.mxu0 0.0
  %3019 = vmatpush1.msra.mxu0 0.0
  %3020 = vmatprep.subr.mxu0 0.0
  %3021 = vmatpush1.msra.mxu0 0.0
  %3022 = vmatprep.subr.mxu0 0.0
  %3023 = vmatpush1.msra.mxu0 0.0
  %3024 = vmatprep.subr.mxu0 0.0
  %3025 = vmatpush1.msra.mxu0 0.0
  %3026 = vmatprep.subr.mxu0 0.0
  %3027 = vmatpush1.msra.mxu0 0.0
  %3028 = vmatprep.subr.mxu0 0.0
  %3029 = vmatpush1.msra.mxu0 0.0
  %3030 = vmatprep.subr.mxu0 0.0
  %3031 = vmatpush1.msra.mxu0 0.0
  %3032 = vmatprep.subr.mxu0 0.0
  %3033 = vmatpush1.msra.mxu0 0.0
  %3034 = vmatprep.subr.mxu0 0.0
  %3035 = vmatpush1.msra.mxu0 0.0
  %3036 = vmatprep.subr.mxu0 0.0
  %3037 = vmatpush1.msra.mxu0 0.0
  %3038 = vmatprep.subr.mxu0 0.0
  %3039 = vmatpush1.msra.mxu0 0.0
  %3040 = vmatprep.subr.mxu0 0.0
  %3041 = vmatpush1.msra.mxu0 0.0
  %3042 = vmatprep.subr.mxu0 0.0
  %3043 = vmatpush1.msra.mxu0 0.0
  %3044 = vmatprep.subr.mxu0 0.0
  %3045 = vmatpush1.msra.mxu0 0.0
  %3046 = vmatprep.subr.mxu0 0.0
  %3047 = vmatpush1.msra.mxu0 0.0
  %3048 = vmatprep.subr.mxu0 0.0
  %3049 = vmatpush1.msra.mxu0 0.0
  %3050 = vmatprep.subr.mxu0 0.0
  %3051 = vmatpush1.msra.mxu0 0.0
  %3052 = vmatprep.subr.mxu0 0.0
  %3053 = vmatpush1.msra.mxu0 0.0
  %3054 = vmatprep.subr.mxu0 0.0
  %3055 = vmatpush1.msra.mxu0 0.0
  %3056 = vmatprep.mubr.f32.mxu0 0.0
  %v3057 = vand.u32 %v581, 4294901760
  %v3058 = vsub.f32 %v581, %v3057
  %3059 = vmatmul.mubr.f32.gmra.mrb[0].mxu0 %v3058
  %v3060 = vpop.f32.mrb[0].mxu0
  %v3061 = vadd.f32 %v2935, %v3060
  %v3062 = vpop.f32.mrb[0].mxu0
  %v3063 = vadd.f32 %v2937, %v3062
  %3064 = vmatprep.mubr.f32.mxu0 0.0
  %v3065 = vand.u32 %v584, 4294901760
  %v3066 = vsub.f32 %v584, %v3065
  %3067 = vmatmul.mubr.f32.gmra.mrb[0].mxu0 %v3066
  %v3068 = vpop.f32.mrb[0].mxu0
  %v3069 = vadd.f32 %v2942, %v3068
  %v3070 = vpop.f32.mrb[0].mxu0
  %v3071 = vadd.f32 %v2944, %v3070
  %3072 = vmatprep.mubr.f32.mxu0 0.0
  %v3073 = vand.u32 %v587, 4294901760
  %v3074 = vsub.f32 %v587, %v3073
  %3075 = vmatmul.mubr.f32.gmra.mrb[0].mxu0 %v3074
  %v3076 = vpop.f32.mrb[0].mxu0
  %v3077 = vadd.f32 %v2949, %v3076
  %v3078 = vpop.f32.mrb[0].mxu0
  %v3079 = vadd.f32 %v2951, %v3078
  %3080 = vmatprep.mubr.f32.mxu0 0.0
  %v3081 = vand.u32 %v590, 4294901760
  %v3082 = vsub.f32 %v590, %v3081
  %3083 = vmatmul.mubr.f32.gmra.mrb[0].mxu0 %v3082
  %v3084 = vpop.f32.mrb[0].mxu0
  %v3085 = vadd.f32 %v2956, %v3084
  %v3086 = vpop.f32.mrb[0].mxu0
  %v3087 = vadd.f32 %v2958, %v3086
  %3088 = vmatprep.mubr.f32.mxu0 0.0
  %v3089 = vand.u32 %v593, 4294901760
  %v3090 = vsub.f32 %v593, %v3089
  %3091 = vmatmul.mubr.f32.gmra.mrb[0].mxu0 %v3090
  %v3092 = vpop.f32.mrb[0].mxu0
  %v3093 = vadd.f32 %v2963, %v3092
  %v3094 = vpop.f32.mrb[0].mxu0
  %v3095 = vadd.f32 %v2965, %v3094
  %3096 = vmatprep.mubr.f32.mxu0 0.0
  %v3097 = vand.u32 %v596, 4294901760
  %v3098 = vsub.f32 %v596, %v3097
  %3099 = vmatmul.mubr.f32.gmra.mrb[0].mxu0 %v3098
  %v3100 = vpop.f32.mrb[0].mxu0
  %v3101 = vadd.f32 %v2970, %v3100
  %v3102 = vpop.f32.mrb[0].mxu0
  %v3103 = vadd.f32 %v2972, %v3102
  %3104 = vmatprep.mubr.f32.mxu0 0.0
  %v3105 = vand.u32 %v599, 4294901760
  %v3106 = vsub.f32 %v599, %v3105
  %3107 = vmatmul.mubr.f32.gmra.mrb[0].mxu0 %v3106
  %v3108 = vpop.f32.mrb[0].mxu0
  %v3109 = vadd.f32 %v2977, %v3108
  %v3110 = vpop.f32.mrb[0].mxu0
  %v3111 = vadd.f32 %v2979, %v3110
  %3112 = vmatprep.mubr.f32.mxu0 0.0
  %v3113 = vand.u32 %v602, 4294901760
  %v3114 = vsub.f32 %v602, %v3113
  %3115 = vmatmul.mubr.f32.gmra.mrb[0].mxu0 %v3114
  %v3116 = vpop.f32.mrb[0].mxu0
  %v3117 = vadd.f32 %v2984, %v3116
  %v3118 = vpop.f32.mrb[0].mxu0
  %v3119 = vadd.f32 %v2986, %v3118
  %3120 = vdwg.mxu0
  %v3121 = vand.u32 %v2700, 4294901760
  %3122 = vmatprep.subr.mxu0 %v3121
  %v3123 = vand.u32 %v2697, 4294901760
  %3124 = vmatpush1.msra.mxu0 %v3123
  %3125 = vmatprep.subr.mxu0 0.0
  %3126 = vmatpush1.msra.mxu0 0.0
  %3127 = vmatprep.subr.mxu0 0.0
  %3128 = vmatpush1.msra.mxu0 0.0
  %3129 = vmatprep.subr.mxu0 0.0
  %3130 = vmatpush1.msra.mxu0 0.0
  %3131 = vmatprep.subr.mxu0 0.0
  %3132 = vmatpush1.msra.mxu0 0.0
  %3133 = vmatprep.subr.mxu0 0.0
  %3134 = vmatpush1.msra.mxu0 0.0
  %3135 = vmatprep.subr.mxu0 0.0
  %3136 = vmatpush1.msra.mxu0 0.0
  %3137 = vmatprep.subr.mxu0 0.0
  %3138 = vmatpush1.msra.mxu0 0.0
  %3139 = vmatprep.subr.mxu0 0.0
  %3140 = vmatpush1.msra.mxu0 0.0
  %3141 = vmatprep.subr.mxu0 0.0
  %3142 = vmatpush1.msra.mxu0 0.0
  %3143 = vmatprep.subr.mxu0 0.0
  %3144 = vmatpush1.msra.mxu0 0.0
  %3145 = vmatprep.subr.mxu0 0.0
  %3146 = vmatpush1.msra.mxu0 0.0
  %3147 = vmatprep.subr.mxu0 0.0
  %3148 = vmatpush1.msra.mxu0 0.0
  %3149 = vmatprep.subr.mxu0 0.0
  %3150 = vmatpush1.msra.mxu0 0.0
  %3151 = vmatprep.subr.mxu0 0.0
  %3152 = vmatpush1.msra.mxu0 0.0
  %3153 = vmatprep.subr.mxu0 0.0
  %3154 = vmatpush1.msra.mxu0 0.0
  %3155 = vmatprep.subr.mxu0 0.0
  %3156 = vmatpush1.msra.mxu0 0.0
  %3157 = vmatprep.subr.mxu0 0.0
  %3158 = vmatpush1.msra.mxu0 0.0
  %3159 = vmatprep.subr.mxu0 0.0
  %3160 = vmatpush1.msra.mxu0 0.0
  %3161 = vmatprep.subr.mxu0 0.0
  %3162 = vmatpush1.msra.mxu0 0.0
  %3163 = vmatprep.subr.mxu0 0.0
  %3164 = vmatpush1.msra.mxu0 0.0
  %3165 = vmatprep.subr.mxu0 0.0
  %3166 = vmatpush1.msra.mxu0 0.0
  %3167 = vmatprep.subr.mxu0 0.0
  %3168 = vmatpush1.msra.mxu0 0.0
  %3169 = vmatprep.subr.mxu0 0.0
  %3170 = vmatpush1.msra.mxu0 0.0
  %3171 = vmatprep.subr.mxu0 0.0
  %3172 = vmatpush1.msra.mxu0 0.0
  %3173 = vmatprep.subr.mxu0 0.0
  %3174 = vmatpush1.msra.mxu0 0.0
  %3175 = vmatprep.subr.mxu0 0.0
  %3176 = vmatpush1.msra.mxu0 0.0
  %3177 = vmatprep.subr.mxu0 0.0
  %3178 = vmatpush1.msra.mxu0 0.0
  %3179 = vmatprep.subr.mxu0 0.0
  %3180 = vmatpush1.msra.mxu0 0.0
  %3181 = vmatprep.subr.mxu0 0.0
  %3182 = vmatpush1.msra.mxu0 0.0
  %3183 = vmatprep.subr.mxu0 0.0
  %3184 = vmatpush1.msra.mxu0 0.0
  %3185 = vmatprep.subr.mxu0 0.0
  %3186 = vmatpush1.msra.mxu0 0.0
  %3187 = vmatprep.mubr.f32.mxu0 0.0
  %v3188 = vand.u32 %v581, 4294901760
  %v3189 = vsub.f32 %v581, %v3188
  %v3190 = vand.u32 %v3189, 4294901760
  %3191 = vmatmul.mubr.f32.gmra.mrb[0].mxu0 %v3190
  %v3192 = vpop.f32.mrb[0].mxu0
  %v3193 = vadd.f32 %v3061, %v3192
  %v3194 = vpop.f32.mrb[0].mxu0
  %v3195 = vadd.f32 %v3063, %v3194
  %3196 = vmatprep.mubr.f32.mxu0 0.0
  %v3197 = vand.u32 %v584, 4294901760
  %v3198 = vsub.f32 %v584, %v3197
  %v3199 = vand.u32 %v3198, 4294901760
  %3200 = vmatmul.mubr.f32.gmra.mrb[0].mxu0 %v3199
  %v3201 = vpop.f32.mrb[0].mxu0
  %v3202 = vadd.f32 %v3069, %v3201
  %v3203 = vpop.f32.mrb[0].mxu0
  %v3204 = vadd.f32 %v3071, %v3203
  %3205 = vmatprep.mubr.f32.mxu0 0.0
  %v3206 = vand.u32 %v587, 4294901760
  %v3207 = vsub.f32 %v587, %v3206
  %v3208 = vand.u32 %v3207, 4294901760
  %3209 = vmatmul.mubr.f32.gmra.mrb[0].mxu0 %v3208
  %v3210 = vpop.f32.mrb[0].mxu0
  %v3211 = vadd.f32 %v3077, %v3210
  %v3212 = vpop.f32.mrb[0].mxu0
  %v3213 = vadd.f32 %v3079, %v3212
  %3214 = vmatprep.mubr.f32.mxu0 0.0
  %v3215 = vand.u32 %v590, 4294901760
  %v3216 = vsub.f32 %v590, %v3215
  %v3217 = vand.u32 %v3216, 4294901760
  %3218 = vmatmul.mubr.f32.gmra.mrb[0].mxu0 %v3217
  %v3219 = vpop.f32.mrb[0].mxu0
  %v3220 = vadd.f32 %v3085, %v3219
  %v3221 = vpop.f32.mrb[0].mxu0
  %v3222 = vadd.f32 %v3087, %v3221
  %3223 = vmatprep.mubr.f32.mxu0 0.0
  %v3224 = vand.u32 %v593, 4294901760
  %v3225 = vsub.f32 %v593, %v3224
  %v3226 = vand.u32 %v3225, 4294901760
  %3227 = vmatmul.mubr.f32.gmra.mrb[0].mxu0 %v3226
  %v3228 = vpop.f32.mrb[0].mxu0
  %v3229 = vadd.f32 %v3093, %v3228
  %v3230 = vpop.f32.mrb[0].mxu0
  %v3231 = vadd.f32 %v3095, %v3230
  %3232 = vmatprep.mubr.f32.mxu0 0.0
  %v3233 = vand.u32 %v596, 4294901760
  %v3234 = vsub.f32 %v596, %v3233
  %v3235 = vand.u32 %v3234, 4294901760
  %3236 = vmatmul.mubr.f32.gmra.mrb[0].mxu0 %v3235
  %v3237 = vpop.f32.mrb[0].mxu0
  %v3238 = vadd.f32 %v3101, %v3237
  %v3239 = vpop.f32.mrb[0].mxu0
  %v3240 = vadd.f32 %v3103, %v3239
  %3241 = vmatprep.mubr.f32.mxu0 0.0
  %v3242 = vand.u32 %v599, 4294901760
  %v3243 = vsub.f32 %v599, %v3242
  %v3244 = vand.u32 %v3243, 4294901760
  %3245 = vmatmul.mubr.f32.gmra.mrb[0].mxu0 %v3244
  %v3246 = vpop.f32.mrb[0].mxu0
  %v3247 = vadd.f32 %v3109, %v3246
  %v3248 = vpop.f32.mrb[0].mxu0
  %v3249 = vadd.f32 %v3111, %v3248
  %3250 = vmatprep.mubr.f32.mxu0 0.0
  %v3251 = vand.u32 %v602, 4294901760
  %v3252 = vsub.f32 %v602, %v3251
  %v3253 = vand.u32 %v3252, 4294901760
  %3254 = vmatmul.mubr.f32.gmra.mrb[0].mxu0 %v3253
  %v3255 = vpop.f32.mrb[0].mxu0
  %v3256 = vadd.f32 %v3117, %v3255
  %v3257 = vpop.f32.mrb[0].mxu0
  %v3258 = vadd.f32 %v3119, %v3257
  %3259 = vdwg.mxu0
  %v3260 = vand.u32 %v2700, 4294901760
  %v3261 = vsub.f32 %v2700, %v3260
  %v3262 = vand.u32 %v3261, 4294901760
  %3263 = vmatprep.subr.mxu0 %v3262
  %v3264 = vand.u32 %v2697, 4294901760
  %v3265 = vsub.f32 %v2697, %v3264
  %v3266 = vand.u32 %v3265, 4294901760
  %3267 = vmatpush1.msra.mxu0 %v3266
  %3268 = vmatprep.subr.mxu0 0.0
  %3269 = vmatpush1.msra.mxu0 0.0
  %3270 = vmatprep.subr.mxu0 0.0
  %3271 = vmatpush1.msra.mxu0 0.0
  %3272 = vmatprep.subr.mxu0 0.0
  %3273 = vmatpush1.msra.mxu0 0.0
  %3274 = vmatprep.subr.mxu0 0.0
  %3275 = vmatpush1.msra.mxu0 0.0
  %3276 = vmatprep.subr.mxu0 0.0
  %3277 = vmatpush1.msra.mxu0 0.0
  %3278 = vmatprep.subr.mxu0 0.0
  %3279 = vmatpush1.msra.mxu0 0.0
  %3280 = vmatprep.subr.mxu0 0.0
  %3281 = vmatpush1.msra.mxu0 0.0
  %3282 = vmatprep.subr.mxu0 0.0
  %3283 = vmatpush1.msra.mxu0 0.0
  %3284 = vmatprep.subr.mxu0 0.0
  %3285 = vmatpush1.msra.mxu0 0.0
  %3286 = vmatprep.subr.mxu0 0.0
  %3287 = vmatpush1.msra.mxu0 0.0
  %3288 = vmatprep.subr.mxu0 0.0
  %3289 = vmatpush1.msra.mxu0 0.0
  %3290 = vmatprep.subr.mxu0 0.0
  %3291 = vmatpush1.msra.mxu0 0.0
  %3292 = vmatprep.subr.mxu0 0.0
  %3293 = vmatpush1.msra.mxu0 0.0
  %3294 = vmatprep.subr.mxu0 0.0
  %3295 = vmatpush1.msra.mxu0 0.0
  %3296 = vmatprep.subr.mxu0 0.0
  %3297 = vmatpush1.msra.mxu0 0.0
  %3298 = vmatprep.subr.mxu0 0.0
  %3299 = vmatpush1.msra.mxu0 0.0
  %3300 = vmatprep.subr.mxu0 0.0
  %3301 = vmatpush1.msra.mxu0 0.0
  %3302 = vmatprep.subr.mxu0 0.0
  %3303 = vmatpush1.msra.mxu0 0.0
  %3304 = vmatprep.subr.mxu0 0.0
  %3305 = vmatpush1.msra.mxu0 0.0
  %3306 = vmatprep.subr.mxu0 0.0
  %3307 = vmatpush1.msra.mxu0 0.0
  %3308 = vmatprep.subr.mxu0 0.0
  %3309 = vmatpush1.msra.mxu0 0.0
  %3310 = vmatprep.subr.mxu0 0.0
  %3311 = vmatpush1.msra.mxu0 0.0
  %3312 = vmatprep.subr.mxu0 0.0
  %3313 = vmatpush1.msra.mxu0 0.0
  %3314 = vmatprep.subr.mxu0 0.0
  %3315 = vmatpush1.msra.mxu0 0.0
  %3316 = vmatprep.subr.mxu0 0.0
  %3317 = vmatpush1.msra.mxu0 0.0
  %3318 = vmatprep.subr.mxu0 0.0
  %3319 = vmatpush1.msra.mxu0 0.0
  %3320 = vmatprep.subr.mxu0 0.0
  %3321 = vmatpush1.msra.mxu0 0.0
  %3322 = vmatprep.subr.mxu0 0.0
  %3323 = vmatpush1.msra.mxu0 0.0
  %3324 = vmatprep.subr.mxu0 0.0
  %3325 = vmatpush1.msra.mxu0 0.0
  %3326 = vmatprep.subr.mxu0 0.0
  %3327 = vmatpush1.msra.mxu0 0.0
  %3328 = vmatprep.subr.mxu0 0.0
  %3329 = vmatpush1.msra.mxu0 0.0
  %3330 = vmatprep.mubr.f32.mxu0 0.0
  %v3331 = vand.u32 %v581, 4294901760
  %3332 = vmatmul.mubr.f32.gmra.mrb[0].mxu0 %v3331
  %v3333 = vpop.f32.mrb[0].mxu0
  %v3334 = vadd.f32 %v3193, %v3333
  %v3335 = vpop.f32.mrb[0].mxu0
  %v3336 = vadd.f32 %v3195, %v3335
  %3337 = vmatprep.mubr.f32.mxu0 0.0
  %v3338 = vand.u32 %v584, 4294901760
  %3339 = vmatmul.mubr.f32.gmra.mrb[0].mxu0 %v3338
  %v3340 = vpop.f32.mrb[0].mxu0
  %v3341 = vadd.f32 %v3202, %v3340
  %v3342 = vpop.f32.mrb[0].mxu0
  %v3343 = vadd.f32 %v3204, %v3342
  %3344 = vmatprep.mubr.f32.mxu0 0.0
  %v3345 = vand.u32 %v587, 4294901760
  %3346 = vmatmul.mubr.f32.gmra.mrb[0].mxu0 %v3345
  %v3347 = vpop.f32.mrb[0].mxu0
  %v3348 = vadd.f32 %v3211, %v3347
  %v3349 = vpop.f32.mrb[0].mxu0
  %v3350 = vadd.f32 %v3213, %v3349
  %3351 = vmatprep.mubr.f32.mxu0 0.0
  %v3352 = vand.u32 %v590, 4294901760
  %3353 = vmatmul.mubr.f32.gmra.mrb[0].mxu0 %v3352
  %v3354 = vpop.f32.mrb[0].mxu0
  %v3355 = vadd.f32 %v3220, %v3354
  %v3356 = vpop.f32.mrb[0].mxu0
  %v3357 = vadd.f32 %v3222, %v3356
  %3358 = vmatprep.mubr.f32.mxu0 0.0
  %v3359 = vand.u32 %v593, 4294901760
  %3360 = vmatmul.mubr.f32.gmra.mrb[0].mxu0 %v3359
  %v3361 = vpop.f32.mrb[0].mxu0
  %v3362 = vadd.f32 %v3229, %v3361
  %v3363 = vpop.f32.mrb[0].mxu0
  %v3364 = vadd.f32 %v3231, %v3363
  %3365 = vmatprep.mubr.f32.mxu0 0.0
  %v3366 = vand.u32 %v596, 4294901760
  %3367 = vmatmul.mubr.f32.gmra.mrb[0].mxu0 %v3366
  %v3368 = vpop.f32.mrb[0].mxu0
  %v3369 = vadd.f32 %v3238, %v3368
  %v3370 = vpop.f32.mrb[0].mxu0
  %v3371 = vadd.f32 %v3240, %v3370
  %3372 = vmatprep.mubr.f32.mxu0 0.0
  %v3373 = vand.u32 %v599, 4294901760
  %3374 = vmatmul.mubr.f32.gmra.mrb[0].mxu0 %v3373
  %v3375 = vpop.f32.mrb[0].mxu0
  %v3376 = vadd.f32 %v3247, %v3375
  %v3377 = vpop.f32.mrb[0].mxu0
  %v3378 = vadd.f32 %v3249, %v3377
  %3379 = vmatprep.mubr.f32.mxu0 0.0
  %v3380 = vand.u32 %v602, 4294901760
  %3381 = vmatmul.mubr.f32.gmra.mrb[0].mxu0 %v3380
  %v3382 = vpop.f32.mrb[0].mxu0
  %v3383 = vadd.f32 %v3256, %v3382
  %v3384 = vpop.f32.mrb[0].mxu0
  %v3385 = vadd.f32 %v3258, %v3384
  %3386 = vdwg.mxu0
  %v3387 = vand.u32 %v2700, 4294901760
  %3388 = vmatprep.subr.mxu0 %v3387
  %v3389 = vand.u32 %v2697, 4294901760
  %3390 = vmatpush1.msra.mxu0 %v3389
  %3391 = vmatprep.subr.mxu0 0.0
  %3392 = vmatpush1.msra.mxu0 0.0
  %3393 = vmatprep.subr.mxu0 0.0
  %3394 = vmatpush1.msra.mxu0 0.0
  %3395 = vmatprep.subr.mxu0 0.0
  %3396 = vmatpush1.msra.mxu0 0.0
  %3397 = vmatprep.subr.mxu0 0.0
  %3398 = vmatpush1.msra.mxu0 0.0
  %3399 = vmatprep.subr.mxu0 0.0
  %3400 = vmatpush1.msra.mxu0 0.0
  %3401 = vmatprep.subr.mxu0 0.0
  %3402 = vmatpush1.msra.mxu0 0.0
  %3403 = vmatprep.subr.mxu0 0.0
  %3404 = vmatpush1.msra.mxu0 0.0
  %3405 = vmatprep.subr.mxu0 0.0
  %3406 = vmatpush1.msra.mxu0 0.0
  %3407 = vmatprep.subr.mxu0 0.0
  %3408 = vmatpush1.msra.mxu0 0.0
  %3409 = vmatprep.subr.mxu0 0.0
  %3410 = vmatpush1.msra.mxu0 0.0
  %3411 = vmatprep.subr.mxu0 0.0
  %3412 = vmatpush1.msra.mxu0 0.0
  %3413 = vmatprep.subr.mxu0 0.0
  %3414 = vmatpush1.msra.mxu0 0.0
  %3415 = vmatprep.subr.mxu0 0.0
  %3416 = vmatpush1.msra.mxu0 0.0
  %3417 = vmatprep.subr.mxu0 0.0
  %3418 = vmatpush1.msra.mxu0 0.0
  %3419 = vmatprep.subr.mxu0 0.0
  %3420 = vmatpush1.msra.mxu0 0.0
  %3421 = vmatprep.subr.mxu0 0.0
  %3422 = vmatpush1.msra.mxu0 0.0
  %3423 = vmatprep.subr.mxu0 0.0
  %3424 = vmatpush1.msra.mxu0 0.0
  %3425 = vmatprep.subr.mxu0 0.0
  %3426 = vmatpush1.msra.mxu0 0.0
  %3427 = vmatprep.subr.mxu0 0.0
  %3428 = vmatpush1.msra.mxu0 0.0
  %3429 = vmatprep.subr.mxu0 0.0
  %3430 = vmatpush1.msra.mxu0 0.0
  %3431 = vmatprep.subr.mxu0 0.0
  %3432 = vmatpush1.msra.mxu0 0.0
  %3433 = vmatprep.subr.mxu0 0.0
  %3434 = vmatpush1.msra.mxu0 0.0
  %3435 = vmatprep.subr.mxu0 0.0
  %3436 = vmatpush1.msra.mxu0 0.0
  %3437 = vmatprep.subr.mxu0 0.0
  %3438 = vmatpush1.msra.mxu0 0.0
  %3439 = vmatprep.subr.mxu0 0.0
  %3440 = vmatpush1.msra.mxu0 0.0
  %3441 = vmatprep.subr.mxu0 0.0
  %3442 = vmatpush1.msra.mxu0 0.0
  %3443 = vmatprep.subr.mxu0 0.0
  %3444 = vmatpush1.msra.mxu0 0.0
  %3445 = vmatprep.subr.mxu0 0.0
  %3446 = vmatpush1.msra.mxu0 0.0
  %3447 = vmatprep.subr.mxu0 0.0
  %3448 = vmatpush1.msra.mxu0 0.0
  %3449 = vmatprep.subr.mxu0 0.0
  %3450 = vmatpush1.msra.mxu0 0.0
  %3451 = vmatprep.subr.mxu0 0.0
  %3452 = vmatpush1.msra.mxu0 0.0
  %3453 = vmatprep.mubr.f32.mxu0 0.0
  %v3454 = vand.u32 %v581, 4294901760
  %3455 = vmatmul.mubr.f32.gmra.mrb[0].mxu0 %v3454
  %v3456 = vpop.f32.mrb[0].mxu0
  %v3457 = vadd.f32 %v3334, %v3456
  %v3458 = vpop.f32.mrb[0].mxu0
  %v3459 = vadd.f32 %v3336, %v3458
  %3460 = vmatprep.mubr.f32.mxu0 0.0
  %v3461 = vand.u32 %v584, 4294901760
  %3462 = vmatmul.mubr.f32.gmra.mrb[0].mxu0 %v3461
  %v3463 = vpop.f32.mrb[0].mxu0
  %v3464 = vadd.f32 %v3341, %v3463
  %v3465 = vpop.f32.mrb[0].mxu0
  %v3466 = vadd.f32 %v3343, %v3465
  %3467 = vmatprep.mubr.f32.mxu0 0.0
  %v3468 = vand.u32 %v587, 4294901760
  %3469 = vmatmul.mubr.f32.gmra.mrb[0].mxu0 %v3468
  %v3470 = vpop.f32.mrb[0].mxu0
  %v3471 = vadd.f32 %v3348, %v3470
  %v3472 = vpop.f32.mrb[0].mxu0
  %v3473 = vadd.f32 %v3350, %v3472
  %3474 = vmatprep.mubr.f32.mxu0 0.0
  %v3475 = vand.u32 %v590, 4294901760
  %3476 = vmatmul.mubr.f32.gmra.mrb[0].mxu0 %v3475
  %v3477 = vpop.f32.mrb[0].mxu0
  %v3478 = vadd.f32 %v3355, %v3477
  %v3479 = vpop.f32.mrb[0].mxu0
  %v3480 = vadd.f32 %v3357, %v3479
  %3481 = vmatprep.mubr.f32.mxu0 0.0
  %v3482 = vand.u32 %v593, 4294901760
  %3483 = vmatmul.mubr.f32.gmra.mrb[0].mxu0 %v3482
  %v3484 = vpop.f32.mrb[0].mxu0
  %v3485 = vadd.f32 %v3362, %v3484
  %v3486 = vpop.f32.mrb[0].mxu0
  %v3487 = vadd.f32 %v3364, %v3486
  %3488 = vmatprep.mubr.f32.mxu0 0.0
  %v3489 = vand.u32 %v596, 4294901760
  %3490 = vmatmul.mubr.f32.gmra.mrb[0].mxu0 %v3489
  %v3491 = vpop.f32.mrb[0].mxu0
  %v3492 = vadd.f32 %v3369, %v3491
  %v3493 = vpop.f32.mrb[0].mxu0
  %v3494 = vadd.f32 %v3371, %v3493
  %3495 = vmatprep.mubr.f32.mxu0 0.0
  %v3496 = vand.u32 %v599, 4294901760
  %3497 = vmatmul.mubr.f32.gmra.mrb[0].mxu0 %v3496
  %v3498 = vpop.f32.mrb[0].mxu0
  %v3499 = vadd.f32 %v3376, %v3498
  %v3500 = vpop.f32.mrb[0].mxu0
  %v3501 = vadd.f32 %v3378, %v3500
  %3502 = vmatprep.mubr.f32.mxu0 0.0
  %v3503 = vand.u32 %v602, 4294901760
  %3504 = vmatmul.mubr.f32.gmra.mrb[0].mxu0 %v3503
  %v3505 = vpop.f32.mrb[0].mxu0
  %v3506 = vadd.f32 %v3383, %v3505
  %v3507 = vpop.f32.mrb[0].mxu0
  %v3508 = vadd.f32 %v3385, %v3507
  %3509 = vdwg.mxu0
  %3510 = vrot.lane.b32.xlu0 %v3471, 127
  %v3511 = vpop.permute.xlu0 %3510
  %3512 = vrot.lane.b32.xlu0 %v3478, 127
  %v3513 = vpop.permute.xlu0 %3512
  %3514 = vrot.lane.b32.xlu0 %v3473, 127
  %v3515 = vpop.permute.xlu0 %3514
  %3516 = vrot.lane.b32.xlu0 %v3480, 127
  %v3517 = vpop.permute.xlu0 %3516
  %v3518 = vsel %vm1427, %v3511, %v3515
  %v3519 = vsel %vm1427, %v3513, %v3517
  %v3520 = vsel %vm1427, %v3515, %v3511
  %v3521 = vsel %vm1427, %v3517, %v3513
  %v3522 = vsel %vm1434, %v3518, 0.0
  %v3523 = vsel %vm1435, %v3520, 0.0
  %v3524 = vsel %vm1434, %v3519, 0.0
  %v3525 = vsel %vm1435, %v3521, 0.0
  %v3526 = vadd.f32 %v3457, %v3522
  %v3527 = vadd.f32 %v3459, %v3523
  %v3528 = vadd.f32 %v3464, %v3524
  %v3529 = vadd.f32 %v3466, %v3525
  %3530 = vrot.lane.b32.xlu0 %v3485, 112
  %v3531 = vpop.permute.xlu0 %3530
  %3532 = vrot.lane.b32.xlu0 %v3492, 112
  %v3533 = vpop.permute.xlu0 %3532
  %3534 = vrot.lane.b32.xlu0 %v3487, 112
  %v3535 = vpop.permute.xlu0 %3534
  %3536 = vrot.lane.b32.xlu0 %v3494, 112
  %v3537 = vpop.permute.xlu0 %3536
  %v3538 = vsel %vm1452, %v3531, %v3535
  %v3539 = vsel %vm1452, %v3533, %v3537
  %v3540 = vsel %vm1452, %v3535, %v3531
  %v3541 = vsel %vm1452, %v3537, %v3533
  %v3542 = vsel %vm1459, %v3538, 0.0
  %v3543 = vsel %vm1460, %v3540, 0.0
  %v3544 = vsel %vm1459, %v3539, 0.0
  %v3545 = vsel %vm1460, %v3541, 0.0
  %v3546 = vadd.f32 %v3526, %v3542
  %v3547 = vadd.f32 %v3527, %v3543
  %v3548 = vadd.f32 %v3528, %v3544
  %v3549 = vadd.f32 %v3529, %v3545
  %3550 = vrot.lane.b32.xlu0 %v3499, 111
  %v3551 = vpop.permute.xlu0 %3550
  %3552 = vrot.lane.b32.xlu0 %v3506, 111
  %v3553 = vpop.permute.xlu0 %3552
  %3554 = vrot.lane.b32.xlu0 %v3501, 111
  %v3555 = vpop.permute.xlu0 %3554
  %3556 = vrot.lane.b32.xlu0 %v3508, 111
  %v3557 = vpop.permute.xlu0 %3556
  %v3558 = vsel %vm1477, %v3551, %v3555
  %v3559 = vsel %vm1477, %v3553, %v3557
  %v3560 = vsel %vm1477, %v3555, %v3551
  %v3561 = vsel %vm1477, %v3557, %v3553
  %v3562 = vsel %vm1484, %v3558, 0.0
  %v3563 = vsel %vm1485, %v3560, 0.0
  %v3564 = vsel %vm1484, %v3559, 0.0
  %v3565 = vsel %vm1485, %v3561, 0.0
  %v3566 = vadd.f32 %v3546, %v3562
  %v3567 = vadd.f32 %v3547, %v3563
  %v3568 = vadd.f32 %v3548, %v3564
  %v3569 = vadd.f32 %v3549, %v3565
  %v3570 = vadd.f32 %v3566, %v1497
  %v3571 = vadd.f32 %v3567, %v1497
  %v3572 = vadd.f32 %v3568, %v1502
  %v3573 = vadd.f32 %v3569, %v1502
  %v3574 = vmax.f32 %v3570, 0.0
  %v3575 = vmax.f32 %v3571, 0.0
  %v3576 = vmax.f32 %v3572, 0.0
  %v3577 = vmax.f32 %v3573, 0.0
  %v3578 = vand.u32 %v3575, 4294901760
  %3579 = vmatprep.subr.mxu0 %v3578
  %v3580 = vand.u32 %v3574, 4294901760
  %3581 = vmatpush1.msra.mxu0 %v3580
  %v3582 = vand.u32 %v3577, 4294901760
  %3583 = vmatprep.subr.mxu0 %v3582
  %v3584 = vand.u32 %v3576, 4294901760
  %3585 = vmatpush1.msra.mxu0 %v3584
  %3586 = vmatprep.subr.mxu0 0.0
  %3587 = vmatpush1.msra.mxu0 0.0
  %3588 = vmatprep.subr.mxu0 0.0
  %3589 = vmatpush1.msra.mxu0 0.0
  %3590 = vmatprep.subr.mxu0 0.0
  %3591 = vmatpush1.msra.mxu0 0.0
  %3592 = vmatprep.subr.mxu0 0.0
  %3593 = vmatpush1.msra.mxu0 0.0
  %3594 = vmatprep.subr.mxu0 0.0
  %3595 = vmatpush1.msra.mxu0 0.0
  %3596 = vmatprep.subr.mxu0 0.0
  %3597 = vmatpush1.msra.mxu0 0.0
  %3598 = vmatprep.subr.mxu0 0.0
  %3599 = vmatpush1.msra.mxu0 0.0
  %3600 = vmatprep.subr.mxu0 0.0
  %3601 = vmatpush1.msra.mxu0 0.0
  %3602 = vmatprep.subr.mxu0 0.0
  %3603 = vmatpush1.msra.mxu0 0.0
  %3604 = vmatprep.subr.mxu0 0.0
  %3605 = vmatpush1.msra.mxu0 0.0
  %3606 = vmatprep.subr.mxu0 0.0
  %3607 = vmatpush1.msra.mxu0 0.0
  %3608 = vmatprep.subr.mxu0 0.0
  %3609 = vmatpush1.msra.mxu0 0.0
  %3610 = vmatprep.subr.mxu0 0.0
  %3611 = vmatpush1.msra.mxu0 0.0
  %3612 = vmatprep.subr.mxu0 0.0
  %3613 = vmatpush1.msra.mxu0 0.0
  %3614 = vmatprep.subr.mxu0 0.0
  %3615 = vmatpush1.msra.mxu0 0.0
  %3616 = vmatprep.subr.mxu0 0.0
  %3617 = vmatpush1.msra.mxu0 0.0
  %3618 = vmatprep.subr.mxu0 0.0
  %3619 = vmatpush1.msra.mxu0 0.0
  %3620 = vmatprep.subr.mxu0 0.0
  %3621 = vmatpush1.msra.mxu0 0.0
  %3622 = vmatprep.subr.mxu0 0.0
  %3623 = vmatpush1.msra.mxu0 0.0
  %3624 = vmatprep.subr.mxu0 0.0
  %3625 = vmatpush1.msra.mxu0 0.0
  %3626 = vmatprep.subr.mxu0 0.0
  %3627 = vmatpush1.msra.mxu0 0.0
  %3628 = vmatprep.subr.mxu0 0.0
  %3629 = vmatpush1.msra.mxu0 0.0
  %3630 = vmatprep.subr.mxu0 0.0
  %3631 = vmatpush1.msra.mxu0 0.0
  %3632 = vmatprep.subr.mxu0 0.0
  %3633 = vmatpush1.msra.mxu0 0.0
  %3634 = vmatprep.subr.mxu0 0.0
  %3635 = vmatpush1.msra.mxu0 0.0
  %3636 = vmatprep.subr.mxu0 0.0
  %3637 = vmatpush1.msra.mxu0 0.0
  %3638 = vmatprep.subr.mxu0 0.0
  %3639 = vmatpush1.msra.mxu0 0.0
  %3640 = vmatprep.subr.mxu0 0.0
  %3641 = vmatpush1.msra.mxu0 0.0
  %3642 = vmatprep.subr.mxu0 0.0
  %3643 = vmatpush1.msra.mxu0 0.0
  %3644 = vmatprep.subr.mxu0 0.0
  %3645 = vmatpush1.msra.mxu0 0.0
  %3646 = vmatprep.mubr.f32.mxu0 0.0
  %v3647 = vand.u32 %v1533, 4294901760
  %v3648 = vsub.f32 %v1533, %v3647
  %v3649 = vand.u32 %v3648, 4294901760
  %v3650 = vsub.f32 %v3648, %v3649
  %v3651 = vand.u32 %v3650, 4294901760
  %3652 = vmatmul.mubr.f32.gmra.mrb[0].mxu0 %v3651
  %v3653 = vpop.f32.mrb[0].mxu0
  %v3654 = vadd.f32 %v1515, %v3653
  %v3655 = vpop.f32.mrb[0].mxu0
  %v3656 = vadd.f32 %v1515, %v3655
  %3657 = vmatprep.mubr.f32.mxu0 0.0
  %v3658 = vand.u32 %v1536, 4294901760
  %v3659 = vsub.f32 %v1536, %v3658
  %v3660 = vand.u32 %v3659, 4294901760
  %v3661 = vsub.f32 %v3659, %v3660
  %v3662 = vand.u32 %v3661, 4294901760
  %3663 = vmatmul.mubr.f32.gmra.mrb[0].mxu0 %v3662
  %v3664 = vpop.f32.mrb[0].mxu0
  %v3665 = vadd.f32 %v1520, %v3664
  %v3666 = vpop.f32.mrb[0].mxu0
  %v3667 = vadd.f32 %v1520, %v3666
  %3668 = vmatprep.mubr.f32.mxu0 0.0
  %v3669 = vand.u32 %v1539, 4294901760
  %v3670 = vsub.f32 %v1539, %v3669
  %v3671 = vand.u32 %v3670, 4294901760
  %v3672 = vsub.f32 %v3670, %v3671
  %v3673 = vand.u32 %v3672, 4294901760
  %3674 = vmatmul.mubr.f32.gmra.mrb[0].mxu0 %v3673
  %v3675 = vpop.f32.mrb[0].mxu0
  %v3676 = vadd.f32 %v1525, %v3675
  %v3677 = vpop.f32.mrb[0].mxu0
  %v3678 = vadd.f32 %v1525, %v3677
  %3679 = vmatprep.mubr.f32.mxu0 0.0
  %v3680 = vand.u32 %v1542, 4294901760
  %v3681 = vsub.f32 %v1542, %v3680
  %v3682 = vand.u32 %v3681, 4294901760
  %v3683 = vsub.f32 %v3681, %v3682
  %v3684 = vand.u32 %v3683, 4294901760
  %3685 = vmatmul.mubr.f32.gmra.mrb[0].mxu0 %v3684
  %v3686 = vpop.f32.mrb[0].mxu0
  %v3687 = vadd.f32 %v1530, %v3686
  %v3688 = vpop.f32.mrb[0].mxu0
  %v3689 = vadd.f32 %v1530, %v3688
  %3690 = vdwg.mxu0
  %v3691 = vand.u32 %v3575, 4294901760
  %v3692 = vsub.f32 %v3575, %v3691
  %v3693 = vand.u32 %v3692, 4294901760
  %v3694 = vsub.f32 %v3692, %v3693
  %v3695 = vand.u32 %v3694, 4294901760
  %3696 = vmatprep.subr.mxu0 %v3695
  %v3697 = vand.u32 %v3574, 4294901760
  %v3698 = vsub.f32 %v3574, %v3697
  %v3699 = vand.u32 %v3698, 4294901760
  %v3700 = vsub.f32 %v3698, %v3699
  %v3701 = vand.u32 %v3700, 4294901760
  %3702 = vmatpush1.msra.mxu0 %v3701
  %v3703 = vand.u32 %v3577, 4294901760
  %v3704 = vsub.f32 %v3577, %v3703
  %v3705 = vand.u32 %v3704, 4294901760
  %v3706 = vsub.f32 %v3704, %v3705
  %v3707 = vand.u32 %v3706, 4294901760
  %3708 = vmatprep.subr.mxu0 %v3707
  %v3709 = vand.u32 %v3576, 4294901760
  %v3710 = vsub.f32 %v3576, %v3709
  %v3711 = vand.u32 %v3710, 4294901760
  %v3712 = vsub.f32 %v3710, %v3711
  %v3713 = vand.u32 %v3712, 4294901760
  %3714 = vmatpush1.msra.mxu0 %v3713
  %3715 = vmatprep.subr.mxu0 0.0
  %3716 = vmatpush1.msra.mxu0 0.0
  %3717 = vmatprep.subr.mxu0 0.0
  %3718 = vmatpush1.msra.mxu0 0.0
  %3719 = vmatprep.subr.mxu0 0.0
  %3720 = vmatpush1.msra.mxu0 0.0
  %3721 = vmatprep.subr.mxu0 0.0
  %3722 = vmatpush1.msra.mxu0 0.0
  %3723 = vmatprep.subr.mxu0 0.0
  %3724 = vmatpush1.msra.mxu0 0.0
  %3725 = vmatprep.subr.mxu0 0.0
  %3726 = vmatpush1.msra.mxu0 0.0
  %3727 = vmatprep.subr.mxu0 0.0
  %3728 = vmatpush1.msra.mxu0 0.0
  %3729 = vmatprep.subr.mxu0 0.0
  %3730 = vmatpush1.msra.mxu0 0.0
  %3731 = vmatprep.subr.mxu0 0.0
  %3732 = vmatpush1.msra.mxu0 0.0
  %3733 = vmatprep.subr.mxu0 0.0
  %3734 = vmatpush1.msra.mxu0 0.0
  %3735 = vmatprep.subr.mxu0 0.0
  %3736 = vmatpush1.msra.mxu0 0.0
  %3737 = vmatprep.subr.mxu0 0.0
  %3738 = vmatpush1.msra.mxu0 0.0
  %3739 = vmatprep.subr.mxu0 0.0
  %3740 = vmatpush1.msra.mxu0 0.0
  %3741 = vmatprep.subr.mxu0 0.0
  %3742 = vmatpush1.msra.mxu0 0.0
  %3743 = vmatprep.subr.mxu0 0.0
  %3744 = vmatpush1.msra.mxu0 0.0
  %3745 = vmatprep.subr.mxu0 0.0
  %3746 = vmatpush1.msra.mxu0 0.0
  %3747 = vmatprep.subr.mxu0 0.0
  %3748 = vmatpush1.msra.mxu0 0.0
  %3749 = vmatprep.subr.mxu0 0.0
  %3750 = vmatpush1.msra.mxu0 0.0
  %3751 = vmatprep.subr.mxu0 0.0
  %3752 = vmatpush1.msra.mxu0 0.0
  %3753 = vmatprep.subr.mxu0 0.0
  %3754 = vmatpush1.msra.mxu0 0.0
  %3755 = vmatprep.subr.mxu0 0.0
  %3756 = vmatpush1.msra.mxu0 0.0
  %3757 = vmatprep.subr.mxu0 0.0
  %3758 = vmatpush1.msra.mxu0 0.0
  %3759 = vmatprep.subr.mxu0 0.0
  %3760 = vmatpush1.msra.mxu0 0.0
  %3761 = vmatprep.subr.mxu0 0.0
  %3762 = vmatpush1.msra.mxu0 0.0
  %3763 = vmatprep.subr.mxu0 0.0
  %3764 = vmatpush1.msra.mxu0 0.0
  %3765 = vmatprep.subr.mxu0 0.0
  %3766 = vmatpush1.msra.mxu0 0.0
  %3767 = vmatprep.subr.mxu0 0.0
  %3768 = vmatpush1.msra.mxu0 0.0
  %3769 = vmatprep.subr.mxu0 0.0
  %3770 = vmatpush1.msra.mxu0 0.0
  %3771 = vmatprep.subr.mxu0 0.0
  %3772 = vmatpush1.msra.mxu0 0.0
  %3773 = vmatprep.subr.mxu0 0.0
  %3774 = vmatpush1.msra.mxu0 0.0
  %3775 = vmatprep.mubr.f32.mxu0 0.0
  %v3776 = vand.u32 %v1533, 4294901760
  %3777 = vmatmul.mubr.f32.gmra.mrb[0].mxu0 %v3776
  %v3778 = vpop.f32.mrb[0].mxu0
  %v3779 = vadd.f32 %v3654, %v3778
  %v3780 = vpop.f32.mrb[0].mxu0
  %v3781 = vadd.f32 %v3656, %v3780
  %3782 = vmatprep.mubr.f32.mxu0 0.0
  %v3783 = vand.u32 %v1536, 4294901760
  %3784 = vmatmul.mubr.f32.gmra.mrb[0].mxu0 %v3783
  %v3785 = vpop.f32.mrb[0].mxu0
  %v3786 = vadd.f32 %v3665, %v3785
  %v3787 = vpop.f32.mrb[0].mxu0
  %v3788 = vadd.f32 %v3667, %v3787
  %3789 = vmatprep.mubr.f32.mxu0 0.0
  %v3790 = vand.u32 %v1539, 4294901760
  %3791 = vmatmul.mubr.f32.gmra.mrb[0].mxu0 %v3790
  %v3792 = vpop.f32.mrb[0].mxu0
  %v3793 = vadd.f32 %v3676, %v3792
  %v3794 = vpop.f32.mrb[0].mxu0
  %v3795 = vadd.f32 %v3678, %v3794
  %3796 = vmatprep.mubr.f32.mxu0 0.0
  %v3797 = vand.u32 %v1542, 4294901760
  %3798 = vmatmul.mubr.f32.gmra.mrb[0].mxu0 %v3797
  %v3799 = vpop.f32.mrb[0].mxu0
  %v3800 = vadd.f32 %v3687, %v3799
  %v3801 = vpop.f32.mrb[0].mxu0
  %v3802 = vadd.f32 %v3689, %v3801
  %3803 = vdwg.mxu0
  %v3804 = vand.u32 %v3575, 4294901760
  %v3805 = vsub.f32 %v3575, %v3804
  %3806 = vmatprep.subr.mxu0 %v3805
  %v3807 = vand.u32 %v3574, 4294901760
  %v3808 = vsub.f32 %v3574, %v3807
  %3809 = vmatpush1.msra.mxu0 %v3808
  %v3810 = vand.u32 %v3577, 4294901760
  %v3811 = vsub.f32 %v3577, %v3810
  %3812 = vmatprep.subr.mxu0 %v3811
  %v3813 = vand.u32 %v3576, 4294901760
  %v3814 = vsub.f32 %v3576, %v3813
  %3815 = vmatpush1.msra.mxu0 %v3814
  %3816 = vmatprep.subr.mxu0 0.0
  %3817 = vmatpush1.msra.mxu0 0.0
  %3818 = vmatprep.subr.mxu0 0.0
  %3819 = vmatpush1.msra.mxu0 0.0
  %3820 = vmatprep.subr.mxu0 0.0
  %3821 = vmatpush1.msra.mxu0 0.0
  %3822 = vmatprep.subr.mxu0 0.0
  %3823 = vmatpush1.msra.mxu0 0.0
  %3824 = vmatprep.subr.mxu0 0.0
  %3825 = vmatpush1.msra.mxu0 0.0
  %3826 = vmatprep.subr.mxu0 0.0
  %3827 = vmatpush1.msra.mxu0 0.0
  %3828 = vmatprep.subr.mxu0 0.0
  %3829 = vmatpush1.msra.mxu0 0.0
  %3830 = vmatprep.subr.mxu0 0.0
  %3831 = vmatpush1.msra.mxu0 0.0
  %3832 = vmatprep.subr.mxu0 0.0
  %3833 = vmatpush1.msra.mxu0 0.0
  %3834 = vmatprep.subr.mxu0 0.0
  %3835 = vmatpush1.msra.mxu0 0.0
  %3836 = vmatprep.subr.mxu0 0.0
  %3837 = vmatpush1.msra.mxu0 0.0
  %3838 = vmatprep.subr.mxu0 0.0
  %3839 = vmatpush1.msra.mxu0 0.0
  %3840 = vmatprep.subr.mxu0 0.0
  %3841 = vmatpush1.msra.mxu0 0.0
  %3842 = vmatprep.subr.mxu0 0.0
  %3843 = vmatpush1.msra.mxu0 0.0
  %3844 = vmatprep.subr.mxu0 0.0
  %3845 = vmatpush1.msra.mxu0 0.0
  %3846 = vmatprep.subr.mxu0 0.0
  %3847 = vmatpush1.msra.mxu0 0.0
  %3848 = vmatprep.subr.mxu0 0.0
  %3849 = vmatpush1.msra.mxu0 0.0
  %3850 = vmatprep.subr.mxu0 0.0
  %3851 = vmatpush1.msra.mxu0 0.0
  %3852 = vmatprep.subr.mxu0 0.0
  %3853 = vmatpush1.msra.mxu0 0.0
  %3854 = vmatprep.subr.mxu0 0.0
  %3855 = vmatpush1.msra.mxu0 0.0
  %3856 = vmatprep.subr.mxu0 0.0
  %3857 = vmatpush1.msra.mxu0 0.0
  %3858 = vmatprep.subr.mxu0 0.0
  %3859 = vmatpush1.msra.mxu0 0.0
  %3860 = vmatprep.subr.mxu0 0.0
  %3861 = vmatpush1.msra.mxu0 0.0
  %3862 = vmatprep.subr.mxu0 0.0
  %3863 = vmatpush1.msra.mxu0 0.0
  %3864 = vmatprep.subr.mxu0 0.0
  %3865 = vmatpush1.msra.mxu0 0.0
  %3866 = vmatprep.subr.mxu0 0.0
  %3867 = vmatpush1.msra.mxu0 0.0
  %3868 = vmatprep.subr.mxu0 0.0
  %3869 = vmatpush1.msra.mxu0 0.0
  %3870 = vmatprep.subr.mxu0 0.0
  %3871 = vmatpush1.msra.mxu0 0.0
  %3872 = vmatprep.subr.mxu0 0.0
  %3873 = vmatpush1.msra.mxu0 0.0
  %3874 = vmatprep.subr.mxu0 0.0
  %3875 = vmatpush1.msra.mxu0 0.0
  %3876 = vmatprep.mubr.f32.mxu0 0.0
  %v3877 = vand.u32 %v1533, 4294901760
  %v3878 = vsub.f32 %v1533, %v3877
  %3879 = vmatmul.mubr.f32.gmra.mrb[0].mxu0 %v3878
  %v3880 = vpop.f32.mrb[0].mxu0
  %v3881 = vadd.f32 %v3779, %v3880
  %v3882 = vpop.f32.mrb[0].mxu0
  %v3883 = vadd.f32 %v3781, %v3882
  %3884 = vmatprep.mubr.f32.mxu0 0.0
  %v3885 = vand.u32 %v1536, 4294901760
  %v3886 = vsub.f32 %v1536, %v3885
  %3887 = vmatmul.mubr.f32.gmra.mrb[0].mxu0 %v3886
  %v3888 = vpop.f32.mrb[0].mxu0
  %v3889 = vadd.f32 %v3786, %v3888
  %v3890 = vpop.f32.mrb[0].mxu0
  %v3891 = vadd.f32 %v3788, %v3890
  %3892 = vmatprep.mubr.f32.mxu0 0.0
  %v3893 = vand.u32 %v1539, 4294901760
  %v3894 = vsub.f32 %v1539, %v3893
  %3895 = vmatmul.mubr.f32.gmra.mrb[0].mxu0 %v3894
  %v3896 = vpop.f32.mrb[0].mxu0
  %v3897 = vadd.f32 %v3793, %v3896
  %v3898 = vpop.f32.mrb[0].mxu0
  %v3899 = vadd.f32 %v3795, %v3898
  %3900 = vmatprep.mubr.f32.mxu0 0.0
  %v3901 = vand.u32 %v1542, 4294901760
  %v3902 = vsub.f32 %v1542, %v3901
  %3903 = vmatmul.mubr.f32.gmra.mrb[0].mxu0 %v3902
  %v3904 = vpop.f32.mrb[0].mxu0
  %v3905 = vadd.f32 %v3800, %v3904
  %v3906 = vpop.f32.mrb[0].mxu0
  %v3907 = vadd.f32 %v3802, %v3906
  %3908 = vdwg.mxu0
  %v3909 = vand.u32 %v3575, 4294901760
  %3910 = vmatprep.subr.mxu0 %v3909
  %v3911 = vand.u32 %v3574, 4294901760
  %3912 = vmatpush1.msra.mxu0 %v3911
  %v3913 = vand.u32 %v3577, 4294901760
  %3914 = vmatprep.subr.mxu0 %v3913
  %v3915 = vand.u32 %v3576, 4294901760
  %3916 = vmatpush1.msra.mxu0 %v3915
  %3917 = vmatprep.subr.mxu0 0.0
  %3918 = vmatpush1.msra.mxu0 0.0
  %3919 = vmatprep.subr.mxu0 0.0
  %3920 = vmatpush1.msra.mxu0 0.0
  %3921 = vmatprep.subr.mxu0 0.0
  %3922 = vmatpush1.msra.mxu0 0.0
  %3923 = vmatprep.subr.mxu0 0.0
  %3924 = vmatpush1.msra.mxu0 0.0
  %3925 = vmatprep.subr.mxu0 0.0
  %3926 = vmatpush1.msra.mxu0 0.0
  %3927 = vmatprep.subr.mxu0 0.0
  %3928 = vmatpush1.msra.mxu0 0.0
  %3929 = vmatprep.subr.mxu0 0.0
  %3930 = vmatpush1.msra.mxu0 0.0
  %3931 = vmatprep.subr.mxu0 0.0
  %3932 = vmatpush1.msra.mxu0 0.0
  %3933 = vmatprep.subr.mxu0 0.0
  %3934 = vmatpush1.msra.mxu0 0.0
  %3935 = vmatprep.subr.mxu0 0.0
  %3936 = vmatpush1.msra.mxu0 0.0
  %3937 = vmatprep.subr.mxu0 0.0
  %3938 = vmatpush1.msra.mxu0 0.0
  %3939 = vmatprep.subr.mxu0 0.0
  %3940 = vmatpush1.msra.mxu0 0.0
  %3941 = vmatprep.subr.mxu0 0.0
  %3942 = vmatpush1.msra.mxu0 0.0
  %3943 = vmatprep.subr.mxu0 0.0
  %3944 = vmatpush1.msra.mxu0 0.0
  %3945 = vmatprep.subr.mxu0 0.0
  %3946 = vmatpush1.msra.mxu0 0.0
  %3947 = vmatprep.subr.mxu0 0.0
  %3948 = vmatpush1.msra.mxu0 0.0
  %3949 = vmatprep.subr.mxu0 0.0
  %3950 = vmatpush1.msra.mxu0 0.0
  %3951 = vmatprep.subr.mxu0 0.0
  %3952 = vmatpush1.msra.mxu0 0.0
  %3953 = vmatprep.subr.mxu0 0.0
  %3954 = vmatpush1.msra.mxu0 0.0
  %3955 = vmatprep.subr.mxu0 0.0
  %3956 = vmatpush1.msra.mxu0 0.0
  %3957 = vmatprep.subr.mxu0 0.0
  %3958 = vmatpush1.msra.mxu0 0.0
  %3959 = vmatprep.subr.mxu0 0.0
  %3960 = vmatpush1.msra.mxu0 0.0
  %3961 = vmatprep.subr.mxu0 0.0
  %3962 = vmatpush1.msra.mxu0 0.0
  %3963 = vmatprep.subr.mxu0 0.0
  %3964 = vmatpush1.msra.mxu0 0.0
  %3965 = vmatprep.subr.mxu0 0.0
  %3966 = vmatpush1.msra.mxu0 0.0
  %3967 = vmatprep.subr.mxu0 0.0
  %3968 = vmatpush1.msra.mxu0 0.0
  %3969 = vmatprep.subr.mxu0 0.0
  %3970 = vmatpush1.msra.mxu0 0.0
  %3971 = vmatprep.subr.mxu0 0.0
  %3972 = vmatpush1.msra.mxu0 0.0
  %3973 = vmatprep.subr.mxu0 0.0
  %3974 = vmatpush1.msra.mxu0 0.0
  %3975 = vmatprep.subr.mxu0 0.0
  %3976 = vmatpush1.msra.mxu0 0.0
  %3977 = vmatprep.mubr.f32.mxu0 0.0
  %v3978 = vand.u32 %v1533, 4294901760
  %v3979 = vsub.f32 %v1533, %v3978
  %v3980 = vand.u32 %v3979, 4294901760
  %3981 = vmatmul.mubr.f32.gmra.mrb[0].mxu0 %v3980
  %v3982 = vpop.f32.mrb[0].mxu0
  %v3983 = vadd.f32 %v3881, %v3982
  %v3984 = vpop.f32.mrb[0].mxu0
  %v3985 = vadd.f32 %v3883, %v3984
  %3986 = vmatprep.mubr.f32.mxu0 0.0
  %v3987 = vand.u32 %v1536, 4294901760
  %v3988 = vsub.f32 %v1536, %v3987
  %v3989 = vand.u32 %v3988, 4294901760
  %3990 = vmatmul.mubr.f32.gmra.mrb[0].mxu0 %v3989
  %v3991 = vpop.f32.mrb[0].mxu0
  %v3992 = vadd.f32 %v3889, %v3991
  %v3993 = vpop.f32.mrb[0].mxu0
  %v3994 = vadd.f32 %v3891, %v3993
  %3995 = vmatprep.mubr.f32.mxu0 0.0
  %v3996 = vand.u32 %v1539, 4294901760
  %v3997 = vsub.f32 %v1539, %v3996
  %v3998 = vand.u32 %v3997, 4294901760
  %3999 = vmatmul.mubr.f32.gmra.mrb[0].mxu0 %v3998
  %v4000 = vpop.f32.mrb[0].mxu0
  %v4001 = vadd.f32 %v3897, %v4000
  %v4002 = vpop.f32.mrb[0].mxu0
  %v4003 = vadd.f32 %v3899, %v4002
  %4004 = vmatprep.mubr.f32.mxu0 0.0
  %v4005 = vand.u32 %v1542, 4294901760
  %v4006 = vsub.f32 %v1542, %v4005
  %v4007 = vand.u32 %v4006, 4294901760
  %4008 = vmatmul.mubr.f32.gmra.mrb[0].mxu0 %v4007
  %v4009 = vpop.f32.mrb[0].mxu0
  %v4010 = vadd.f32 %v3905, %v4009
  %v4011 = vpop.f32.mrb[0].mxu0
  %v4012 = vadd.f32 %v3907, %v4011
  %4013 = vdwg.mxu0
  %v4014 = vand.u32 %v3575, 4294901760
  %v4015 = vsub.f32 %v3575, %v4014
  %v4016 = vand.u32 %v4015, 4294901760
  %4017 = vmatprep.subr.mxu0 %v4016
  %v4018 = vand.u32 %v3574, 4294901760
  %v4019 = vsub.f32 %v3574, %v4018
  %v4020 = vand.u32 %v4019, 4294901760
  %4021 = vmatpush1.msra.mxu0 %v4020
  %v4022 = vand.u32 %v3577, 4294901760
  %v4023 = vsub.f32 %v3577, %v4022
  %v4024 = vand.u32 %v4023, 4294901760
  %4025 = vmatprep.subr.mxu0 %v4024
  %v4026 = vand.u32 %v3576, 4294901760
  %v4027 = vsub.f32 %v3576, %v4026
  %v4028 = vand.u32 %v4027, 4294901760
  %4029 = vmatpush1.msra.mxu0 %v4028
  %4030 = vmatprep.subr.mxu0 0.0
  %4031 = vmatpush1.msra.mxu0 0.0
  %4032 = vmatprep.subr.mxu0 0.0
  %4033 = vmatpush1.msra.mxu0 0.0
  %4034 = vmatprep.subr.mxu0 0.0
  %4035 = vmatpush1.msra.mxu0 0.0
  %4036 = vmatprep.subr.mxu0 0.0
  %4037 = vmatpush1.msra.mxu0 0.0
  %4038 = vmatprep.subr.mxu0 0.0
  %4039 = vmatpush1.msra.mxu0 0.0
  %4040 = vmatprep.subr.mxu0 0.0
  %4041 = vmatpush1.msra.mxu0 0.0
  %4042 = vmatprep.subr.mxu0 0.0
  %4043 = vmatpush1.msra.mxu0 0.0
  %4044 = vmatprep.subr.mxu0 0.0
  %4045 = vmatpush1.msra.mxu0 0.0
  %4046 = vmatprep.subr.mxu0 0.0
  %4047 = vmatpush1.msra.mxu0 0.0
  %4048 = vmatprep.subr.mxu0 0.0
  %4049 = vmatpush1.msra.mxu0 0.0
  %4050 = vmatprep.subr.mxu0 0.0
  %4051 = vmatpush1.msra.mxu0 0.0
  %4052 = vmatprep.subr.mxu0 0.0
  %4053 = vmatpush1.msra.mxu0 0.0
  %4054 = vmatprep.subr.mxu0 0.0
  %4055 = vmatpush1.msra.mxu0 0.0
  %4056 = vmatprep.subr.mxu0 0.0
  %4057 = vmatpush1.msra.mxu0 0.0
  %4058 = vmatprep.subr.mxu0 0.0
  %4059 = vmatpush1.msra.mxu0 0.0
  %4060 = vmatprep.subr.mxu0 0.0
  %4061 = vmatpush1.msra.mxu0 0.0
  %4062 = vmatprep.subr.mxu0 0.0
  %4063 = vmatpush1.msra.mxu0 0.0
  %4064 = vmatprep.subr.mxu0 0.0
  %4065 = vmatpush1.msra.mxu0 0.0
  %4066 = vmatprep.subr.mxu0 0.0
  %4067 = vmatpush1.msra.mxu0 0.0
  %4068 = vmatprep.subr.mxu0 0.0
  %4069 = vmatpush1.msra.mxu0 0.0
  %4070 = vmatprep.subr.mxu0 0.0
  %4071 = vmatpush1.msra.mxu0 0.0
  %4072 = vmatprep.subr.mxu0 0.0
  %4073 = vmatpush1.msra.mxu0 0.0
  %4074 = vmatprep.subr.mxu0 0.0
  %4075 = vmatpush1.msra.mxu0 0.0
  %4076 = vmatprep.subr.mxu0 0.0
  %4077 = vmatpush1.msra.mxu0 0.0
  %4078 = vmatprep.subr.mxu0 0.0
  %4079 = vmatpush1.msra.mxu0 0.0
  %4080 = vmatprep.subr.mxu0 0.0
  %4081 = vmatpush1.msra.mxu0 0.0
  %4082 = vmatprep.subr.mxu0 0.0
  %4083 = vmatpush1.msra.mxu0 0.0
  %4084 = vmatprep.subr.mxu0 0.0
  %4085 = vmatpush1.msra.mxu0 0.0
  %4086 = vmatprep.subr.mxu0 0.0
  %4087 = vmatpush1.msra.mxu0 0.0
  %4088 = vmatprep.subr.mxu0 0.0
  %4089 = vmatpush1.msra.mxu0 0.0
  %4090 = vmatprep.mubr.f32.mxu0 0.0
  %v4091 = vand.u32 %v1533, 4294901760
  %4092 = vmatmul.mubr.f32.gmra.mrb[0].mxu0 %v4091
  %v4093 = vpop.f32.mrb[0].mxu0
  %v4094 = vadd.f32 %v3983, %v4093
  %v4095 = vpop.f32.mrb[0].mxu0
  %v4096 = vadd.f32 %v3985, %v4095
  %4097 = vmatprep.mubr.f32.mxu0 0.0
  %v4098 = vand.u32 %v1536, 4294901760
  %4099 = vmatmul.mubr.f32.gmra.mrb[0].mxu0 %v4098
  %v4100 = vpop.f32.mrb[0].mxu0
  %v4101 = vadd.f32 %v3992, %v4100
  %v4102 = vpop.f32.mrb[0].mxu0
  %v4103 = vadd.f32 %v3994, %v4102
  %4104 = vmatprep.mubr.f32.mxu0 0.0
  %v4105 = vand.u32 %v1539, 4294901760
  %4106 = vmatmul.mubr.f32.gmra.mrb[0].mxu0 %v4105
  %v4107 = vpop.f32.mrb[0].mxu0
  %v4108 = vadd.f32 %v4001, %v4107
  %v4109 = vpop.f32.mrb[0].mxu0
  %v4110 = vadd.f32 %v4003, %v4109
  %4111 = vmatprep.mubr.f32.mxu0 0.0
  %v4112 = vand.u32 %v1542, 4294901760
  %4113 = vmatmul.mubr.f32.gmra.mrb[0].mxu0 %v4112
  %v4114 = vpop.f32.mrb[0].mxu0
  %v4115 = vadd.f32 %v4010, %v4114
  %v4116 = vpop.f32.mrb[0].mxu0
  %v4117 = vadd.f32 %v4012, %v4116
  %4118 = vdwg.mxu0
  %v4119 = vand.u32 %v3575, 4294901760
  %4120 = vmatprep.subr.mxu0 %v4119
  %v4121 = vand.u32 %v3574, 4294901760
  %4122 = vmatpush1.msra.mxu0 %v4121
  %v4123 = vand.u32 %v3577, 4294901760
  %4124 = vmatprep.subr.mxu0 %v4123
  %v4125 = vand.u32 %v3576, 4294901760
  %4126 = vmatpush1.msra.mxu0 %v4125
  %4127 = vmatprep.subr.mxu0 0.0
  %4128 = vmatpush1.msra.mxu0 0.0
  %4129 = vmatprep.subr.mxu0 0.0
  %4130 = vmatpush1.msra.mxu0 0.0
  %4131 = vmatprep.subr.mxu0 0.0
  %4132 = vmatpush1.msra.mxu0 0.0
  %4133 = vmatprep.subr.mxu0 0.0
  %4134 = vmatpush1.msra.mxu0 0.0
  %4135 = vmatprep.subr.mxu0 0.0
  %4136 = vmatpush1.msra.mxu0 0.0
  %4137 = vmatprep.subr.mxu0 0.0
  %4138 = vmatpush1.msra.mxu0 0.0
  %4139 = vmatprep.subr.mxu0 0.0
  %4140 = vmatpush1.msra.mxu0 0.0
  %4141 = vmatprep.subr.mxu0 0.0
  %4142 = vmatpush1.msra.mxu0 0.0
  %4143 = vmatprep.subr.mxu0 0.0
  %4144 = vmatpush1.msra.mxu0 0.0
  %4145 = vmatprep.subr.mxu0 0.0
  %4146 = vmatpush1.msra.mxu0 0.0
  %4147 = vmatprep.subr.mxu0 0.0
  %4148 = vmatpush1.msra.mxu0 0.0
  %4149 = vmatprep.subr.mxu0 0.0
  %4150 = vmatpush1.msra.mxu0 0.0
  %4151 = vmatprep.subr.mxu0 0.0
  %4152 = vmatpush1.msra.mxu0 0.0
  %4153 = vmatprep.subr.mxu0 0.0
  %4154 = vmatpush1.msra.mxu0 0.0
  %4155 = vmatprep.subr.mxu0 0.0
  %4156 = vmatpush1.msra.mxu0 0.0
  %4157 = vmatprep.subr.mxu0 0.0
  %4158 = vmatpush1.msra.mxu0 0.0
  %4159 = vmatprep.subr.mxu0 0.0
  %4160 = vmatpush1.msra.mxu0 0.0
  %4161 = vmatprep.subr.mxu0 0.0
  %4162 = vmatpush1.msra.mxu0 0.0
  %4163 = vmatprep.subr.mxu0 0.0
  %4164 = vmatpush1.msra.mxu0 0.0
  %4165 = vmatprep.subr.mxu0 0.0
  %4166 = vmatpush1.msra.mxu0 0.0
  %4167 = vmatprep.subr.mxu0 0.0
  %4168 = vmatpush1.msra.mxu0 0.0
  %4169 = vmatprep.subr.mxu0 0.0
  %4170 = vmatpush1.msra.mxu0 0.0
  %4171 = vmatprep.subr.mxu0 0.0
  %4172 = vmatpush1.msra.mxu0 0.0
  %4173 = vmatprep.subr.mxu0 0.0
  %4174 = vmatpush1.msra.mxu0 0.0
  %4175 = vmatprep.subr.mxu0 0.0
  %4176 = vmatpush1.msra.mxu0 0.0
  %4177 = vmatprep.subr.mxu0 0.0
  %4178 = vmatpush1.msra.mxu0 0.0
  %4179 = vmatprep.subr.mxu0 0.0
  %4180 = vmatpush1.msra.mxu0 0.0
  %4181 = vmatprep.subr.mxu0 0.0
  %4182 = vmatpush1.msra.mxu0 0.0
  %4183 = vmatprep.subr.mxu0 0.0
  %4184 = vmatpush1.msra.mxu0 0.0
  %4185 = vmatprep.subr.mxu0 0.0
  %4186 = vmatpush1.msra.mxu0 0.0
  %4187 = vmatprep.mubr.f32.mxu0 0.0
  %v4188 = vand.u32 %v1533, 4294901760
  %4189 = vmatmul.mubr.f32.gmra.mrb[0].mxu0 %v4188
  %v4190 = vpop.f32.mrb[0].mxu0
  %v4191 = vadd.f32 %v4094, %v4190
  %v4192 = vpop.f32.mrb[0].mxu0
  %v4193 = vadd.f32 %v4096, %v4192
  %4194 = vmatprep.mubr.f32.mxu0 0.0
  %v4195 = vand.u32 %v1536, 4294901760
  %4196 = vmatmul.mubr.f32.gmra.mrb[0].mxu0 %v4195
  %v4197 = vpop.f32.mrb[0].mxu0
  %v4198 = vadd.f32 %v4101, %v4197
  %v4199 = vpop.f32.mrb[0].mxu0
  %v4200 = vadd.f32 %v4103, %v4199
  %4201 = vmatprep.mubr.f32.mxu0 0.0
  %v4202 = vand.u32 %v1539, 4294901760
  %4203 = vmatmul.mubr.f32.gmra.mrb[0].mxu0 %v4202
  %v4204 = vpop.f32.mrb[0].mxu0
  %v4205 = vadd.f32 %v4108, %v4204
  %v4206 = vpop.f32.mrb[0].mxu0
  %v4207 = vadd.f32 %v4110, %v4206
  %4208 = vmatprep.mubr.f32.mxu0 0.0
  %v4209 = vand.u32 %v1542, 4294901760
  %4210 = vmatmul.mubr.f32.gmra.mrb[0].mxu0 %v4209
  %v4211 = vpop.f32.mrb[0].mxu0
  %v4212 = vadd.f32 %v4115, %v4211
  %v4213 = vpop.f32.mrb[0].mxu0
  %v4214 = vadd.f32 %v4117, %v4213
  %4215 = vdwg.mxu0
  %v4216 = vmax.f32 %v4191, 0.0
  %v4217 = vmax.f32 %v4193, 0.0
  %v4218 = vmax.f32 %v4198, 0.0
  %v4219 = vmax.f32 %v4200, 0.0
  %v4220 = vmax.f32 %v4205, 0.0
  %v4221 = vmax.f32 %v4207, 0.0
  %v4222 = vmax.f32 %v4212, 0.0
  %v4223 = vmax.f32 %v4214, 0.0
  %s4224 = scalar_lea.vmem %s5, 64
  %4225 = vst [vmem:[%s4224] sm:$0xff] %v4216
  %4226 = vst [vmem:[%s4224 + $0x8] sm:$0xff] %v4217
  %4227 = vst [vmem:[%s4224 + $0x10] sm:$0xff] %v4218
  %4228 = vst [vmem:[%s4224 + $0x18] sm:$0xff] %v4219
  %4229 = vst [vmem:[%s4224 + $0x20] sm:$0xff] %v4220
  %4230 = vst [vmem:[%s4224 + $0x28] sm:$0xff] %v4221
  %4231 = vst [vmem:[%s4224 + $0x30] sm:$0xff] %v4222
  %4232 = vst [vmem:[%s4224 + $0x38] sm:$0xff] %v4223
  // Predicated region
  $region22: #{decoder_block_forward.1} parent=0 // pred_check
    _
  $region23: #{decoder_block_forward.1} parent=0 // pred_check_branch
    %4234 = sbr.rel (0) target = $region25
  $region24: #{decoder_block_forward.1} parent=0 // pred_region
    _
  $region25: #{decoder_block_forward.1} parent=0 // pred_fallthru
    _
  // Predicated region
  $region26: #{decoder_block_forward.1} parent=0 // pred_check
    _
  $region27: #{decoder_block_forward.1} parent=0 // pred_check_branch
    %4236 = sbr.rel (0) target = $region29
  $region28: #{decoder_block_forward.1} parent=0 // pred_region
    _
  $region29: #{decoder_block_forward.1} parent=0 // pred_fallthru
    _

</llo_original>
